<compile_context>
chip_gen: v7x
topology: tpu7x:2x2x1
jax: 0.10.0
libtpu: 0.0.40
codegen_flags: <defaults>
</compile_context>

<pallas_src>
import numpy as np
import jax
import jax.numpy as jnp
from jax import lax
from jax.experimental import pallas as pl
from jax.experimental.pallas import tpu as pltpu

C_IN = 10
C_OUT = 10
K = 5
PAD = 2
CPAD = 16                      # Cin padded to a multiple of the 8-row sublane tile
N_GROUPS = K * K + 1           # 25 conv taps + 1 bias group
K_DIM = N_GROUPS * CPAD        # 416 contraction rows


def _pick_batch_tile(n, s0, lpad, budget_bytes=8 << 20):
    """Largest divisor of n whose per-step VMEM footprint fits the budget."""
    best = 1
    for nb in range(1, n + 1):
        if n % nb:
            continue
        patch = K_DIM * nb * s0 * 4
        io = 2 * nb * (C_IN + C_OUT) * s0 * 4      # double-buffered in/out blocks
        stage = CPAD * (2 * lpad + s0) * 4
        if patch + io + stage + C_OUT * K_DIM * 4 <= budget_bytes:
            best = nb
    return best


def model2_forward(x_nchw, w_oihw, bias):
    """x_nchw: (N, 10, H, W) f32; w_oihw: (10, 10, 5, 5); bias: (10,)."""
    n, c_in, h, w = x_nchw.shape
    c_out = w_oihw.shape[0]
    # Residual add (op1 = Add(conv(x), x)) requires matching channel counts.
    assert c_in == C_IN and c_out == C_OUT and c_in == c_out

    s0 = h * w
    # Zero halo wide enough for the largest tap offset (PAD*w + PAD), rounded
    # to a 128-lane boundary so the staging store is lane-aligned.
    lpad = max(128, -(-(PAD * w + PAD) // 128) * 128)
    nb = _pick_batch_tile(n, s0, lpad)
    sn = nb * s0

    def kernel(x_ref, w_ref, out_ref, stage_ref, patch_ref):
        # x_ref   : (NB, Cin, H*W)         lane-dense input block
        # w_ref   : (Cout, 26*CPAD)        weights (taps + bias column)
        # out_ref : (NB, Cout, H*W)        lane-dense output block
        # stage   : (CPAD, LPAD+H*W+LPAD)  zero-halo staged sample
        # patch   : (26*CPAD, NB*H*W)      im2col patch (aligned tap groups)

        @pl.when(pl.program_id(0) == 0)
        def _init():
            stage_ref[...] = jnp.zeros_like(stage_ref)
            patch_ref[...] = jnp.zeros_like(patch_ref)
            # Bias group: a single all-ones contraction row.
            patch_ref[pl.ds(K * K * CPAD, 1), :] = jnp.ones((1, sn), jnp.float32)

        # Column-boundary masks (depend only on the kw offset), built once.
        c_idx = lax.broadcasted_iota(jnp.int32, (1, s0), 1) % w
        col_masks = {dw: (c_idx + dw >= 0) & (c_idx + dw < w)
                     for dw in range(-PAD, PAD + 1) if dw != 0}

        for b in range(nb):
            # Stage sample b into the interior of the zero-halo buffer; halo
            # lanes and channel rows >= Cin stay zero from the one-time memset.
            stage_ref[pl.ds(0, C_IN), pl.ds(lpad, s0)] = x_ref[b]
            stage = stage_ref[...]                       # (CPAD, LPAD+S0+LPAD)
            for kh in range(K):
                for kw in range(K):
                    g = kh * K + kw
                    off = (kh - PAD) * w + (kw - PAD)
                    slab = stage[:, lpad + off: lpad + off + s0]   # (CPAD, S0)
                    dw = kw - PAD
                    if dw != 0:
                        slab = jnp.where(col_masks[dw], slab, 0.0)
                    # 16-sublane-aligned, full-tile store into the patch.
                    patch_ref[pl.ds(g * CPAD, CPAD), pl.ds(b * s0, s0)] = slab

        # One MXU contraction for the whole batch tile:
        # (Cout, 416) @ (416, NB*H*W) -> conv + bias.
        y = jnp.dot(w_ref[...], patch_ref[...],
                    preferred_element_type=jnp.float32)

        # Epilogue: residual add with the original input (Add(conv(x), x)).
        for b in range(nb):
            out_ref[b] = (y[:, b * s0:(b + 1) * s0] + x_ref[b]).astype(out_ref.dtype)

    # OIHW -> (Cout, 26*CPAD): tap groups ordered (kh, kw, cin padded to 16),
    # plus a final group whose first column is the bias.
    w_perm = jnp.transpose(w_oihw, (0, 2, 3, 1))                       # (Cout,K,K,Cin)
    w_perm = jnp.pad(w_perm, ((0, 0), (0, 0), (0, 0), (0, CPAD - c_in)))
    w_taps = w_perm.reshape(c_out, K * K * CPAD)
    w_bias = jnp.zeros((c_out, CPAD), jnp.float32).at[:, 0].set(bias)
    w_mat = jnp.concatenate([w_taps, w_bias], axis=1)                  # (Cout, 416)

    flops = 2 * n * s0 * K * K * c_in * c_out
    bytes_accessed = 4 * (n * c_in * s0 + w_mat.size + n * c_out * s0)

    out_flat = pl.pallas_call(
        kernel,
        out_shape=jax.ShapeDtypeStruct((n, c_out, s0), x_nchw.dtype),
        grid=(n // nb,),
        in_specs=[
            pl.BlockSpec((nb, c_in, s0), lambda i: (i, 0, 0)),
            pl.BlockSpec((c_out, K_DIM), lambda i: (0, 0)),
        ],
        out_specs=pl.BlockSpec((nb, c_out, s0), lambda i: (i, 0, 0)),
        scratch_shapes=[
            pltpu.VMEM((CPAD, 2 * lpad + s0), jnp.float32),
            pltpu.VMEM((K_DIM, sn), jnp.float32),
        ],
        compiler_params=pltpu.CompilerParams(
            dimension_semantics=("parallel",)),
        cost_estimate=pl.CostEstimate(flops=flops, transcendentals=0,
                                      bytes_accessed=bytes_accessed),
    )(x_nchw.reshape(n, c_in, s0), w_mat)

    return out_flat.reshape(n, c_out, h, w)


def reference_forward(x_nchw, w_oihw, bias):
    """Pure-JAX reference: conv2d(padding=2) + bias + input."""
    y = lax.conv_general_dilated(
        x_nchw, w_oihw,
        window_strides=(1, 1), padding=((PAD, PAD), (PAD, PAD)),
        dimension_numbers=("NCHW", "OIHW", "NCHW"))
    y = y + bias.reshape(1, C_OUT, 1, 1)
    return y + x_nchw


if __name__ == "__main__":
    key = jax.random.PRNGKey(0)
    k_x, k_w, k_b = jax.random.split(key, 3)

    # Small shapes consistent with the module: batch=2, C=10, 16x16 spatial.
    x = jax.random.normal(k_x, (2, C_IN, 16, 16), dtype=jnp.float32)

    # Deterministic parameter init (PyTorch-style uniform fan-in bound).
    fan_in = C_IN * K * K
    bound = 1.0 / np.sqrt(fan_in)
    w = jax.random.uniform(k_w, (C_OUT, C_IN, K, K), jnp.float32, -bound, bound)
    b = jax.random.uniform(k_b, (C_OUT,), jnp.float32, -bound, bound)

    out = jax.block_until_ready(model2_forward(x, w, b))
    ref = jax.block_until_ready(reference_forward(x, w, b))

    np.testing.assert_allclose(np.asarray(out), np.asarray(ref),
                               rtol=1e-4, atol=1e-4)
    print("KERNEL_OK")
</pallas_src>

<mosaic_0001>
module attributes {stable_mosaic.version = 11 : i64} {
  func.func @kernel(%arg0: i32, %arg1: memref<2x10x256xf32, #tpu.memory_space<vmem>>, %arg2: memref<10x416xf32, #tpu.memory_space<vmem>>, %arg3: memref<2x10x256xf32, #tpu.memory_space<vmem>>, %arg4: memref<16x512xf32, #tpu.memory_space<vmem>>, %arg5: memref<416x512xf32, #tpu.memory_space<vmem>>) attributes {dimension_semantics = [#tpu.dimension_semantics<parallel>], iteration_bounds = array<i64: 1>, scalar_prefetch = 0 : i64, scratch_operands = 2 : i64, tpu.core_type = #tpu.core_type<tc>, window_params = [{transform_indices = @transform_0, window_bounds = array<i64: 2, 10, 256>}, {pipeline_mode = #tpu.pipeline_mode<synchronous>, transform_indices = @transform_1, window_bounds = array<i64: 10, 416>}, {transform_indices = @transform_2, window_bounds = array<i64: 2, 10, 256>}]} {
    %c0_i32 = arith.constant 0 : i32
    %0 = arith.cmpi eq, %arg0, %c0_i32 : i32
    %1 = arith.extui %0 : i1 to i32
    %c0_i32_0 = arith.constant 0 : i32
    %2 = arith.cmpi ne, %1, %c0_i32_0 : i32
    scf.if %2 {
      %cst_162 = arith.constant 0.000000e+00 : f32
      %341 = vector.broadcast %cst_162 : f32 to vector<16x512xf32>
      %c0_163 = arith.constant 0 : index
      %c0_164 = arith.constant 0 : index
      %342 = vector.load %arg4[%c0_163, %c0_164] : memref<16x512xf32, #tpu.memory_space<vmem>>, vector<16x512xf32>
      tpu.vector_store %arg4[%c0_163, %c0_164], %341 {strides = array<i32>} : memref<16x512xf32, #tpu.memory_space<vmem>>, vector<16x512xf32>,
      %cst_165 = arith.constant 0.000000e+00 : f32
      %343 = vector.broadcast %cst_165 : f32 to vector<416x512xf32>
      %c0_166 = arith.constant 0 : index
      %c0_167 = arith.constant 0 : index
      %344 = vector.load %arg5[%c0_166, %c0_167] : memref<416x512xf32, #tpu.memory_space<vmem>>, vector<416x512xf32>
      tpu.vector_store %arg5[%c0_166, %c0_167], %343 {strides = array<i32>} : memref<416x512xf32, #tpu.memory_space<vmem>>, vector<416x512xf32>,
      %cst_168 = arith.constant 1.000000e+00 : f32
      %345 = vector.broadcast %cst_168 : f32 to vector<1x512xf32>
      %c400 = arith.constant 400 : index
      %c0_169 = arith.constant 0 : index
      %346 = vector.load %arg5[%c400, %c0_169] : memref<416x512xf32, #tpu.memory_space<vmem>>, vector<1x512xf32>
      tpu.vector_store %arg5[%c400, %c0_169], %345 {strides = array<i32>} : memref<416x512xf32, #tpu.memory_space<vmem>>, vector<1x512xf32>,
    } else {
    }
    %3 = tpu.iota {dimensions = array<i32: 1>} : vector<1x256xi32>
    %c16_i32 = arith.constant 16 : i32
    %c0_i32_1 = arith.constant 0 : i32
    %4 = arith.cmpi eq, %c16_i32, %c0_i32_1 : i32
    %c1_i32 = arith.constant 1 : i32
    %5 = arith.select %4, %c1_i32, %c16_i32 : i32
    %6 = vector.broadcast %5 : i32 to vector<1x256xi32>
    %7 = arith.remsi %3, %6 : vector<1x256xi32>
    %c0_i32_2 = arith.constant 0 : i32
    %8 = vector.broadcast %c0_i32_2 : i32 to vector<1x256xi32>
    %9 = arith.cmpi ne, %7, %8 : vector<1x256xi32>
    %c0_i32_3 = arith.constant 0 : i32
    %10 = vector.broadcast %c0_i32_3 : i32 to vector<1x256xi32>
    %11 = arith.cmpi slt, %7, %10 : vector<1x256xi32>
    %c0_i32_4 = arith.constant 0 : i32
    %12 = arith.cmpi slt, %5, %c0_i32_4 : i32
    %13 = vector.broadcast %12 : i1 to vector<1x256xi1>
    %14 = vector.broadcast %13 : vector<1x256xi1> to vector<1x256xi1>
    %15 = arith.xori %11, %14 : vector<1x256xi1>
    %16 = arith.andi %15, %9 : vector<1x256xi1>
    %17 = vector.broadcast %5 : i32 to vector<1x256xi32>
    %18 = arith.addi %7, %17 : vector<1x256xi32>
    %19 = arith.select %16, %18, %7 : vector<1x256xi1>, vector<1x256xi32>
    %c-2_i32 = arith.constant -2 : i32
    %20 = vector.broadcast %c-2_i32 : i32 to vector<1x256xi32>
    %21 = arith.addi %19, %20 : vector<1x256xi32>
    %c0_i32_5 = arith.constant 0 : i32
    %22 = vector.broadcast %c0_i32_5 : i32 to vector<1x256xi32>
    %23 = arith.cmpi sge, %21, %22 : vector<1x256xi32>
    %c-2_i32_6 = arith.constant -2 : i32
    %24 = vector.broadcast %c-2_i32_6 : i32 to vector<1x256xi32>
    %25 = arith.addi %19, %24 : vector<1x256xi32>
    %c16_i32_7 = arith.constant 16 : i32
    %26 = vector.broadcast %c16_i32_7 : i32 to vector<1x256xi32>
    %27 = arith.cmpi slt, %25, %26 : vector<1x256xi32>
    %28 = arith.andi %23, %27 : vector<1x256xi1>
    %c-1_i32 = arith.constant -1 : i32
    %29 = vector.broadcast %c-1_i32 : i32 to vector<1x256xi32>
    %30 = arith.addi %19, %29 : vector<1x256xi32>
    %c0_i32_8 = arith.constant 0 : i32
    %31 = vector.broadcast %c0_i32_8 : i32 to vector<1x256xi32>
    %32 = arith.cmpi sge, %30, %31 : vector<1x256xi32>
    %c-1_i32_9 = arith.constant -1 : i32
    %33 = vector.broadcast %c-1_i32_9 : i32 to vector<1x256xi32>
    %34 = arith.addi %19, %33 : vector<1x256xi32>
    %c16_i32_10 = arith.constant 16 : i32
    %35 = vector.broadcast %c16_i32_10 : i32 to vector<1x256xi32>
    %36 = arith.cmpi slt, %34, %35 : vector<1x256xi32>
    %37 = arith.andi %32, %36 : vector<1x256xi1>
    %c1_i32_11 = arith.constant 1 : i32
    %38 = vector.broadcast %c1_i32_11 : i32 to vector<1x256xi32>
    %39 = arith.addi %19, %38 : vector<1x256xi32>
    %c0_i32_12 = arith.constant 0 : i32
    %40 = vector.broadcast %c0_i32_12 : i32 to vector<1x256xi32>
    %41 = arith.cmpi sge, %39, %40 : vector<1x256xi32>
    %c1_i32_13 = arith.constant 1 : i32
    %42 = vector.broadcast %c1_i32_13 : i32 to vector<1x256xi32>
    %43 = arith.addi %19, %42 : vector<1x256xi32>
    %c16_i32_14 = arith.constant 16 : i32
    %44 = vector.broadcast %c16_i32_14 : i32 to vector<1x256xi32>
    %45 = arith.cmpi slt, %43, %44 : vector<1x256xi32>
    %46 = arith.andi %41, %45 : vector<1x256xi1>
    %c2_i32 = arith.constant 2 : i32
    %47 = vector.broadcast %c2_i32 : i32 to vector<1x256xi32>
    %48 = arith.addi %19, %47 : vector<1x256xi32>
    %c0_i32_15 = arith.constant 0 : i32
    %49 = vector.broadcast %c0_i32_15 : i32 to vector<1x256xi32>
    %50 = arith.cmpi sge, %48, %49 : vector<1x256xi32>
    %c2_i32_16 = arith.constant 2 : i32
    %51 = vector.broadcast %c2_i32_16 : i32 to vector<1x256xi32>
    %52 = arith.addi %19, %51 : vector<1x256xi32>
    %c16_i32_17 = arith.constant 16 : i32
    %53 = vector.broadcast %c16_i32_17 : i32 to vector<1x256xi32>
    %54 = arith.cmpi slt, %52, %53 : vector<1x256xi32>
    %55 = arith.andi %50, %54 : vector<1x256xi1>
    %c0 = arith.constant 0 : index
    %c0_18 = arith.constant 0 : index
    %c0_19 = arith.constant 0 : index
    %56 = vector.load %arg1[%c0, %c0_18, %c0_19] : memref<2x10x256xf32, #tpu.memory_space<vmem>>, vector<1x10x256xf32>
    %57 = vector.shape_cast %56 : vector<1x10x256xf32> to vector<10x256xf32>
    %c0_20 = arith.constant 0 : index
    %c128 = arith.constant 128 : index
    %58 = vector.load %arg4[%c0_20, %c128] : memref<16x512xf32, #tpu.memory_space<vmem>>, vector<10x256xf32>
    tpu.vector_store %arg4[%c0_20, %c128], %57 {strides = array<i32>} : memref<16x512xf32, #tpu.memory_space<vmem>>, vector<10x256xf32>,
    %c0_21 = arith.constant 0 : index
    %c0_22 = arith.constant 0 : index
    %59 = vector.load %arg4[%c0_21, %c0_22] : memref<16x512xf32, #tpu.memory_space<vmem>>, vector<16x512xf32>
    %60 = vector.extract_strided_slice %59 {offsets = [0, 94], sizes = [16, 256], strides = [1, 1]} : vector<16x512xf32> to vector<16x256xf32>
    %cst = arith.constant 0.000000e+00 : f32
    %61 = vector.shape_cast %28 : vector<1x256xi1> to vector<1x256xi1>
    %62 = vector.broadcast %61 : vector<1x256xi1> to vector<16x256xi1>
    %63 = vector.broadcast %cst : f32 to vector<16x256xf32>
    %64 = arith.select %62, %60, %63 : vector<16x256xi1>, vector<16x256xf32>
    %c0_23 = arith.constant 0 : index
    %c0_24 = arith.constant 0 : index
    %65 = vector.load %arg5[%c0_23, %c0_24] : memref<416x512xf32, #tpu.memory_space<vmem>>, vector<16x256xf32>
    tpu.vector_store %arg5[%c0_23, %c0_24], %64 {strides = array<i32>} : memref<416x512xf32, #tpu.memory_space<vmem>>, vector<16x256xf32>,
    %66 = vector.extract_strided_slice %59 {offsets = [0, 95], sizes = [16, 256], strides = [1, 1]} : vector<16x512xf32> to vector<16x256xf32>
    %cst_25 = arith.constant 0.000000e+00 : f32
    %67 = vector.shape_cast %37 : vector<1x256xi1> to vector<1x256xi1>
    %68 = vector.broadcast %67 : vector<1x256xi1> to vector<16x256xi1>
    %69 = vector.broadcast %cst_25 : f32 to vector<16x256xf32>
    %70 = arith.select %68, %66, %69 : vector<16x256xi1>, vector<16x256xf32>
    %c16 = arith.constant 16 : index
    %c0_26 = arith.constant 0 : index
    %71 = vector.load %arg5[%c16, %c0_26] : memref<416x512xf32, #tpu.memory_space<vmem>>, vector<16x256xf32>
    tpu.vector_store %arg5[%c16, %c0_26], %70 {strides = array<i32>} : memref<416x512xf32, #tpu.memory_space<vmem>>, vector<16x256xf32>,
    %72 = vector.extract_strided_slice %59 {offsets = [0, 96], sizes = [16, 256], strides = [1, 1]} : vector<16x512xf32> to vector<16x256xf32>
    %c32 = arith.constant 32 : index
    %c0_27 = arith.constant 0 : index
    %73 = vector.load %arg5[%c32, %c0_27] : memref<416x512xf32, #tpu.memory_space<vmem>>, vector<16x256xf32>
    tpu.vector_store %arg5[%c32, %c0_27], %72 {strides = array<i32>} : memref<416x512xf32, #tpu.memory_space<vmem>>, vector<16x256xf32>,
    %74 = vector.extract_strided_slice %59 {offsets = [0, 97], sizes = [16, 256], strides = [1, 1]} : vector<16x512xf32> to vector<16x256xf32>
    %cst_28 = arith.constant 0.000000e+00 : f32
    %75 = vector.shape_cast %46 : vector<1x256xi1> to vector<1x256xi1>
    %76 = vector.broadcast %75 : vector<1x256xi1> to vector<16x256xi1>
    %77 = vector.broadcast %cst_28 : f32 to vector<16x256xf32>
    %78 = arith.select %76, %74, %77 : vector<16x256xi1>, vector<16x256xf32>
    %c48 = arith.constant 48 : index
    %c0_29 = arith.constant 0 : index
    %79 = vector.load %arg5[%c48, %c0_29] : memref<416x512xf32, #tpu.memory_space<vmem>>, vector<16x256xf32>
    tpu.vector_store %arg5[%c48, %c0_29], %78 {strides = array<i32>} : memref<416x512xf32, #tpu.memory_space<vmem>>, vector<16x256xf32>,
    %80 = vector.extract_strided_slice %59 {offsets = [0, 98], sizes = [16, 256], strides = [1, 1]} : vector<16x512xf32> to vector<16x256xf32>
    %cst_30 = arith.constant 0.000000e+00 : f32
    %81 = vector.shape_cast %55 : vector<1x256xi1> to vector<1x256xi1>
    %82 = vector.broadcast %81 : vector<1x256xi1> to vector<16x256xi1>
    %83 = vector.broadcast %cst_30 : f32 to vector<16x256xf32>
    %84 = arith.select %82, %80, %83 : vector<16x256xi1>, vector<16x256xf32>
    %c64 = arith.constant 64 : index
    %c0_31 = arith.constant 0 : index
    %85 = vector.load %arg5[%c64, %c0_31] : memref<416x512xf32, #tpu.memory_space<vmem>>, vector<16x256xf32>
    tpu.vector_store %arg5[%c64, %c0_31], %84 {strides = array<i32>} : memref<416x512xf32, #tpu.memory_space<vmem>>, vector<16x256xf32>,
    %86 = vector.extract_strided_slice %59 {offsets = [0, 110], sizes = [16, 256], strides = [1, 1]} : vector<16x512xf32> to vector<16x256xf32>
    %cst_32 = arith.constant 0.000000e+00 : f32
    %87 = vector.shape_cast %28 : vector<1x256xi1> to vector<1x256xi1>
    %88 = vector.broadcast %87 : vector<1x256xi1> to vector<16x256xi1>
    %89 = vector.broadcast %cst_32 : f32 to vector<16x256xf32>
    %90 = arith.select %88, %86, %89 : vector<16x256xi1>, vector<16x256xf32>
    %c80 = arith.constant 80 : index
    %c0_33 = arith.constant 0 : index
    %91 = vector.load %arg5[%c80, %c0_33] : memref<416x512xf32, #tpu.memory_space<vmem>>, vector<16x256xf32>
    tpu.vector_store %arg5[%c80, %c0_33], %90 {strides = array<i32>} : memref<416x512xf32, #tpu.memory_space<vmem>>, vector<16x256xf32>,
    %92 = vector.extract_strided_slice %59 {offsets = [0, 111], sizes = [16, 256], strides = [1, 1]} : vector<16x512xf32> to vector<16x256xf32>
    %cst_34 = arith.constant 0.000000e+00 : f32
    %93 = vector.shape_cast %37 : vector<1x256xi1> to vector<1x256xi1>
    %94 = vector.broadcast %93 : vector<1x256xi1> to vector<16x256xi1>
    %95 = vector.broadcast %cst_34 : f32 to vector<16x256xf32>
    %96 = arith.select %94, %92, %95 : vector<16x256xi1>, vector<16x256xf32>
    %c96 = arith.constant 96 : index
    %c0_35 = arith.constant 0 : index
    %97 = vector.load %arg5[%c96, %c0_35] : memref<416x512xf32, #tpu.memory_space<vmem>>, vector<16x256xf32>
    tpu.vector_store %arg5[%c96, %c0_35], %96 {strides = array<i32>} : memref<416x512xf32, #tpu.memory_space<vmem>>, vector<16x256xf32>,
    %98 = vector.extract_strided_slice %59 {offsets = [0, 112], sizes = [16, 256], strides = [1, 1]} : vector<16x512xf32> to vector<16x256xf32>
    %c112 = arith.constant 112 : index
    %c0_36 = arith.constant 0 : index
    %99 = vector.load %arg5[%c112, %c0_36] : memref<416x512xf32, #tpu.memory_space<vmem>>, vector<16x256xf32>
    tpu.vector_store %arg5[%c112, %c0_36], %98 {strides = array<i32>} : memref<416x512xf32, #tpu.memory_space<vmem>>, vector<16x256xf32>,
    %100 = vector.extract_strided_slice %59 {offsets = [0, 113], sizes = [16, 256], strides = [1, 1]} : vector<16x512xf32> to vector<16x256xf32>
    %cst_37 = arith.constant 0.000000e+00 : f32
    %101 = vector.shape_cast %46 : vector<1x256xi1> to vector<1x256xi1>
    %102 = vector.broadcast %101 : vector<1x256xi1> to vector<16x256xi1>
    %103 = vector.broadcast %cst_37 : f32 to vector<16x256xf32>
    %104 = arith.select %102, %100, %103 : vector<16x256xi1>, vector<16x256xf32>
    %c128_38 = arith.constant 128 : index
    %c0_39 = arith.constant 0 : index
    %105 = vector.load %arg5[%c128_38, %c0_39] : memref<416x512xf32, #tpu.memory_space<vmem>>, vector<16x256xf32>
    tpu.vector_store %arg5[%c128_38, %c0_39], %104 {strides = array<i32>} : memref<416x512xf32, #tpu.memory_space<vmem>>, vector<16x256xf32>,
    %106 = vector.extract_strided_slice %59 {offsets = [0, 114], sizes = [16, 256], strides = [1, 1]} : vector<16x512xf32> to vector<16x256xf32>
    %cst_40 = arith.constant 0.000000e+00 : f32
    %107 = vector.shape_cast %55 : vector<1x256xi1> to vector<1x256xi1>
    %108 = vector.broadcast %107 : vector<1x256xi1> to vector<16x256xi1>
    %109 = vector.broadcast %cst_40 : f32 to vector<16x256xf32>
    %110 = arith.select %108, %106, %109 : vector<16x256xi1>, vector<16x256xf32>
    %c144 = arith.constant 144 : index
    %c0_41 = arith.constant 0 : index
    %111 = vector.load %arg5[%c144, %c0_41] : memref<416x512xf32, #tpu.memory_space<vmem>>, vector<16x256xf32>
    tpu.vector_store %arg5[%c144, %c0_41], %110 {strides = array<i32>} : memref<416x512xf32, #tpu.memory_space<vmem>>, vector<16x256xf32>,
    %112 = vector.extract_strided_slice %59 {offsets = [0, 126], sizes = [16, 256], strides = [1, 1]} : vector<16x512xf32> to vector<16x256xf32>
    %cst_42 = arith.constant 0.000000e+00 : f32
    %113 = vector.shape_cast %28 : vector<1x256xi1> to vector<1x256xi1>
    %114 = vector.broadcast %113 : vector<1x256xi1> to vector<16x256xi1>
    %115 = vector.broadcast %cst_42 : f32 to vector<16x256xf32>
    %116 = arith.select %114, %112, %115 : vector<16x256xi1>, vector<16x256xf32>
    %c160 = arith.constant 160 : index
    %c0_43 = arith.constant 0 : index
    %117 = vector.load %arg5[%c160, %c0_43] : memref<416x512xf32, #tpu.memory_space<vmem>>, vector<16x256xf32>
    tpu.vector_store %arg5[%c160, %c0_43], %116 {strides = array<i32>} : memref<416x512xf32, #tpu.memory_space<vmem>>, vector<16x256xf32>,
    %118 = vector.extract_strided_slice %59 {offsets = [0, 127], sizes = [16, 256], strides = [1, 1]} : vector<16x512xf32> to vector<16x256xf32>
    %cst_44 = arith.constant 0.000000e+00 : f32
    %119 = vector.shape_cast %37 : vector<1x256xi1> to vector<1x256xi1>
    %120 = vector.broadcast %119 : vector<1x256xi1> to vector<16x256xi1>
    %121 = vector.broadcast %cst_44 : f32 to vector<16x256xf32>
    %122 = arith.select %120, %118, %121 : vector<16x256xi1>, vector<16x256xf32>
    %c176 = arith.constant 176 : index
    %c0_45 = arith.constant 0 : index
    %123 = vector.load %arg5[%c176, %c0_45] : memref<416x512xf32, #tpu.memory_space<vmem>>, vector<16x256xf32>
    tpu.vector_store %arg5[%c176, %c0_45], %122 {strides = array<i32>} : memref<416x512xf32, #tpu.memory_space<vmem>>, vector<16x256xf32>,
    %124 = vector.extract_strided_slice %59 {offsets = [0, 128], sizes = [16, 256], strides = [1, 1]} : vector<16x512xf32> to vector<16x256xf32>
    %c192 = arith.constant 192 : index
    %c0_46 = arith.constant 0 : index
    %125 = vector.load %arg5[%c192, %c0_46] : memref<416x512xf32, #tpu.memory_space<vmem>>, vector<16x256xf32>
    tpu.vector_store %arg5[%c192, %c0_46], %124 {strides = array<i32>} : memref<416x512xf32, #tpu.memory_space<vmem>>, vector<16x256xf32>,
    %126 = vector.extract_strided_slice %59 {offsets = [0, 129], sizes = [16, 256], strides = [1, 1]} : vector<16x512xf32> to vector<16x256xf32>
    %cst_47 = arith.constant 0.000000e+00 : f32
    %127 = vector.shape_cast %46 : vector<1x256xi1> to vector<1x256xi1>
    %128 = vector.broadcast %127 : vector<1x256xi1> to vector<16x256xi1>
    %129 = vector.broadcast %cst_47 : f32 to vector<16x256xf32>
    %130 = arith.select %128, %126, %129 : vector<16x256xi1>, vector<16x256xf32>
    %c208 = arith.constant 208 : index
    %c0_48 = arith.constant 0 : index
    %131 = vector.load %arg5[%c208, %c0_48] : memref<416x512xf32, #tpu.memory_space<vmem>>, vector<16x256xf32>
    tpu.vector_store %arg5[%c208, %c0_48], %130 {strides = array<i32>} : memref<416x512xf32, #tpu.memory_space<vmem>>, vector<16x256xf32>,
    %132 = vector.extract_strided_slice %59 {offsets = [0, 130], sizes = [16, 256], strides = [1, 1]} : vector<16x512xf32> to vector<16x256xf32>
    %cst_49 = arith.constant 0.000000e+00 : f32
    %133 = vector.shape_cast %55 : vector<1x256xi1> to vector<1x256xi1>
    %134 = vector.broadcast %133 : vector<1x256xi1> to vector<16x256xi1>
    %135 = vector.broadcast %cst_49 : f32 to vector<16x256xf32>
    %136 = arith.select %134, %132, %135 : vector<16x256xi1>, vector<16x256xf32>
    %c224 = arith.constant 224 : index
    %c0_50 = arith.constant 0 : index
    %137 = vector.load %arg5[%c224, %c0_50] : memref<416x512xf32, #tpu.memory_space<vmem>>, vector<16x256xf32>
    tpu.vector_store %arg5[%c224, %c0_50], %136 {strides = array<i32>} : memref<416x512xf32, #tpu.memory_space<vmem>>, vector<16x256xf32>,
    %138 = vector.extract_strided_slice %59 {offsets = [0, 142], sizes = [16, 256], strides = [1, 1]} : vector<16x512xf32> to vector<16x256xf32>
    %cst_51 = arith.constant 0.000000e+00 : f32
    %139 = vector.shape_cast %28 : vector<1x256xi1> to vector<1x256xi1>
    %140 = vector.broadcast %139 : vector<1x256xi1> to vector<16x256xi1>
    %141 = vector.broadcast %cst_51 : f32 to vector<16x256xf32>
    %142 = arith.select %140, %138, %141 : vector<16x256xi1>, vector<16x256xf32>
    %c240 = arith.constant 240 : index
    %c0_52 = arith.constant 0 : index
    %143 = vector.load %arg5[%c240, %c0_52] : memref<416x512xf32, #tpu.memory_space<vmem>>, vector<16x256xf32>
    tpu.vector_store %arg5[%c240, %c0_52], %142 {strides = array<i32>} : memref<416x512xf32, #tpu.memory_space<vmem>>, vector<16x256xf32>,
    %144 = vector.extract_strided_slice %59 {offsets = [0, 143], sizes = [16, 256], strides = [1, 1]} : vector<16x512xf32> to vector<16x256xf32>
    %cst_53 = arith.constant 0.000000e+00 : f32
    %145 = vector.shape_cast %37 : vector<1x256xi1> to vector<1x256xi1>
    %146 = vector.broadcast %145 : vector<1x256xi1> to vector<16x256xi1>
    %147 = vector.broadcast %cst_53 : f32 to vector<16x256xf32>
    %148 = arith.select %146, %144, %147 : vector<16x256xi1>, vector<16x256xf32>
    %c256 = arith.constant 256 : index
    %c0_54 = arith.constant 0 : index
    %149 = vector.load %arg5[%c256, %c0_54] : memref<416x512xf32, #tpu.memory_space<vmem>>, vector<16x256xf32>
    tpu.vector_store %arg5[%c256, %c0_54], %148 {strides = array<i32>} : memref<416x512xf32, #tpu.memory_space<vmem>>, vector<16x256xf32>,
    %150 = vector.extract_strided_slice %59 {offsets = [0, 144], sizes = [16, 256], strides = [1, 1]} : vector<16x512xf32> to vector<16x256xf32>
    %c272 = arith.constant 272 : index
    %c0_55 = arith.constant 0 : index
    %151 = vector.load %arg5[%c272, %c0_55] : memref<416x512xf32, #tpu.memory_space<vmem>>, vector<16x256xf32>
    tpu.vector_store %arg5[%c272, %c0_55], %150 {strides = array<i32>} : memref<416x512xf32, #tpu.memory_space<vmem>>, vector<16x256xf32>,
    %152 = vector.extract_strided_slice %59 {offsets = [0, 145], sizes = [16, 256], strides = [1, 1]} : vector<16x512xf32> to vector<16x256xf32>
    %cst_56 = arith.constant 0.000000e+00 : f32
    %153 = vector.shape_cast %46 : vector<1x256xi1> to vector<1x256xi1>
    %154 = vector.broadcast %153 : vector<1x256xi1> to vector<16x256xi1>
    %155 = vector.broadcast %cst_56 : f32 to vector<16x256xf32>
    %156 = arith.select %154, %152, %155 : vector<16x256xi1>, vector<16x256xf32>
    %c288 = arith.constant 288 : index
    %c0_57 = arith.constant 0 : index
    %157 = vector.load %arg5[%c288, %c0_57] : memref<416x512xf32, #tpu.memory_space<vmem>>, vector<16x256xf32>
    tpu.vector_store %arg5[%c288, %c0_57], %156 {strides = array<i32>} : memref<416x512xf32, #tpu.memory_space<vmem>>, vector<16x256xf32>,
    %158 = vector.extract_strided_slice %59 {offsets = [0, 146], sizes = [16, 256], strides = [1, 1]} : vector<16x512xf32> to vector<16x256xf32>
    %cst_58 = arith.constant 0.000000e+00 : f32
    %159 = vector.shape_cast %55 : vector<1x256xi1> to vector<1x256xi1>
    %160 = vector.broadcast %159 : vector<1x256xi1> to vector<16x256xi1>
    %161 = vector.broadcast %cst_58 : f32 to vector<16x256xf32>
    %162 = arith.select %160, %158, %161 : vector<16x256xi1>, vector<16x256xf32>
    %c304 = arith.constant 304 : index
    %c0_59 = arith.constant 0 : index
    %163 = vector.load %arg5[%c304, %c0_59] : memref<416x512xf32, #tpu.memory_space<vmem>>, vector<16x256xf32>
    tpu.vector_store %arg5[%c304, %c0_59], %162 {strides = array<i32>} : memref<416x512xf32, #tpu.memory_space<vmem>>, vector<16x256xf32>,
    %164 = vector.extract_strided_slice %59 {offsets = [0, 158], sizes = [16, 256], strides = [1, 1]} : vector<16x512xf32> to vector<16x256xf32>
    %cst_60 = arith.constant 0.000000e+00 : f32
    %165 = vector.shape_cast %28 : vector<1x256xi1> to vector<1x256xi1>
    %166 = vector.broadcast %165 : vector<1x256xi1> to vector<16x256xi1>
    %167 = vector.broadcast %cst_60 : f32 to vector<16x256xf32>
    %168 = arith.select %166, %164, %167 : vector<16x256xi1>, vector<16x256xf32>
    %c320 = arith.constant 320 : index
    %c0_61 = arith.constant 0 : index
    %169 = vector.load %arg5[%c320, %c0_61] : memref<416x512xf32, #tpu.memory_space<vmem>>, vector<16x256xf32>
    tpu.vector_store %arg5[%c320, %c0_61], %168 {strides = array<i32>} : memref<416x512xf32, #tpu.memory_space<vmem>>, vector<16x256xf32>,
    %170 = vector.extract_strided_slice %59 {offsets = [0, 159], sizes = [16, 256], strides = [1, 1]} : vector<16x512xf32> to vector<16x256xf32>
    %cst_62 = arith.constant 0.000000e+00 : f32
    %171 = vector.shape_cast %37 : vector<1x256xi1> to vector<1x256xi1>
    %172 = vector.broadcast %171 : vector<1x256xi1> to vector<16x256xi1>
    %173 = vector.broadcast %cst_62 : f32 to vector<16x256xf32>
    %174 = arith.select %172, %170, %173 : vector<16x256xi1>, vector<16x256xf32>
    %c336 = arith.constant 336 : index
    %c0_63 = arith.constant 0 : index
    %175 = vector.load %arg5[%c336, %c0_63] : memref<416x512xf32, #tpu.memory_space<vmem>>, vector<16x256xf32>
    tpu.vector_store %arg5[%c336, %c0_63], %174 {strides = array<i32>} : memref<416x512xf32, #tpu.memory_space<vmem>>, vector<16x256xf32>,
    %176 = vector.extract_strided_slice %59 {offsets = [0, 160], sizes = [16, 256], strides = [1, 1]} : vector<16x512xf32> to vector<16x256xf32>
    %c352 = arith.constant 352 : index
    %c0_64 = arith.constant 0 : index
    %177 = vector.load %arg5[%c352, %c0_64] : memref<416x512xf32, #tpu.memory_space<vmem>>, vector<16x256xf32>
    tpu.vector_store %arg5[%c352, %c0_64], %176 {strides = array<i32>} : memref<416x512xf32, #tpu.memory_space<vmem>>, vector<16x256xf32>,
    %178 = vector.extract_strided_slice %59 {offsets = [0, 161], sizes = [16, 256], strides = [1, 1]} : vector<16x512xf32> to vector<16x256xf32>
    %cst_65 = arith.constant 0.000000e+00 : f32
    %179 = vector.shape_cast %46 : vector<1x256xi1> to vector<1x256xi1>
    %180 = vector.broadcast %179 : vector<1x256xi1> to vector<16x256xi1>
    %181 = vector.broadcast %cst_65 : f32 to vector<16x256xf32>
    %182 = arith.select %180, %178, %181 : vector<16x256xi1>, vector<16x256xf32>
    %c368 = arith.constant 368 : index
    %c0_66 = arith.constant 0 : index
    %183 = vector.load %arg5[%c368, %c0_66] : memref<416x512xf32, #tpu.memory_space<vmem>>, vector<16x256xf32>
    tpu.vector_store %arg5[%c368, %c0_66], %182 {strides = array<i32>} : memref<416x512xf32, #tpu.memory_space<vmem>>, vector<16x256xf32>,
    %184 = vector.extract_strided_slice %59 {offsets = [0, 162], sizes = [16, 256], strides = [1, 1]} : vector<16x512xf32> to vector<16x256xf32>
    %cst_67 = arith.constant 0.000000e+00 : f32
    %185 = vector.shape_cast %55 : vector<1x256xi1> to vector<1x256xi1>
    %186 = vector.broadcast %185 : vector<1x256xi1> to vector<16x256xi1>
    %187 = vector.broadcast %cst_67 : f32 to vector<16x256xf32>
    %188 = arith.select %186, %184, %187 : vector<16x256xi1>, vector<16x256xf32>
    %c384 = arith.constant 384 : index
    %c0_68 = arith.constant 0 : index
    %189 = vector.load %arg5[%c384, %c0_68] : memref<416x512xf32, #tpu.memory_space<vmem>>, vector<16x256xf32>
    tpu.vector_store %arg5[%c384, %c0_68], %188 {strides = array<i32>} : memref<416x512xf32, #tpu.memory_space<vmem>>, vector<16x256xf32>,
    %c1 = arith.constant 1 : index
    %c0_69 = arith.constant 0 : index
    %c0_70 = arith.constant 0 : index
    %190 = vector.load %arg1[%c1, %c0_69, %c0_70] : memref<2x10x256xf32, #tpu.memory_space<vmem>>, vector<1x10x256xf32>
    %191 = vector.shape_cast %190 : vector<1x10x256xf32> to vector<10x256xf32>
    %c0_71 = arith.constant 0 : index
    %c128_72 = arith.constant 128 : index
    %192 = vector.load %arg4[%c0_71, %c128_72] : memref<16x512xf32, #tpu.memory_space<vmem>>, vector<10x256xf32>
    tpu.vector_store %arg4[%c0_71, %c128_72], %191 {strides = array<i32>} : memref<16x512xf32, #tpu.memory_space<vmem>>, vector<10x256xf32>,
    %c0_73 = arith.constant 0 : index
    %c0_74 = arith.constant 0 : index
    %193 = vector.load %arg4[%c0_73, %c0_74] : memref<16x512xf32, #tpu.memory_space<vmem>>, vector<16x512xf32>
    %194 = vector.extract_strided_slice %193 {offsets = [0, 94], sizes = [16, 256], strides = [1, 1]} : vector<16x512xf32> to vector<16x256xf32>
    %cst_75 = arith.constant 0.000000e+00 : f32
    %195 = vector.shape_cast %28 : vector<1x256xi1> to vector<1x256xi1>
    %196 = vector.broadcast %195 : vector<1x256xi1> to vector<16x256xi1>
    %197 = vector.broadcast %cst_75 : f32 to vector<16x256xf32>
    %198 = arith.select %196, %194, %197 : vector<16x256xi1>, vector<16x256xf32>
    %c0_76 = arith.constant 0 : index
    %c256_77 = arith.constant 256 : index
    %199 = vector.load %arg5[%c0_76, %c256_77] : memref<416x512xf32, #tpu.memory_space<vmem>>, vector<16x256xf32>
    tpu.vector_store %arg5[%c0_76, %c256_77], %198 {strides = array<i32>} : memref<416x512xf32, #tpu.memory_space<vmem>>, vector<16x256xf32>,
    %200 = vector.extract_strided_slice %193 {offsets = [0, 95], sizes = [16, 256], strides = [1, 1]} : vector<16x512xf32> to vector<16x256xf32>
    %cst_78 = arith.constant 0.000000e+00 : f32
    %201 = vector.shape_cast %37 : vector<1x256xi1> to vector<1x256xi1>
    %202 = vector.broadcast %201 : vector<1x256xi1> to vector<16x256xi1>
    %203 = vector.broadcast %cst_78 : f32 to vector<16x256xf32>
    %204 = arith.select %202, %200, %203 : vector<16x256xi1>, vector<16x256xf32>
    %c16_79 = arith.constant 16 : index
    %c256_80 = arith.constant 256 : index
    %205 = vector.load %arg5[%c16_79, %c256_80] : memref<416x512xf32, #tpu.memory_space<vmem>>, vector<16x256xf32>
    tpu.vector_store %arg5[%c16_79, %c256_80], %204 {strides = array<i32>} : memref<416x512xf32, #tpu.memory_space<vmem>>, vector<16x256xf32>,
    %206 = vector.extract_strided_slice %193 {offsets = [0, 96], sizes = [16, 256], strides = [1, 1]} : vector<16x512xf32> to vector<16x256xf32>
    %c32_81 = arith.constant 32 : index
    %c256_82 = arith.constant 256 : index
    %207 = vector.load %arg5[%c32_81, %c256_82] : memref<416x512xf32, #tpu.memory_space<vmem>>, vector<16x256xf32>
    tpu.vector_store %arg5[%c32_81, %c256_82], %206 {strides = array<i32>} : memref<416x512xf32, #tpu.memory_space<vmem>>, vector<16x256xf32>,
    %208 = vector.extract_strided_slice %193 {offsets = [0, 97], sizes = [16, 256], strides = [1, 1]} : vector<16x512xf32> to vector<16x256xf32>
    %cst_83 = arith.constant 0.000000e+00 : f32
    %209 = vector.shape_cast %46 : vector<1x256xi1> to vector<1x256xi1>
    %210 = vector.broadcast %209 : vector<1x256xi1> to vector<16x256xi1>
    %211 = vector.broadcast %cst_83 : f32 to vector<16x256xf32>
    %212 = arith.select %210, %208, %211 : vector<16x256xi1>, vector<16x256xf32>
    %c48_84 = arith.constant 48 : index
    %c256_85 = arith.constant 256 : index
    %213 = vector.load %arg5[%c48_84, %c256_85] : memref<416x512xf32, #tpu.memory_space<vmem>>, vector<16x256xf32>
    tpu.vector_store %arg5[%c48_84, %c256_85], %212 {strides = array<i32>} : memref<416x512xf32, #tpu.memory_space<vmem>>, vector<16x256xf32>,
    %214 = vector.extract_strided_slice %193 {offsets = [0, 98], sizes = [16, 256], strides = [1, 1]} : vector<16x512xf32> to vector<16x256xf32>
    %cst_86 = arith.constant 0.000000e+00 : f32
    %215 = vector.shape_cast %55 : vector<1x256xi1> to vector<1x256xi1>
    %216 = vector.broadcast %215 : vector<1x256xi1> to vector<16x256xi1>
    %217 = vector.broadcast %cst_86 : f32 to vector<16x256xf32>
    %218 = arith.select %216, %214, %217 : vector<16x256xi1>, vector<16x256xf32>
    %c64_87 = arith.constant 64 : index
    %c256_88 = arith.constant 256 : index
    %219 = vector.load %arg5[%c64_87, %c256_88] : memref<416x512xf32, #tpu.memory_space<vmem>>, vector<16x256xf32>
    tpu.vector_store %arg5[%c64_87, %c256_88], %218 {strides = array<i32>} : memref<416x512xf32, #tpu.memory_space<vmem>>, vector<16x256xf32>,
    %220 = vector.extract_strided_slice %193 {offsets = [0, 110], sizes = [16, 256], strides = [1, 1]} : vector<16x512xf32> to vector<16x256xf32>
    %cst_89 = arith.constant 0.000000e+00 : f32
    %221 = vector.shape_cast %28 : vector<1x256xi1> to vector<1x256xi1>
    %222 = vector.broadcast %221 : vector<1x256xi1> to vector<16x256xi1>
    %223 = vector.broadcast %cst_89 : f32 to vector<16x256xf32>
    %224 = arith.select %222, %220, %223 : vector<16x256xi1>, vector<16x256xf32>
    %c80_90 = arith.constant 80 : index
    %c256_91 = arith.constant 256 : index
    %225 = vector.load %arg5[%c80_90, %c256_91] : memref<416x512xf32, #tpu.memory_space<vmem>>, vector<16x256xf32>
    tpu.vector_store %arg5[%c80_90, %c256_91], %224 {strides = array<i32>} : memref<416x512xf32, #tpu.memory_space<vmem>>, vector<16x256xf32>,
    %226 = vector.extract_strided_slice %193 {offsets = [0, 111], sizes = [16, 256], strides = [1, 1]} : vector<16x512xf32> to vector<16x256xf32>
    %cst_92 = arith.constant 0.000000e+00 : f32
    %227 = vector.shape_cast %37 : vector<1x256xi1> to vector<1x256xi1>
    %228 = vector.broadcast %227 : vector<1x256xi1> to vector<16x256xi1>
    %229 = vector.broadcast %cst_92 : f32 to vector<16x256xf32>
    %230 = arith.select %228, %226, %229 : vector<16x256xi1>, vector<16x256xf32>
    %c96_93 = arith.constant 96 : index
    %c256_94 = arith.constant 256 : index
    %231 = vector.load %arg5[%c96_93, %c256_94] : memref<416x512xf32, #tpu.memory_space<vmem>>, vector<16x256xf32>
    tpu.vector_store %arg5[%c96_93, %c256_94], %230 {strides = array<i32>} : memref<416x512xf32, #tpu.memory_space<vmem>>, vector<16x256xf32>,
    %232 = vector.extract_strided_slice %193 {offsets = [0, 112], sizes = [16, 256], strides = [1, 1]} : vector<16x512xf32> to vector<16x256xf32>
    %c112_95 = arith.constant 112 : index
    %c256_96 = arith.constant 256 : index
    %233 = vector.load %arg5[%c112_95, %c256_96] : memref<416x512xf32, #tpu.memory_space<vmem>>, vector<16x256xf32>
    tpu.vector_store %arg5[%c112_95, %c256_96], %232 {strides = array<i32>} : memref<416x512xf32, #tpu.memory_space<vmem>>, vector<16x256xf32>,
    %234 = vector.extract_strided_slice %193 {offsets = [0, 113], sizes = [16, 256], strides = [1, 1]} : vector<16x512xf32> to vector<16x256xf32>
    %cst_97 = arith.constant 0.000000e+00 : f32
    %235 = vector.shape_cast %46 : vector<1x256xi1> to vector<1x256xi1>
    %236 = vector.broadcast %235 : vector<1x256xi1> to vector<16x256xi1>
    %237 = vector.broadcast %cst_97 : f32 to vector<16x256xf32>
    %238 = arith.select %236, %234, %237 : vector<16x256xi1>, vector<16x256xf32>
    %c128_98 = arith.constant 128 : index
    %c256_99 = arith.constant 256 : index
    %239 = vector.load %arg5[%c128_98, %c256_99] : memref<416x512xf32, #tpu.memory_space<vmem>>, vector<16x256xf32>
    tpu.vector_store %arg5[%c128_98, %c256_99], %238 {strides = array<i32>} : memref<416x512xf32, #tpu.memory_space<vmem>>, vector<16x256xf32>,
    %240 = vector.extract_strided_slice %193 {offsets = [0, 114], sizes = [16, 256], strides = [1, 1]} : vector<16x512xf32> to vector<16x256xf32>
    %cst_100 = arith.constant 0.000000e+00 : f32
    %241 = vector.shape_cast %55 : vector<1x256xi1> to vector<1x256xi1>
    %242 = vector.broadcast %241 : vector<1x256xi1> to vector<16x256xi1>
    %243 = vector.broadcast %cst_100 : f32 to vector<16x256xf32>
    %244 = arith.select %242, %240, %243 : vector<16x256xi1>, vector<16x256xf32>
    %c144_101 = arith.constant 144 : index
    %c256_102 = arith.constant 256 : index
    %245 = vector.load %arg5[%c144_101, %c256_102] : memref<416x512xf32, #tpu.memory_space<vmem>>, vector<16x256xf32>
    tpu.vector_store %arg5[%c144_101, %c256_102], %244 {strides = array<i32>} : memref<416x512xf32, #tpu.memory_space<vmem>>, vector<16x256xf32>,
    %246 = vector.extract_strided_slice %193 {offsets = [0, 126], sizes = [16, 256], strides = [1, 1]} : vector<16x512xf32> to vector<16x256xf32>
    %cst_103 = arith.constant 0.000000e+00 : f32
    %247 = vector.shape_cast %28 : vector<1x256xi1> to vector<1x256xi1>
    %248 = vector.broadcast %247 : vector<1x256xi1> to vector<16x256xi1>
    %249 = vector.broadcast %cst_103 : f32 to vector<16x256xf32>
    %250 = arith.select %248, %246, %249 : vector<16x256xi1>, vector<16x256xf32>
    %c160_104 = arith.constant 160 : index
    %c256_105 = arith.constant 256 : index
    %251 = vector.load %arg5[%c160_104, %c256_105] : memref<416x512xf32, #tpu.memory_space<vmem>>, vector<16x256xf32>
    tpu.vector_store %arg5[%c160_104, %c256_105], %250 {strides = array<i32>} : memref<416x512xf32, #tpu.memory_space<vmem>>, vector<16x256xf32>,
    %252 = vector.extract_strided_slice %193 {offsets = [0, 127], sizes = [16, 256], strides = [1, 1]} : vector<16x512xf32> to vector<16x256xf32>
    %cst_106 = arith.constant 0.000000e+00 : f32
    %253 = vector.shape_cast %37 : vector<1x256xi1> to vector<1x256xi1>
    %254 = vector.broadcast %253 : vector<1x256xi1> to vector<16x256xi1>
    %255 = vector.broadcast %cst_106 : f32 to vector<16x256xf32>
    %256 = arith.select %254, %252, %255 : vector<16x256xi1>, vector<16x256xf32>
    %c176_107 = arith.constant 176 : index
    %c256_108 = arith.constant 256 : index
    %257 = vector.load %arg5[%c176_107, %c256_108] : memref<416x512xf32, #tpu.memory_space<vmem>>, vector<16x256xf32>
    tpu.vector_store %arg5[%c176_107, %c256_108], %256 {strides = array<i32>} : memref<416x512xf32, #tpu.memory_space<vmem>>, vector<16x256xf32>,
    %258 = vector.extract_strided_slice %193 {offsets = [0, 128], sizes = [16, 256], strides = [1, 1]} : vector<16x512xf32> to vector<16x256xf32>
    %c192_109 = arith.constant 192 : index
    %c256_110 = arith.constant 256 : index
    %259 = vector.load %arg5[%c192_109, %c256_110] : memref<416x512xf32, #tpu.memory_space<vmem>>, vector<16x256xf32>
    tpu.vector_store %arg5[%c192_109, %c256_110], %258 {strides = array<i32>} : memref<416x512xf32, #tpu.memory_space<vmem>>, vector<16x256xf32>,
    %260 = vector.extract_strided_slice %193 {offsets = [0, 129], sizes = [16, 256], strides = [1, 1]} : vector<16x512xf32> to vector<16x256xf32>
    %cst_111 = arith.constant 0.000000e+00 : f32
    %261 = vector.shape_cast %46 : vector<1x256xi1> to vector<1x256xi1>
    %262 = vector.broadcast %261 : vector<1x256xi1> to vector<16x256xi1>
    %263 = vector.broadcast %cst_111 : f32 to vector<16x256xf32>
    %264 = arith.select %262, %260, %263 : vector<16x256xi1>, vector<16x256xf32>
    %c208_112 = arith.constant 208 : index
    %c256_113 = arith.constant 256 : index
    %265 = vector.load %arg5[%c208_112, %c256_113] : memref<416x512xf32, #tpu.memory_space<vmem>>, vector<16x256xf32>
    tpu.vector_store %arg5[%c208_112, %c256_113], %264 {strides = array<i32>} : memref<416x512xf32, #tpu.memory_space<vmem>>, vector<16x256xf32>,
    %266 = vector.extract_strided_slice %193 {offsets = [0, 130], sizes = [16, 256], strides = [1, 1]} : vector<16x512xf32> to vector<16x256xf32>
    %cst_114 = arith.constant 0.000000e+00 : f32
    %267 = vector.shape_cast %55 : vector<1x256xi1> to vector<1x256xi1>
    %268 = vector.broadcast %267 : vector<1x256xi1> to vector<16x256xi1>
    %269 = vector.broadcast %cst_114 : f32 to vector<16x256xf32>
    %270 = arith.select %268, %266, %269 : vector<16x256xi1>, vector<16x256xf32>
    %c224_115 = arith.constant 224 : index
    %c256_116 = arith.constant 256 : index
    %271 = vector.load %arg5[%c224_115, %c256_116] : memref<416x512xf32, #tpu.memory_space<vmem>>, vector<16x256xf32>
    tpu.vector_store %arg5[%c224_115, %c256_116], %270 {strides = array<i32>} : memref<416x512xf32, #tpu.memory_space<vmem>>, vector<16x256xf32>,
    %272 = vector.extract_strided_slice %193 {offsets = [0, 142], sizes = [16, 256], strides = [1, 1]} : vector<16x512xf32> to vector<16x256xf32>
    %cst_117 = arith.constant 0.000000e+00 : f32
    %273 = vector.shape_cast %28 : vector<1x256xi1> to vector<1x256xi1>
    %274 = vector.broadcast %273 : vector<1x256xi1> to vector<16x256xi1>
    %275 = vector.broadcast %cst_117 : f32 to vector<16x256xf32>
    %276 = arith.select %274, %272, %275 : vector<16x256xi1>, vector<16x256xf32>
    %c240_118 = arith.constant 240 : index
    %c256_119 = arith.constant 256 : index
    %277 = vector.load %arg5[%c240_118, %c256_119] : memref<416x512xf32, #tpu.memory_space<vmem>>, vector<16x256xf32>
    tpu.vector_store %arg5[%c240_118, %c256_119], %276 {strides = array<i32>} : memref<416x512xf32, #tpu.memory_space<vmem>>, vector<16x256xf32>,
    %278 = vector.extract_strided_slice %193 {offsets = [0, 143], sizes = [16, 256], strides = [1, 1]} : vector<16x512xf32> to vector<16x256xf32>
    %cst_120 = arith.constant 0.000000e+00 : f32
    %279 = vector.shape_cast %37 : vector<1x256xi1> to vector<1x256xi1>
    %280 = vector.broadcast %279 : vector<1x256xi1> to vector<16x256xi1>
    %281 = vector.broadcast %cst_120 : f32 to vector<16x256xf32>
    %282 = arith.select %280, %278, %281 : vector<16x256xi1>, vector<16x256xf32>
    %c256_121 = arith.constant 256 : index
    %c256_122 = arith.constant 256 : index
    %283 = vector.load %arg5[%c256_121, %c256_122] : memref<416x512xf32, #tpu.memory_space<vmem>>, vector<16x256xf32>
    tpu.vector_store %arg5[%c256_121, %c256_122], %282 {strides = array<i32>} : memref<416x512xf32, #tpu.memory_space<vmem>>, vector<16x256xf32>,
    %284 = vector.extract_strided_slice %193 {offsets = [0, 144], sizes = [16, 256], strides = [1, 1]} : vector<16x512xf32> to vector<16x256xf32>
    %c272_123 = arith.constant 272 : index
    %c256_124 = arith.constant 256 : index
    %285 = vector.load %arg5[%c272_123, %c256_124] : memref<416x512xf32, #tpu.memory_space<vmem>>, vector<16x256xf32>
    tpu.vector_store %arg5[%c272_123, %c256_124], %284 {strides = array<i32>} : memref<416x512xf32, #tpu.memory_space<vmem>>, vector<16x256xf32>,
    %286 = vector.extract_strided_slice %193 {offsets = [0, 145], sizes = [16, 256], strides = [1, 1]} : vector<16x512xf32> to vector<16x256xf32>
    %cst_125 = arith.constant 0.000000e+00 : f32
    %287 = vector.shape_cast %46 : vector<1x256xi1> to vector<1x256xi1>
    %288 = vector.broadcast %287 : vector<1x256xi1> to vector<16x256xi1>
    %289 = vector.broadcast %cst_125 : f32 to vector<16x256xf32>
    %290 = arith.select %288, %286, %289 : vector<16x256xi1>, vector<16x256xf32>
    %c288_126 = arith.constant 288 : index
    %c256_127 = arith.constant 256 : index
    %291 = vector.load %arg5[%c288_126, %c256_127] : memref<416x512xf32, #tpu.memory_space<vmem>>, vector<16x256xf32>
    tpu.vector_store %arg5[%c288_126, %c256_127], %290 {strides = array<i32>} : memref<416x512xf32, #tpu.memory_space<vmem>>, vector<16x256xf32>,
    %292 = vector.extract_strided_slice %193 {offsets = [0, 146], sizes = [16, 256], strides = [1, 1]} : vector<16x512xf32> to vector<16x256xf32>
    %cst_128 = arith.constant 0.000000e+00 : f32
    %293 = vector.shape_cast %55 : vector<1x256xi1> to vector<1x256xi1>
    %294 = vector.broadcast %293 : vector<1x256xi1> to vector<16x256xi1>
    %295 = vector.broadcast %cst_128 : f32 to vector<16x256xf32>
    %296 = arith.select %294, %292, %295 : vector<16x256xi1>, vector<16x256xf32>
    %c304_129 = arith.constant 304 : index
    %c256_130 = arith.constant 256 : index
    %297 = vector.load %arg5[%c304_129, %c256_130] : memref<416x512xf32, #tpu.memory_space<vmem>>, vector<16x256xf32>
    tpu.vector_store %arg5[%c304_129, %c256_130], %296 {strides = array<i32>} : memref<416x512xf32, #tpu.memory_space<vmem>>, vector<16x256xf32>,
    %298 = vector.extract_strided_slice %193 {offsets = [0, 158], sizes = [16, 256], strides = [1, 1]} : vector<16x512xf32> to vector<16x256xf32>
    %cst_131 = arith.constant 0.000000e+00 : f32
    %299 = vector.shape_cast %28 : vector<1x256xi1> to vector<1x256xi1>
    %300 = vector.broadcast %299 : vector<1x256xi1> to vector<16x256xi1>
    %301 = vector.broadcast %cst_131 : f32 to vector<16x256xf32>
    %302 = arith.select %300, %298, %301 : vector<16x256xi1>, vector<16x256xf32>
    %c320_132 = arith.constant 320 : index
    %c256_133 = arith.constant 256 : index
    %303 = vector.load %arg5[%c320_132, %c256_133] : memref<416x512xf32, #tpu.memory_space<vmem>>, vector<16x256xf32>
    tpu.vector_store %arg5[%c320_132, %c256_133], %302 {strides = array<i32>} : memref<416x512xf32, #tpu.memory_space<vmem>>, vector<16x256xf32>,
    %304 = vector.extract_strided_slice %193 {offsets = [0, 159], sizes = [16, 256], strides = [1, 1]} : vector<16x512xf32> to vector<16x256xf32>
    %cst_134 = arith.constant 0.000000e+00 : f32
    %305 = vector.shape_cast %37 : vector<1x256xi1> to vector<1x256xi1>
    %306 = vector.broadcast %305 : vector<1x256xi1> to vector<16x256xi1>
    %307 = vector.broadcast %cst_134 : f32 to vector<16x256xf32>
    %308 = arith.select %306, %304, %307 : vector<16x256xi1>, vector<16x256xf32>
    %c336_135 = arith.constant 336 : index
    %c256_136 = arith.constant 256 : index
    %309 = vector.load %arg5[%c336_135, %c256_136] : memref<416x512xf32, #tpu.memory_space<vmem>>, vector<16x256xf32>
    tpu.vector_store %arg5[%c336_135, %c256_136], %308 {strides = array<i32>} : memref<416x512xf32, #tpu.memory_space<vmem>>, vector<16x256xf32>,
    %310 = vector.extract_strided_slice %193 {offsets = [0, 160], sizes = [16, 256], strides = [1, 1]} : vector<16x512xf32> to vector<16x256xf32>
    %c352_137 = arith.constant 352 : index
    %c256_138 = arith.constant 256 : index
    %311 = vector.load %arg5[%c352_137, %c256_138] : memref<416x512xf32, #tpu.memory_space<vmem>>, vector<16x256xf32>
    tpu.vector_store %arg5[%c352_137, %c256_138], %310 {strides = array<i32>} : memref<416x512xf32, #tpu.memory_space<vmem>>, vector<16x256xf32>,
    %312 = vector.extract_strided_slice %193 {offsets = [0, 161], sizes = [16, 256], strides = [1, 1]} : vector<16x512xf32> to vector<16x256xf32>
    %cst_139 = arith.constant 0.000000e+00 : f32
    %313 = vector.shape_cast %46 : vector<1x256xi1> to vector<1x256xi1>
    %314 = vector.broadcast %313 : vector<1x256xi1> to vector<16x256xi1>
    %315 = vector.broadcast %cst_139 : f32 to vector<16x256xf32>
    %316 = arith.select %314, %312, %315 : vector<16x256xi1>, vector<16x256xf32>
    %c368_140 = arith.constant 368 : index
    %c256_141 = arith.constant 256 : index
    %317 = vector.load %arg5[%c368_140, %c256_141] : memref<416x512xf32, #tpu.memory_space<vmem>>, vector<16x256xf32>
    tpu.vector_store %arg5[%c368_140, %c256_141], %316 {strides = array<i32>} : memref<416x512xf32, #tpu.memory_space<vmem>>, vector<16x256xf32>,
    %318 = vector.extract_strided_slice %193 {offsets = [0, 162], sizes = [16, 256], strides = [1, 1]} : vector<16x512xf32> to vector<16x256xf32>
    %cst_142 = arith.constant 0.000000e+00 : f32
    %319 = vector.shape_cast %55 : vector<1x256xi1> to vector<1x256xi1>
    %320 = vector.broadcast %319 : vector<1x256xi1> to vector<16x256xi1>
    %321 = vector.broadcast %cst_142 : f32 to vector<16x256xf32>
    %322 = arith.select %320, %318, %321 : vector<16x256xi1>, vector<16x256xf32>
    %c384_143 = arith.constant 384 : index
    %c256_144 = arith.constant 256 : index
    %323 = vector.load %arg5[%c384_143, %c256_144] : memref<416x512xf32, #tpu.memory_space<vmem>>, vector<16x256xf32>
    tpu.vector_store %arg5[%c384_143, %c256_144], %322 {strides = array<i32>} : memref<416x512xf32, #tpu.memory_space<vmem>>, vector<16x256xf32>,
    %c0_145 = arith.constant 0 : index
    %c0_146 = arith.constant 0 : index
    %324 = vector.load %arg2[%c0_145, %c0_146] : memref<10x416xf32, #tpu.memory_space<vmem>>, vector<10x416xf32>
    %c0_147 = arith.constant 0 : index
    %c0_148 = arith.constant 0 : index
    %325 = vector.load %arg5[%c0_147, %c0_148] : memref<416x512xf32, #tpu.memory_space<vmem>>, vector<416x512xf32>
    %cst_149 = arith.constant dense<0.000000e+00> : vector<10x512xf32>
    %326 = tpu.matmul %324, %325, %cst_149 {dimension_numbers = #tpu.dot_dimension_numbers<[1], [0], [0], [1], [0, 0, 1, 1], [], []>} : vector<10x416xf32>, vector<416x512xf32>, vector<10x512xf32> -> vector<10x512xf32>
    %327 = vector.extract_strided_slice %326 {offsets = [0, 0], sizes = [10, 256], strides = [1, 1]} : vector<10x512xf32> to vector<10x256xf32>
    %c0_150 = arith.constant 0 : index
    %c0_151 = arith.constant 0 : index
    %c0_152 = arith.constant 0 : index
    %328 = vector.load %arg1[%c0_150, %c0_151, %c0_152] : memref<2x10x256xf32, #tpu.memory_space<vmem>>, vector<1x10x256xf32>
    %329 = vector.shape_cast %328 : vector<1x10x256xf32> to vector<10x256xf32>
    %330 = arith.addf %327, %329 : vector<10x256xf32>
    %c0_153 = arith.constant 0 : index
    %c0_154 = arith.constant 0 : index
    %c0_155 = arith.constant 0 : index
    %331 = vector.load %arg3[%c0_153, %c0_154, %c0_155] : memref<2x10x256xf32, #tpu.memory_space<vmem>>, vector<1x10x256xf32>
    %332 = vector.shape_cast %331 : vector<1x10x256xf32> to vector<10x256xf32>
    %333 = vector.shape_cast %330 : vector<10x256xf32> to vector<1x10x256xf32>
    tpu.vector_store %arg3[%c0_153, %c0_154, %c0_155], %333 {strides = array<i32>} : memref<2x10x256xf32, #tpu.memory_space<vmem>>, vector<1x10x256xf32>,
    %334 = vector.extract_strided_slice %326 {offsets = [0, 256], sizes = [10, 256], strides = [1, 1]} : vector<10x512xf32> to vector<10x256xf32>
    %c1_156 = arith.constant 1 : index
    %c0_157 = arith.constant 0 : index
    %c0_158 = arith.constant 0 : index
    %335 = vector.load %arg1[%c1_156, %c0_157, %c0_158] : memref<2x10x256xf32, #tpu.memory_space<vmem>>, vector<1x10x256xf32>
    %336 = vector.shape_cast %335 : vector<1x10x256xf32> to vector<10x256xf32>
    %337 = arith.addf %334, %336 : vector<10x256xf32>
    %c1_159 = arith.constant 1 : index
    %c0_160 = arith.constant 0 : index
    %c0_161 = arith.constant 0 : index
    %338 = vector.load %arg3[%c1_159, %c0_160, %c0_161] : memref<2x10x256xf32, #tpu.memory_space<vmem>>, vector<1x10x256xf32>
    %339 = vector.shape_cast %338 : vector<1x10x256xf32> to vector<10x256xf32>
    %340 = vector.shape_cast %337 : vector<10x256xf32> to vector<1x10x256xf32>
    tpu.vector_store %arg3[%c1_159, %c0_160, %c0_161], %340 {strides = array<i32>} : memref<2x10x256xf32, #tpu.memory_space<vmem>>, vector<1x10x256xf32>,
    return
  }
  func.func @transform_0(%arg0: i32) -> (i32, i32, i32) {
    %c0_i32 = arith.constant 0 : i32
    %c0_i32_0 = arith.constant 0 : i32
    %c0_i32_1 = arith.constant 0 : i32
    return %arg0, %c0_i32, %c0_i32_0 : i32, i32, i32
  }
  func.func @transform_1(%arg0: i32) -> (i32, i32) {
    %c0_i32 = arith.constant 0 : i32
    %c0_i32_0 = arith.constant 0 : i32
    %c0_i32_1 = arith.constant 0 : i32
    return %c0_i32, %c0_i32_0 : i32, i32
  }
  func.func @transform_2(%arg0: i32) -> (i32, i32, i32) {
    %c0_i32 = arith.constant 0 : i32
    %c0_i32_0 = arith.constant 0 : i32
    %c0_i32_1 = arith.constant 0 : i32
    return %arg0, %c0_i32, %c0_i32_0 : i32, i32, i32
  }
}

</mosaic_0001>

<llo_original>
// kernel: tpu_custom_call.1
$region0: #{tpu_custom_call.1}
  #allocation0 [shape = 'u32[]', space=smem, size = 0x4, offset = 0x4, fixed_abs, tag = 'smem constant byte address 0x4 - core index']
  #allocation1 [shape = 'u32[144,128]{1,0:T(1,128)}', space=vmem, size = 0x12000, scoped, tag = 'internal scratch']
  #allocation2 [shape = 'f32[16,512]{1,0:T(8,128)}', space=vmem, size = 0x8000, scoped, tag = 'scratch operand']
  #allocation3 [shape = 'f32[416,512]{1,0:T(8,128)}', space=vmem, size = 0xd0000, scoped, tag = 'scratch operand']
  %s0 = inlined_call_operand.vmem [shape: f32[2,10,256], index: 0, kind: input, shape index: {}]
  %s1 = inlined_call_operand.vmem [shape: f32[10,416], index: 1, kind: input, shape index: {}]
  %s2 = inlined_call_operand.vmem [shape: f32[2,10,256], index: 2, kind: output, shape index: {}]
  %s3 = sld [smem:[#allocation0]]
  $region22: #{tpu_custom_call.1} parent=0
    _
  %s5 = ssub.s32 1, %s3
  %s6 = scalar_select 0, %s5, %s3
  // Predicated region
  $region2: #{tpu_custom_call.1} parent=0 // pred_check
    _
  $region3: #{tpu_custom_call.1} parent=0 // pred_check_branch
    %8 = sbr.rel (0) target = $region5
  $region4: #{tpu_custom_call.1} parent=0 // pred_region
    _
  $region5: #{tpu_custom_call.1} parent=0 // pred_fallthru
    _
  // Predicated region
  $region6: #{tpu_custom_call.1} parent=0 // pred_check
    _
  $region7: #{tpu_custom_call.1} parent=0 // pred_check_branch
    %10 = sbr.rel (0) target = $region9
  $region8: #{tpu_custom_call.1} parent=0 // pred_region
    _
  $region9: #{tpu_custom_call.1} parent=0 // pred_fallthru
    _
  %p11 = scmp.eq.s32.totalorder 0, 0
  // Predicated region
  $region10: #{tpu_custom_call.1} parent=0 // pred_check
    %p12 = pneg %p11
  $region11: #{tpu_custom_call.1} parent=0 // pred_check_branch
    %14 = sbr.rel (%p12) target = $region13
  $region12: #{tpu_custom_call.1} parent=0 // pred_region
    %15 = vst [vmem:[#allocation2] sm:$0xff] 0.0
    %16 = vst [vmem:[#allocation2 + $0x8] sm:$0xff] 0.0
    %17 = vst [vmem:[#allocation2 + $0x10] sm:$0xff] 0.0
    %18 = vst [vmem:[#allocation2 + $0x18] sm:$0xff] 0.0
    %19 = vst [vmem:[#allocation2 + $0x20] sm:$0xff] 0.0
    %20 = vst [vmem:[#allocation2 + $0x28] sm:$0xff] 0.0
    %21 = vst [vmem:[#allocation2 + $0x30] sm:$0xff] 0.0
    %22 = vst [vmem:[#allocation2 + $0x38] sm:$0xff] 0.0
    %23 = vst [vmem:[#allocation3] sm:$0xff] 0.0
    %24 = vst [vmem:[#allocation3 + $0x8] sm:$0xff] 0.0
    %25 = vst [vmem:[#allocation3 + $0x10] sm:$0xff] 0.0
    %26 = vst [vmem:[#allocation3 + $0x18] sm:$0xff] 0.0
    %27 = vst [vmem:[#allocation3 + $0x20] sm:$0xff] 0.0
    %28 = vst [vmem:[#allocation3 + $0x28] sm:$0xff] 0.0
    %29 = vst [vmem:[#allocation3 + $0x30] sm:$0xff] 0.0
    %30 = vst [vmem:[#allocation3 + $0x38] sm:$0xff] 0.0
    %31 = vst [vmem:[#allocation3 + $0x40] sm:$0xff] 0.0
    %32 = vst [vmem:[#allocation3 + $0x48] sm:$0xff] 0.0
    %33 = vst [vmem:[#allocation3 + $0x50] sm:$0xff] 0.0
    %34 = vst [vmem:[#allocation3 + $0x58] sm:$0xff] 0.0
    %35 = vst [vmem:[#allocation3 + $0x60] sm:$0xff] 0.0
    %36 = vst [vmem:[#allocation3 + $0x68] sm:$0xff] 0.0
    %37 = vst [vmem:[#allocation3 + $0x70] sm:$0xff] 0.0
    %38 = vst [vmem:[#allocation3 + $0x78] sm:$0xff] 0.0
    %39 = vst [vmem:[#allocation3 + $0x80] sm:$0xff] 0.0
    %40 = vst [vmem:[#allocation3 + $0x88] sm:$0xff] 0.0
    %41 = vst [vmem:[#allocation3 + $0x90] sm:$0xff] 0.0
    %42 = vst [vmem:[#allocation3 + $0x98] sm:$0xff] 0.0
    %43 = vst [vmem:[#allocation3 + $0xa0] sm:$0xff] 0.0
    %44 = vst [vmem:[#allocation3 + $0xa8] sm:$0xff] 0.0
    %45 = vst [vmem:[#allocation3 + $0xb0] sm:$0xff] 0.0
    %46 = vst [vmem:[#allocation3 + $0xb8] sm:$0xff] 0.0
    %47 = vst [vmem:[#allocation3 + $0xc0] sm:$0xff] 0.0
    %48 = vst [vmem:[#allocation3 + $0xc8] sm:$0xff] 0.0
    %49 = vst [vmem:[#allocation3 + $0xd0] sm:$0xff] 0.0
    %50 = vst [vmem:[#allocation3 + $0xd8] sm:$0xff] 0.0
    %51 = vst [vmem:[#allocation3 + $0xe0] sm:$0xff] 0.0
    %52 = vst [vmem:[#allocation3 + $0xe8] sm:$0xff] 0.0
    %53 = vst [vmem:[#allocation3 + $0xf0] sm:$0xff] 0.0
    %54 = vst [vmem:[#allocation3 + $0xf8] sm:$0xff] 0.0
    %55 = vst [vmem:[#allocation3 + $0x100] sm:$0xff] 0.0
    %56 = vst [vmem:[#allocation3 + $0x108] sm:$0xff] 0.0
    %57 = vst [vmem:[#allocation3 + $0x110] sm:$0xff] 0.0
    %58 = vst [vmem:[#allocation3 + $0x118] sm:$0xff] 0.0
    %59 = vst [vmem:[#allocation3 + $0x120] sm:$0xff] 0.0
    %60 = vst [vmem:[#allocation3 + $0x128] sm:$0xff] 0.0
    %61 = vst [vmem:[#allocation3 + $0x130] sm:$0xff] 0.0
    %62 = vst [vmem:[#allocation3 + $0x138] sm:$0xff] 0.0
    %63 = vst [vmem:[#allocation3 + $0x140] sm:$0xff] 0.0
    %64 = vst [vmem:[#allocation3 + $0x148] sm:$0xff] 0.0
    %65 = vst [vmem:[#allocation3 + $0x150] sm:$0xff] 0.0
    %66 = vst [vmem:[#allocation3 + $0x158] sm:$0xff] 0.0
    %67 = vst [vmem:[#allocation3 + $0x160] sm:$0xff] 0.0
    %68 = vst [vmem:[#allocation3 + $0x168] sm:$0xff] 0.0
    %69 = vst [vmem:[#allocation3 + $0x170] sm:$0xff] 0.0
    %70 = vst [vmem:[#allocation3 + $0x178] sm:$0xff] 0.0
    %71 = vst [vmem:[#allocation3 + $0x180] sm:$0xff] 0.0
    %72 = vst [vmem:[#allocation3 + $0x188] sm:$0xff] 0.0
    %73 = vst [vmem:[#allocation3 + $0x190] sm:$0xff] 0.0
    %74 = vst [vmem:[#allocation3 + $0x198] sm:$0xff] 0.0
    %75 = vst [vmem:[#allocation3 + $0x1a0] sm:$0xff] 0.0
    %76 = vst [vmem:[#allocation3 + $0x1a8] sm:$0xff] 0.0
    %77 = vst [vmem:[#allocation3 + $0x1b0] sm:$0xff] 0.0
    %78 = vst [vmem:[#allocation3 + $0x1b8] sm:$0xff] 0.0
    %79 = vst [vmem:[#allocation3 + $0x1c0] sm:$0xff] 0.0
    %80 = vst [vmem:[#allocation3 + $0x1c8] sm:$0xff] 0.0
    %81 = vst [vmem:[#allocation3 + $0x1d0] sm:$0xff] 0.0
    %82 = vst [vmem:[#allocation3 + $0x1d8] sm:$0xff] 0.0
    %83 = vst [vmem:[#allocation3 + $0x1e0] sm:$0xff] 0.0
    %84 = vst [vmem:[#allocation3 + $0x1e8] sm:$0xff] 0.0
    %85 = vst [vmem:[#allocation3 + $0x1f0] sm:$0xff] 0.0
    %86 = vst [vmem:[#allocation3 + $0x1f8] sm:$0xff] 0.0
    %87 = vst [vmem:[#allocation3 + $0x200] sm:$0xff] 0.0
    %88 = vst [vmem:[#allocation3 + $0x208] sm:$0xff] 0.0
    %89 = vst [vmem:[#allocation3 + $0x210] sm:$0xff] 0.0
    %90 = vst [vmem:[#allocation3 + $0x218] sm:$0xff] 0.0
    %91 = vst [vmem:[#allocation3 + $0x220] sm:$0xff] 0.0
    %92 = vst [vmem:[#allocation3 + $0x228] sm:$0xff] 0.0
    %93 = vst [vmem:[#allocation3 + $0x230] sm:$0xff] 0.0
    %94 = vst [vmem:[#allocation3 + $0x238] sm:$0xff] 0.0
    %95 = vst [vmem:[#allocation3 + $0x240] sm:$0xff] 0.0
    %96 = vst [vmem:[#allocation3 + $0x248] sm:$0xff] 0.0
    %97 = vst [vmem:[#allocation3 + $0x250] sm:$0xff] 0.0
    %98 = vst [vmem:[#allocation3 + $0x258] sm:$0xff] 0.0
    %99 = vst [vmem:[#allocation3 + $0x260] sm:$0xff] 0.0
    %100 = vst [vmem:[#allocation3 + $0x268] sm:$0xff] 0.0
    %101 = vst [vmem:[#allocation3 + $0x270] sm:$0xff] 0.0
    %102 = vst [vmem:[#allocation3 + $0x278] sm:$0xff] 0.0
    %103 = vst [vmem:[#allocation3 + $0x280] sm:$0xff] 0.0
    %104 = vst [vmem:[#allocation3 + $0x288] sm:$0xff] 0.0
    %105 = vst [vmem:[#allocation3 + $0x290] sm:$0xff] 0.0
    %106 = vst [vmem:[#allocation3 + $0x298] sm:$0xff] 0.0
    %107 = vst [vmem:[#allocation3 + $0x2a0] sm:$0xff] 0.0
    %108 = vst [vmem:[#allocation3 + $0x2a8] sm:$0xff] 0.0
    %109 = vst [vmem:[#allocation3 + $0x2b0] sm:$0xff] 0.0
    %110 = vst [vmem:[#allocation3 + $0x2b8] sm:$0xff] 0.0
    %111 = vst [vmem:[#allocation3 + $0x2c0] sm:$0xff] 0.0
    %112 = vst [vmem:[#allocation3 + $0x2c8] sm:$0xff] 0.0
    %113 = vst [vmem:[#allocation3 + $0x2d0] sm:$0xff] 0.0
    %114 = vst [vmem:[#allocation3 + $0x2d8] sm:$0xff] 0.0
    %115 = vst [vmem:[#allocation3 + $0x2e0] sm:$0xff] 0.0
    %116 = vst [vmem:[#allocation3 + $0x2e8] sm:$0xff] 0.0
    %117 = vst [vmem:[#allocation3 + $0x2f0] sm:$0xff] 0.0
    %118 = vst [vmem:[#allocation3 + $0x2f8] sm:$0xff] 0.0
    %119 = vst [vmem:[#allocation3 + $0x300] sm:$0xff] 0.0
    %120 = vst [vmem:[#allocation3 + $0x308] sm:$0xff] 0.0
    %121 = vst [vmem:[#allocation3 + $0x310] sm:$0xff] 0.0
    %122 = vst [vmem:[#allocation3 + $0x318] sm:$0xff] 0.0
    %123 = vst [vmem:[#allocation3 + $0x320] sm:$0xff] 0.0
    %124 = vst [vmem:[#allocation3 + $0x328] sm:$0xff] 0.0
    %125 = vst [vmem:[#allocation3 + $0x330] sm:$0xff] 0.0
    %126 = vst [vmem:[#allocation3 + $0x338] sm:$0xff] 0.0
    %127 = vst [vmem:[#allocation3 + $0x340] sm:$0xff] 0.0
    %128 = vst [vmem:[#allocation3 + $0x348] sm:$0xff] 0.0
    %129 = vst [vmem:[#allocation3 + $0x350] sm:$0xff] 0.0
    %130 = vst [vmem:[#allocation3 + $0x358] sm:$0xff] 0.0
    %131 = vst [vmem:[#allocation3 + $0x360] sm:$0xff] 0.0
    %132 = vst [vmem:[#allocation3 + $0x368] sm:$0xff] 0.0
    %133 = vst [vmem:[#allocation3 + $0x370] sm:$0xff] 0.0
    %134 = vst [vmem:[#allocation3 + $0x378] sm:$0xff] 0.0
    %135 = vst [vmem:[#allocation3 + $0x380] sm:$0xff] 0.0
    %136 = vst [vmem:[#allocation3 + $0x388] sm:$0xff] 0.0
    %137 = vst [vmem:[#allocation3 + $0x390] sm:$0xff] 0.0
    %138 = vst [vmem:[#allocation3 + $0x398] sm:$0xff] 0.0
    %139 = vst [vmem:[#allocation3 + $0x3a0] sm:$0xff] 0.0
    %140 = vst [vmem:[#allocation3 + $0x3a8] sm:$0xff] 0.0
    %141 = vst [vmem:[#allocation3 + $0x3b0] sm:$0xff] 0.0
    %142 = vst [vmem:[#allocation3 + $0x3b8] sm:$0xff] 0.0
    %143 = vst [vmem:[#allocation3 + $0x3c0] sm:$0xff] 0.0
    %144 = vst [vmem:[#allocation3 + $0x3c8] sm:$0xff] 0.0
    %145 = vst [vmem:[#allocation3 + $0x3d0] sm:$0xff] 0.0
    %146 = vst [vmem:[#allocation3 + $0x3d8] sm:$0xff] 0.0
    %147 = vst [vmem:[#allocation3 + $0x3e0] sm:$0xff] 0.0
    %148 = vst [vmem:[#allocation3 + $0x3e8] sm:$0xff] 0.0
    %149 = vst [vmem:[#allocation3 + $0x3f0] sm:$0xff] 0.0
    %150 = vst [vmem:[#allocation3 + $0x3f8] sm:$0xff] 0.0
    %151 = vst [vmem:[#allocation3 + $0x400] sm:$0xff] 0.0
    %152 = vst [vmem:[#allocation3 + $0x408] sm:$0xff] 0.0
    %153 = vst [vmem:[#allocation3 + $0x410] sm:$0xff] 0.0
    %154 = vst [vmem:[#allocation3 + $0x418] sm:$0xff] 0.0
    %155 = vst [vmem:[#allocation3 + $0x420] sm:$0xff] 0.0
    %156 = vst [vmem:[#allocation3 + $0x428] sm:$0xff] 0.0
    %157 = vst [vmem:[#allocation3 + $0x430] sm:$0xff] 0.0
    %158 = vst [vmem:[#allocation3 + $0x438] sm:$0xff] 0.0
    %159 = vst [vmem:[#allocation3 + $0x440] sm:$0xff] 0.0
    %160 = vst [vmem:[#allocation3 + $0x448] sm:$0xff] 0.0
    %161 = vst [vmem:[#allocation3 + $0x450] sm:$0xff] 0.0
    %162 = vst [vmem:[#allocation3 + $0x458] sm:$0xff] 0.0
    %163 = vst [vmem:[#allocation3 + $0x460] sm:$0xff] 0.0
    %164 = vst [vmem:[#allocation3 + $0x468] sm:$0xff] 0.0
    %165 = vst [vmem:[#allocation3 + $0x470] sm:$0xff] 0.0
    %166 = vst [vmem:[#allocation3 + $0x478] sm:$0xff] 0.0
    %167 = vst [vmem:[#allocation3 + $0x480] sm:$0xff] 0.0
    %168 = vst [vmem:[#allocation3 + $0x488] sm:$0xff] 0.0
    %169 = vst [vmem:[#allocation3 + $0x490] sm:$0xff] 0.0
    %170 = vst [vmem:[#allocation3 + $0x498] sm:$0xff] 0.0
    %171 = vst [vmem:[#allocation3 + $0x4a0] sm:$0xff] 0.0
    %172 = vst [vmem:[#allocation3 + $0x4a8] sm:$0xff] 0.0
    %173 = vst [vmem:[#allocation3 + $0x4b0] sm:$0xff] 0.0
    %174 = vst [vmem:[#allocation3 + $0x4b8] sm:$0xff] 0.0
    %175 = vst [vmem:[#allocation3 + $0x4c0] sm:$0xff] 0.0
    %176 = vst [vmem:[#allocation3 + $0x4c8] sm:$0xff] 0.0
    %177 = vst [vmem:[#allocation3 + $0x4d0] sm:$0xff] 0.0
    %178 = vst [vmem:[#allocation3 + $0x4d8] sm:$0xff] 0.0
    %179 = vst [vmem:[#allocation3 + $0x4e0] sm:$0xff] 0.0
    %180 = vst [vmem:[#allocation3 + $0x4e8] sm:$0xff] 0.0
    %181 = vst [vmem:[#allocation3 + $0x4f0] sm:$0xff] 0.0
    %182 = vst [vmem:[#allocation3 + $0x4f8] sm:$0xff] 0.0
    %183 = vst [vmem:[#allocation3 + $0x500] sm:$0xff] 0.0
    %184 = vst [vmem:[#allocation3 + $0x508] sm:$0xff] 0.0
    %185 = vst [vmem:[#allocation3 + $0x510] sm:$0xff] 0.0
    %186 = vst [vmem:[#allocation3 + $0x518] sm:$0xff] 0.0
    %187 = vst [vmem:[#allocation3 + $0x520] sm:$0xff] 0.0
    %188 = vst [vmem:[#allocation3 + $0x528] sm:$0xff] 0.0
    %189 = vst [vmem:[#allocation3 + $0x530] sm:$0xff] 0.0
    %190 = vst [vmem:[#allocation3 + $0x538] sm:$0xff] 0.0
    %191 = vst [vmem:[#allocation3 + $0x540] sm:$0xff] 0.0
    %192 = vst [vmem:[#allocation3 + $0x548] sm:$0xff] 0.0
    %193 = vst [vmem:[#allocation3 + $0x550] sm:$0xff] 0.0
    %194 = vst [vmem:[#allocation3 + $0x558] sm:$0xff] 0.0
    %195 = vst [vmem:[#allocation3 + $0x560] sm:$0xff] 0.0
    %196 = vst [vmem:[#allocation3 + $0x568] sm:$0xff] 0.0
    %197 = vst [vmem:[#allocation3 + $0x570] sm:$0xff] 0.0
    %198 = vst [vmem:[#allocation3 + $0x578] sm:$0xff] 0.0
    %199 = vst [vmem:[#allocation3 + $0x580] sm:$0xff] 0.0
    %200 = vst [vmem:[#allocation3 + $0x588] sm:$0xff] 0.0
    %201 = vst [vmem:[#allocation3 + $0x590] sm:$0xff] 0.0
    %202 = vst [vmem:[#allocation3 + $0x598] sm:$0xff] 0.0
    %203 = vst [vmem:[#allocation3 + $0x5a0] sm:$0xff] 0.0
    %204 = vst [vmem:[#allocation3 + $0x5a8] sm:$0xff] 0.0
    %205 = vst [vmem:[#allocation3 + $0x5b0] sm:$0xff] 0.0
    %206 = vst [vmem:[#allocation3 + $0x5b8] sm:$0xff] 0.0
    %207 = vst [vmem:[#allocation3 + $0x5c0] sm:$0xff] 0.0
    %208 = vst [vmem:[#allocation3 + $0x5c8] sm:$0xff] 0.0
    %209 = vst [vmem:[#allocation3 + $0x5d0] sm:$0xff] 0.0
    %210 = vst [vmem:[#allocation3 + $0x5d8] sm:$0xff] 0.0
    %211 = vst [vmem:[#allocation3 + $0x5e0] sm:$0xff] 0.0
    %212 = vst [vmem:[#allocation3 + $0x5e8] sm:$0xff] 0.0
    %213 = vst [vmem:[#allocation3 + $0x5f0] sm:$0xff] 0.0
    %214 = vst [vmem:[#allocation3 + $0x5f8] sm:$0xff] 0.0
    %215 = vst [vmem:[#allocation3 + $0x600] sm:$0xff] 0.0
    %216 = vst [vmem:[#allocation3 + $0x608] sm:$0xff] 0.0
    %217 = vst [vmem:[#allocation3 + $0x610] sm:$0xff] 0.0
    %218 = vst [vmem:[#allocation3 + $0x618] sm:$0xff] 0.0
    %219 = vst [vmem:[#allocation3 + $0x620] sm:$0xff] 0.0
    %220 = vst [vmem:[#allocation3 + $0x628] sm:$0xff] 0.0
    %221 = vst [vmem:[#allocation3 + $0x630] sm:$0xff] 0.0
    %222 = vst [vmem:[#allocation3 + $0x638] sm:$0xff] 0.0
    %223 = vst [vmem:[#allocation3 + $0x640] sm:$0xff] 0.0
    %224 = vst [vmem:[#allocation3 + $0x648] sm:$0xff] 0.0
    %225 = vst [vmem:[#allocation3 + $0x650] sm:$0xff] 0.0
    %226 = vst [vmem:[#allocation3 + $0x658] sm:$0xff] 0.0
    %227 = vst [vmem:[#allocation3 + $0x660] sm:$0xff] 0.0
    %228 = vst [vmem:[#allocation3 + $0x668] sm:$0xff] 0.0
    %229 = vst [vmem:[#allocation3 + $0x670] sm:$0xff] 0.0
    %230 = vst [vmem:[#allocation3 + $0x678] sm:$0xff] 0.0
    %v231 = vlaneseq
    %vm232 = vcmp.ge.s32.totalorder %v231, 0
    %vm233 = vcmp.lt.s32.totalorder %v231, 512
    %vm234 = vmand %vm232, %vm233
    %s235 = scalar_lea.vmem [#allocation3], 1600
    %236 = vst.msk [vmem:[%s235] ss:$8 sm:$0xf] %vm234, 1.0
    %237 = vst.msk [vmem:[%s235] ss:$8 sm:$0x0] %vm234, 1.0
  $region13: #{tpu_custom_call.1} parent=0 // pred_fallthru
    _
  %v238 = vlaneseq
  %v239 = vand.u32 %v238, 127
  %v240 = vadd.s32 %v239, 128
  %vm241 = vcmp.lt.s32.totalorder %v239, 0
  %v242 = vsub.s32 0, %v239
  %v243 = vsel %vm241, %v242, %v239
  %v244 = vshrl.u32 %v243, 4
  %v245 = vand.u32 %v243, 15
  %v246 = vsub.s32 0, %v245
  %v247 = vsel %vm241, %v246, %v245
  %vm248 = vcmp.lt.s32.totalorder %v240, 0
  %v249 = vsub.s32 0, %v240
  %v250 = vsel %vm248, %v249, %v240
  %v251 = vshrl.u32 %v250, 4
  %v252 = vand.u32 %v250, 15
  %v253 = vsub.s32 0, %v252
  %v254 = vsel %vm248, %v253, %v252
  %vm255 = vcmp.ne.s32.totalorder %v247, 0
  %vm256 = vcmp.ne.s32.totalorder %v254, 0
  %vm257 = vcmp.lt.s32.totalorder %v247, 0
  %vm258 = vcmp.lt.s32.totalorder %v254, 0
  %vm259 = vmand %vm257, %vm255
  %vm260 = vmand %vm258, %vm256
  %v261 = vadd.s32 %v247, 16
  %v262 = vadd.s32 %v254, 16
  %v263 = vsel %vm259, %v261, %v247
  %v264 = vsel %vm260, %v262, %v254
  %v265 = vadd.s32 %v263, 4294967294
  %v266 = vadd.s32 %v264, 4294967294
  %vm267 = vcmp.ge.s32.totalorder %v265, 0
  %vm268 = vcmp.ge.s32.totalorder %v266, 0
  %vm269 = vcmp.lt.s32.totalorder %v265, 16
  %vm270 = vcmp.lt.s32.totalorder %v266, 16
  %vm271 = vmand %vm267, %vm269
  %vm272 = vmand %vm268, %vm270
  %v273 = vadd.s32 %v263, 4294967295
  %v274 = vadd.s32 %v264, 4294967295
  %vm275 = vcmp.ge.s32.totalorder %v273, 0
  %vm276 = vcmp.ge.s32.totalorder %v274, 0
  %vm277 = vcmp.lt.s32.totalorder %v273, 16
  %vm278 = vcmp.lt.s32.totalorder %v274, 16
  %vm279 = vmand %vm275, %vm277
  %vm280 = vmand %vm276, %vm278
  %v281 = vadd.s32 %v263, 1
  %v282 = vadd.s32 %v264, 1
  %vm283 = vcmp.ge.s32.totalorder %v281, 0
  %vm284 = vcmp.ge.s32.totalorder %v282, 0
  %vm285 = vcmp.lt.s32.totalorder %v281, 16
  %vm286 = vcmp.lt.s32.totalorder %v282, 16
  %vm287 = vmand %vm283, %vm285
  %vm288 = vmand %vm284, %vm286
  %v289 = vadd.s32 %v263, 2
  %v290 = vadd.s32 %v264, 2
  %vm291 = vcmp.ge.s32.totalorder %v289, 0
  %vm292 = vcmp.ge.s32.totalorder %v290, 0
  %vm293 = vcmp.lt.s32.totalorder %v289, 16
  %vm294 = vcmp.lt.s32.totalorder %v290, 16
  %vm295 = vmand %vm291, %vm293
  %vm296 = vmand %vm292, %vm294
  %v297 = vld [vmem:[%s0] sm:$0xff]
  %v298 = vld [vmem:[%s0 + $0x8] sm:$0xff]
  %v299 = vld [vmem:[%s0 + $0x10] sm:$0x3]
  %v300 = vld [vmem:[%s0 + $0x18] sm:$0x3]
  %301 = vst [vmem:[#allocation2 + $0x8] sm:$0xff] %v297
  %302 = vst [vmem:[#allocation2 + $0x10] sm:$0xff] %v298
  %303 = vst [vmem:[#allocation2 + $0x28] sm:$0x3] %v299
  %304 = vst [vmem:[#allocation2 + $0x30] sm:$0x3] %v300
  %v305 = vld [vmem:[#allocation2] sm:$0xff]
  %v306 = vld [vmem:[#allocation2 + $0x8] sm:$0xff]
  %v307 = vld [vmem:[#allocation2 + $0x10] sm:$0xff]
  %v308 = vld [vmem:[#allocation2 + $0x18] sm:$0xff]
  %v309 = vld [vmem:[#allocation2 + $0x20] sm:$0xff]
  %v310 = vld [vmem:[#allocation2 + $0x28] sm:$0xff]
  %v311 = vld [vmem:[#allocation2 + $0x30] sm:$0xff]
  %v312 = vld [vmem:[#allocation2 + $0x38] sm:$0xff]
  %v313 = vsel %vm271, 1, 0
  %v314 = vsel %vm272, 1, 0
  %vm315 = vcmp.eq.s32.totalorder %v313, 1
  %vm316 = vcmp.eq.s32.totalorder %v314, 1
  %323 = vrot.lane.b32.xlu0 %v305, 34
  %v324 = vpop.permute.xlu0 %323
  %325 = vrot.lane.b32.xlu0 %v306, 34
  %v326 = vpop.permute.xlu0 %325
  %327 = vrot.lane.b32.xlu0 %v307, 34
  %v328 = vpop.permute.xlu0 %327
  %329 = vrot.lane.b32.xlu0 %v309, 34
  %v330 = vpop.permute.xlu0 %329
  %331 = vrot.lane.b32.xlu0 %v310, 34
  %v332 = vpop.permute.xlu0 %331
  %333 = vrot.lane.b32.xlu0 %v311, 34
  %v334 = vpop.permute.xlu0 %333
  %vm335 = vcmask 277504
  %v336 = vsel %vm335, %v324, %v326
  %v337 = vsel %vm335, %v326, %v328
  %v338 = vsel %vm335, %v330, %v332
  %v339 = vsel %vm335, %v332, %v334
  %v344 = vsel %vm315, %v336, 0.0
  %v345 = vsel %vm316, %v337, 0.0
  %v346 = vsel %vm315, %v338, 0.0
  %v347 = vsel %vm316, %v339, 0.0
  %348 = vst [vmem:[#allocation3] sm:$0xff] %v344
  %349 = vst [vmem:[#allocation3 + $0x8] sm:$0xff] %v345
  %350 = vst [vmem:[#allocation3 + $0x20] sm:$0xff] %v346
  %351 = vst [vmem:[#allocation3 + $0x28] sm:$0xff] %v347
  %v352 = vsel %vm279, 1, 0
  %v353 = vsel %vm280, 1, 0
  %vm354 = vcmp.eq.s32.totalorder %v352, 1
  %vm355 = vcmp.eq.s32.totalorder %v353, 1
  %356 = vrot.lane.b32.xlu0 %v305, 33
  %v357 = vpop.permute.xlu0 %356
  %358 = vrot.lane.b32.xlu0 %v306, 33
  %v359 = vpop.permute.xlu0 %358
  %360 = vrot.lane.b32.xlu0 %v307, 33
  %v361 = vpop.permute.xlu0 %360
  %362 = vrot.lane.b32.xlu0 %v309, 33
  %v363 = vpop.permute.xlu0 %362
  %364 = vrot.lane.b32.xlu0 %v310, 33
  %v365 = vpop.permute.xlu0 %364
  %366 = vrot.lane.b32.xlu0 %v311, 33
  %v367 = vpop.permute.xlu0 %366
  %vm368 = vcmask 269312
  %v369 = vsel %vm368, %v357, %v359
  %v370 = vsel %vm368, %v359, %v361
  %v371 = vsel %vm368, %v363, %v365
  %v372 = vsel %vm368, %v365, %v367
  %v377 = vsel %vm354, %v369, 0.0
  %v378 = vsel %vm355, %v370, 0.0
  %v379 = vsel %vm354, %v371, 0.0
  %v380 = vsel %vm355, %v372, 0.0
  %381 = vst [vmem:[#allocation3 + $0x40] sm:$0xff] %v377
  %382 = vst [vmem:[#allocation3 + $0x48] sm:$0xff] %v378
  %383 = vst [vmem:[#allocation3 + $0x60] sm:$0xff] %v379
  %384 = vst [vmem:[#allocation3 + $0x68] sm:$0xff] %v380
  %385 = vrot.lane.b32.xlu0 %v305, 32
  %v386 = vpop.permute.xlu0 %385
  %387 = vrot.lane.b32.xlu0 %v306, 32
  %v388 = vpop.permute.xlu0 %387
  %389 = vrot.lane.b32.xlu0 %v307, 32
  %v390 = vpop.permute.xlu0 %389
  %391 = vrot.lane.b32.xlu0 %v309, 32
  %v392 = vpop.permute.xlu0 %391
  %393 = vrot.lane.b32.xlu0 %v310, 32
  %v394 = vpop.permute.xlu0 %393
  %395 = vrot.lane.b32.xlu0 %v311, 32
  %v396 = vpop.permute.xlu0 %395
  %vm397 = vcmask 261120
  %v398 = vsel %vm397, %v386, %v388
  %v399 = vsel %vm397, %v388, %v390
  %v400 = vsel %vm397, %v392, %v394
  %v401 = vsel %vm397, %v394, %v396
  %406 = vst [vmem:[#allocation3 + $0x80] sm:$0xff] %v398
  %407 = vst [vmem:[#allocation3 + $0x88] sm:$0xff] %v399
  %408 = vst [vmem:[#allocation3 + $0xa0] sm:$0xff] %v400
  %409 = vst [vmem:[#allocation3 + $0xa8] sm:$0xff] %v401
  %v410 = vsel %vm287, 1, 0
  %v411 = vsel %vm288, 1, 0
  %vm412 = vcmp.eq.s32.totalorder %v410, 1
  %vm413 = vcmp.eq.s32.totalorder %v411, 1
  %414 = vrot.lane.b32.xlu0 %v305, 31
  %v415 = vpop.permute.xlu0 %414
  %416 = vrot.lane.b32.xlu0 %v306, 31
  %v417 = vpop.permute.xlu0 %416
  %418 = vrot.lane.b32.xlu0 %v307, 31
  %v419 = vpop.permute.xlu0 %418
  %420 = vrot.lane.b32.xlu0 %v309, 31
  %v421 = vpop.permute.xlu0 %420
  %422 = vrot.lane.b32.xlu0 %v310, 31
  %v423 = vpop.permute.xlu0 %422
  %424 = vrot.lane.b32.xlu0 %v311, 31
  %v425 = vpop.permute.xlu0 %424
  %vm426 = vcmask 252928
  %v427 = vsel %vm426, %v415, %v417
  %v428 = vsel %vm426, %v417, %v419
  %v429 = vsel %vm426, %v421, %v423
  %v430 = vsel %vm426, %v423, %v425
  %v435 = vsel %vm412, %v427, 0.0
  %v436 = vsel %vm413, %v428, 0.0
  %v437 = vsel %vm412, %v429, 0.0
  %v438 = vsel %vm413, %v430, 0.0
  %439 = vst [vmem:[#allocation3 + $0xc0] sm:$0xff] %v435
  %440 = vst [vmem:[#allocation3 + $0xc8] sm:$0xff] %v436
  %441 = vst [vmem:[#allocation3 + $0xe0] sm:$0xff] %v437
  %442 = vst [vmem:[#allocation3 + $0xe8] sm:$0xff] %v438
  %v443 = vsel %vm295, 1, 0
  %v444 = vsel %vm296, 1, 0
  %vm445 = vcmp.eq.s32.totalorder %v443, 1
  %vm446 = vcmp.eq.s32.totalorder %v444, 1
  %447 = vrot.lane.b32.xlu0 %v305, 30
  %v448 = vpop.permute.xlu0 %447
  %449 = vrot.lane.b32.xlu0 %v306, 30
  %v450 = vpop.permute.xlu0 %449
  %451 = vrot.lane.b32.xlu0 %v307, 30
  %v452 = vpop.permute.xlu0 %451
  %453 = vrot.lane.b32.xlu0 %v309, 30
  %v454 = vpop.permute.xlu0 %453
  %455 = vrot.lane.b32.xlu0 %v310, 30
  %v456 = vpop.permute.xlu0 %455
  %457 = vrot.lane.b32.xlu0 %v311, 30
  %v458 = vpop.permute.xlu0 %457
  %vm459 = vcmask 244736
  %v460 = vsel %vm459, %v448, %v450
  %v461 = vsel %vm459, %v450, %v452
  %v462 = vsel %vm459, %v454, %v456
  %v463 = vsel %vm459, %v456, %v458
  %v468 = vsel %vm445, %v460, 0.0
  %v469 = vsel %vm446, %v461, 0.0
  %v470 = vsel %vm445, %v462, 0.0
  %v471 = vsel %vm446, %v463, 0.0
  %472 = vst [vmem:[#allocation3 + $0x100] sm:$0xff] %v468
  %473 = vst [vmem:[#allocation3 + $0x108] sm:$0xff] %v469
  %474 = vst [vmem:[#allocation3 + $0x120] sm:$0xff] %v470
  %475 = vst [vmem:[#allocation3 + $0x128] sm:$0xff] %v471
  %476 = vrot.lane.b32.xlu0 %v305, 18
  %v477 = vpop.permute.xlu0 %476
  %478 = vrot.lane.b32.xlu0 %v306, 18
  %v479 = vpop.permute.xlu0 %478
  %480 = vrot.lane.b32.xlu0 %v307, 18
  %v481 = vpop.permute.xlu0 %480
  %482 = vrot.lane.b32.xlu0 %v309, 18
  %v483 = vpop.permute.xlu0 %482
  %484 = vrot.lane.b32.xlu0 %v310, 18
  %v485 = vpop.permute.xlu0 %484
  %486 = vrot.lane.b32.xlu0 %v311, 18
  %v487 = vpop.permute.xlu0 %486
  %vm488 = vcmask 146432
  %v489 = vsel %vm488, %v477, %v479
  %v490 = vsel %vm488, %v479, %v481
  %v491 = vsel %vm488, %v483, %v485
  %v492 = vsel %vm488, %v485, %v487
  %v497 = vsel %vm315, %v489, 0.0
  %v498 = vsel %vm316, %v490, 0.0
  %v499 = vsel %vm315, %v491, 0.0
  %v500 = vsel %vm316, %v492, 0.0
  %501 = vst [vmem:[#allocation3 + $0x140] sm:$0xff] %v497
  %502 = vst [vmem:[#allocation3 + $0x148] sm:$0xff] %v498
  %503 = vst [vmem:[#allocation3 + $0x160] sm:$0xff] %v499
  %504 = vst [vmem:[#allocation3 + $0x168] sm:$0xff] %v500
  %505 = vrot.lane.b32.xlu0 %v305, 17
  %v506 = vpop.permute.xlu0 %505
  %507 = vrot.lane.b32.xlu0 %v306, 17
  %v508 = vpop.permute.xlu0 %507
  %509 = vrot.lane.b32.xlu0 %v307, 17
  %v510 = vpop.permute.xlu0 %509
  %511 = vrot.lane.b32.xlu0 %v309, 17
  %v512 = vpop.permute.xlu0 %511
  %513 = vrot.lane.b32.xlu0 %v310, 17
  %v514 = vpop.permute.xlu0 %513
  %515 = vrot.lane.b32.xlu0 %v311, 17
  %v516 = vpop.permute.xlu0 %515
  %vm517 = vcmask 138240
  %v518 = vsel %vm517, %v506, %v508
  %v519 = vsel %vm517, %v508, %v510
  %v520 = vsel %vm517, %v512, %v514
  %v521 = vsel %vm517, %v514, %v516
  %v526 = vsel %vm354, %v518, 0.0
  %v527 = vsel %vm355, %v519, 0.0
  %v528 = vsel %vm354, %v520, 0.0
  %v529 = vsel %vm355, %v521, 0.0
  %530 = vst [vmem:[#allocation3 + $0x180] sm:$0xff] %v526
  %531 = vst [vmem:[#allocation3 + $0x188] sm:$0xff] %v527
  %532 = vst [vmem:[#allocation3 + $0x1a0] sm:$0xff] %v528
  %533 = vst [vmem:[#allocation3 + $0x1a8] sm:$0xff] %v529
  %534 = vrot.lane.b32.xlu0 %v305, 16
  %v535 = vpop.permute.xlu0 %534
  %536 = vrot.lane.b32.xlu0 %v306, 16
  %v537 = vpop.permute.xlu0 %536
  %538 = vrot.lane.b32.xlu0 %v307, 16
  %v539 = vpop.permute.xlu0 %538
  %540 = vrot.lane.b32.xlu0 %v309, 16
  %v541 = vpop.permute.xlu0 %540
  %542 = vrot.lane.b32.xlu0 %v310, 16
  %v543 = vpop.permute.xlu0 %542
  %544 = vrot.lane.b32.xlu0 %v311, 16
  %v545 = vpop.permute.xlu0 %544
  %vm546 = vcmask 130048
  %v547 = vsel %vm546, %v535, %v537
  %v548 = vsel %vm546, %v537, %v539
  %v549 = vsel %vm546, %v541, %v543
  %v550 = vsel %vm546, %v543, %v545
  %555 = vst [vmem:[#allocation3 + $0x1c0] sm:$0xff] %v547
  %556 = vst [vmem:[#allocation3 + $0x1c8] sm:$0xff] %v548
  %557 = vst [vmem:[#allocation3 + $0x1e0] sm:$0xff] %v549
  %558 = vst [vmem:[#allocation3 + $0x1e8] sm:$0xff] %v550
  %559 = vrot.lane.b32.xlu0 %v305, 15
  %v560 = vpop.permute.xlu0 %559
  %561 = vrot.lane.b32.xlu0 %v306, 15
  %v562 = vpop.permute.xlu0 %561
  %563 = vrot.lane.b32.xlu0 %v307, 15
  %v564 = vpop.permute.xlu0 %563
  %565 = vrot.lane.b32.xlu0 %v309, 15
  %v566 = vpop.permute.xlu0 %565
  %567 = vrot.lane.b32.xlu0 %v310, 15
  %v568 = vpop.permute.xlu0 %567
  %569 = vrot.lane.b32.xlu0 %v311, 15
  %v570 = vpop.permute.xlu0 %569
  %vm571 = vcmask 121856
  %v572 = vsel %vm571, %v560, %v562
  %v573 = vsel %vm571, %v562, %v564
  %v574 = vsel %vm571, %v566, %v568
  %v575 = vsel %vm571, %v568, %v570
  %v580 = vsel %vm412, %v572, 0.0
  %v581 = vsel %vm413, %v573, 0.0
  %v582 = vsel %vm412, %v574, 0.0
  %v583 = vsel %vm413, %v575, 0.0
  %584 = vst [vmem:[#allocation3 + $0x200] sm:$0xff] %v580
  %585 = vst [vmem:[#allocation3 + $0x208] sm:$0xff] %v581
  %586 = vst [vmem:[#allocation3 + $0x220] sm:$0xff] %v582
  %587 = vst [vmem:[#allocation3 + $0x228] sm:$0xff] %v583
  %588 = vrot.lane.b32.xlu0 %v305, 14
  %v589 = vpop.permute.xlu0 %588
  %590 = vrot.lane.b32.xlu0 %v306, 14
  %v591 = vpop.permute.xlu0 %590
  %592 = vrot.lane.b32.xlu0 %v307, 14
  %v593 = vpop.permute.xlu0 %592
  %594 = vrot.lane.b32.xlu0 %v309, 14
  %v595 = vpop.permute.xlu0 %594
  %596 = vrot.lane.b32.xlu0 %v310, 14
  %v597 = vpop.permute.xlu0 %596
  %598 = vrot.lane.b32.xlu0 %v311, 14
  %v599 = vpop.permute.xlu0 %598
  %vm600 = vcmask 113664
  %v601 = vsel %vm600, %v589, %v591
  %v602 = vsel %vm600, %v591, %v593
  %v603 = vsel %vm600, %v595, %v597
  %v604 = vsel %vm600, %v597, %v599
  %v609 = vsel %vm445, %v601, 0.0
  %v610 = vsel %vm446, %v602, 0.0
  %v611 = vsel %vm445, %v603, 0.0
  %v612 = vsel %vm446, %v604, 0.0
  %613 = vst [vmem:[#allocation3 + $0x240] sm:$0xff] %v609
  %614 = vst [vmem:[#allocation3 + $0x248] sm:$0xff] %v610
  %615 = vst [vmem:[#allocation3 + $0x260] sm:$0xff] %v611
  %616 = vst [vmem:[#allocation3 + $0x268] sm:$0xff] %v612
  %617 = vrot.lane.b32.xlu0 %v305, 2
  %v618 = vpop.permute.xlu0 %617
  %619 = vrot.lane.b32.xlu0 %v306, 2
  %v620 = vpop.permute.xlu0 %619
  %621 = vrot.lane.b32.xlu0 %v307, 2
  %v622 = vpop.permute.xlu0 %621
  %623 = vrot.lane.b32.xlu0 %v309, 2
  %v624 = vpop.permute.xlu0 %623
  %625 = vrot.lane.b32.xlu0 %v310, 2
  %v626 = vpop.permute.xlu0 %625
  %627 = vrot.lane.b32.xlu0 %v311, 2
  %v628 = vpop.permute.xlu0 %627
  %vm629 = vcmask 15360
  %v630 = vsel %vm629, %v618, %v620
  %v631 = vsel %vm629, %v620, %v622
  %v632 = vsel %vm629, %v624, %v626
  %v633 = vsel %vm629, %v626, %v628
  %v638 = vsel %vm315, %v630, 0.0
  %v639 = vsel %vm316, %v631, 0.0
  %v640 = vsel %vm315, %v632, 0.0
  %v641 = vsel %vm316, %v633, 0.0
  %642 = vst [vmem:[#allocation3 + $0x280] sm:$0xff] %v638
  %643 = vst [vmem:[#allocation3 + $0x288] sm:$0xff] %v639
  %644 = vst [vmem:[#allocation3 + $0x2a0] sm:$0xff] %v640
  %645 = vst [vmem:[#allocation3 + $0x2a8] sm:$0xff] %v641
  %646 = vrot.lane.b32.xlu0 %v305, 1
  %v647 = vpop.permute.xlu0 %646
  %648 = vrot.lane.b32.xlu0 %v306, 1
  %v649 = vpop.permute.xlu0 %648
  %650 = vrot.lane.b32.xlu0 %v307, 1
  %v651 = vpop.permute.xlu0 %650
  %652 = vrot.lane.b32.xlu0 %v309, 1
  %v653 = vpop.permute.xlu0 %652
  %654 = vrot.lane.b32.xlu0 %v310, 1
  %v655 = vpop.permute.xlu0 %654
  %656 = vrot.lane.b32.xlu0 %v311, 1
  %v657 = vpop.permute.xlu0 %656
  %vm658 = vcmask 7168
  %v659 = vsel %vm658, %v647, %v649
  %v660 = vsel %vm658, %v649, %v651
  %v661 = vsel %vm658, %v653, %v655
  %v662 = vsel %vm658, %v655, %v657
  %v667 = vsel %vm354, %v659, 0.0
  %v668 = vsel %vm355, %v660, 0.0
  %v669 = vsel %vm354, %v661, 0.0
  %v670 = vsel %vm355, %v662, 0.0
  %671 = vst [vmem:[#allocation3 + $0x2c0] sm:$0xff] %v667
  %672 = vst [vmem:[#allocation3 + $0x2c8] sm:$0xff] %v668
  %673 = vst [vmem:[#allocation3 + $0x2e0] sm:$0xff] %v669
  %674 = vst [vmem:[#allocation3 + $0x2e8] sm:$0xff] %v670
  %675 = vst [vmem:[#allocation3 + $0x300] sm:$0xff] %v306
  %676 = vst [vmem:[#allocation3 + $0x308] sm:$0xff] %v307
  %677 = vst [vmem:[#allocation3 + $0x320] sm:$0xff] %v310
  %678 = vst [vmem:[#allocation3 + $0x328] sm:$0xff] %v311
  %681 = vrot.lane.b32.xlu0 %v306, 127
  %v682 = vpop.permute.xlu0 %681
  %683 = vrot.lane.b32.xlu0 %v307, 127
  %v684 = vpop.permute.xlu0 %683
  %685 = vrot.lane.b32.xlu0 %v308, 127
  %v686 = vpop.permute.xlu0 %685
  %687 = vrot.lane.b32.xlu0 %v310, 127
  %v688 = vpop.permute.xlu0 %687
  %689 = vrot.lane.b32.xlu0 %v311, 127
  %v690 = vpop.permute.xlu0 %689
  %691 = vrot.lane.b32.xlu0 %v312, 127
  %v692 = vpop.permute.xlu0 %691
  %vm693 = vcmask 1039360
  %v694 = vsel %vm693, %v682, %v684
  %v695 = vsel %vm693, %v684, %v686
  %v696 = vsel %vm693, %v688, %v690
  %v697 = vsel %vm693, %v690, %v692
  %v702 = vsel %vm412, %v694, 0.0
  %v703 = vsel %vm413, %v695, 0.0
  %v704 = vsel %vm412, %v696, 0.0
  %v705 = vsel %vm413, %v697, 0.0
  %706 = vst [vmem:[#allocation3 + $0x340] sm:$0xff] %v702
  %707 = vst [vmem:[#allocation3 + $0x348] sm:$0xff] %v703
  %708 = vst [vmem:[#allocation3 + $0x360] sm:$0xff] %v704
  %709 = vst [vmem:[#allocation3 + $0x368] sm:$0xff] %v705
  %710 = vrot.lane.b32.xlu0 %v306, 126
  %v711 = vpop.permute.xlu0 %710
  %712 = vrot.lane.b32.xlu0 %v307, 126
  %v713 = vpop.permute.xlu0 %712
  %714 = vrot.lane.b32.xlu0 %v308, 126
  %v715 = vpop.permute.xlu0 %714
  %716 = vrot.lane.b32.xlu0 %v310, 126
  %v717 = vpop.permute.xlu0 %716
  %718 = vrot.lane.b32.xlu0 %v311, 126
  %v719 = vpop.permute.xlu0 %718
  %720 = vrot.lane.b32.xlu0 %v312, 126
  %v721 = vpop.permute.xlu0 %720
  %vm722 = vcmask 1031168
  %v723 = vsel %vm722, %v711, %v713
  %v724 = vsel %vm722, %v713, %v715
  %v725 = vsel %vm722, %v717, %v719
  %v726 = vsel %vm722, %v719, %v721
  %v731 = vsel %vm445, %v723, 0.0
  %v732 = vsel %vm446, %v724, 0.0
  %v733 = vsel %vm445, %v725, 0.0
  %v734 = vsel %vm446, %v726, 0.0
  %735 = vst [vmem:[#allocation3 + $0x380] sm:$0xff] %v731
  %736 = vst [vmem:[#allocation3 + $0x388] sm:$0xff] %v732
  %737 = vst [vmem:[#allocation3 + $0x3a0] sm:$0xff] %v733
  %738 = vst [vmem:[#allocation3 + $0x3a8] sm:$0xff] %v734
  %739 = vrot.lane.b32.xlu0 %v306, 114
  %v740 = vpop.permute.xlu0 %739
  %741 = vrot.lane.b32.xlu0 %v307, 114
  %v742 = vpop.permute.xlu0 %741
  %743 = vrot.lane.b32.xlu0 %v308, 114
  %v744 = vpop.permute.xlu0 %743
  %745 = vrot.lane.b32.xlu0 %v310, 114
  %v746 = vpop.permute.xlu0 %745
  %747 = vrot.lane.b32.xlu0 %v311, 114
  %v748 = vpop.permute.xlu0 %747
  %749 = vrot.lane.b32.xlu0 %v312, 114
  %v750 = vpop.permute.xlu0 %749
  %vm751 = vcmask 932864
  %v752 = vsel %vm751, %v740, %v742
  %v753 = vsel %vm751, %v742, %v744
  %v754 = vsel %vm751, %v746, %v748
  %v755 = vsel %vm751, %v748, %v750
  %v760 = vsel %vm315, %v752, 0.0
  %v761 = vsel %vm316, %v753, 0.0
  %v762 = vsel %vm315, %v754, 0.0
  %v763 = vsel %vm316, %v755, 0.0
  %764 = vst [vmem:[#allocation3 + $0x3c0] sm:$0xff] %v760
  %765 = vst [vmem:[#allocation3 + $0x3c8] sm:$0xff] %v761
  %766 = vst [vmem:[#allocation3 + $0x3e0] sm:$0xff] %v762
  %767 = vst [vmem:[#allocation3 + $0x3e8] sm:$0xff] %v763
  %768 = vrot.lane.b32.xlu0 %v306, 113
  %v769 = vpop.permute.xlu0 %768
  %770 = vrot.lane.b32.xlu0 %v307, 113
  %v771 = vpop.permute.xlu0 %770
  %772 = vrot.lane.b32.xlu0 %v308, 113
  %v773 = vpop.permute.xlu0 %772
  %774 = vrot.lane.b32.xlu0 %v310, 113
  %v775 = vpop.permute.xlu0 %774
  %776 = vrot.lane.b32.xlu0 %v311, 113
  %v777 = vpop.permute.xlu0 %776
  %778 = vrot.lane.b32.xlu0 %v312, 113
  %v779 = vpop.permute.xlu0 %778
  %vm780 = vcmask 924672
  %v781 = vsel %vm780, %v769, %v771
  %v782 = vsel %vm780, %v771, %v773
  %v783 = vsel %vm780, %v775, %v777
  %v784 = vsel %vm780, %v777, %v779
  %v789 = vsel %vm354, %v781, 0.0
  %v790 = vsel %vm355, %v782, 0.0
  %v791 = vsel %vm354, %v783, 0.0
  %v792 = vsel %vm355, %v784, 0.0
  %793 = vst [vmem:[#allocation3 + $0x400] sm:$0xff] %v789
  %794 = vst [vmem:[#allocation3 + $0x408] sm:$0xff] %v790
  %795 = vst [vmem:[#allocation3 + $0x420] sm:$0xff] %v791
  %796 = vst [vmem:[#allocation3 + $0x428] sm:$0xff] %v792
  %797 = vrot.lane.b32.xlu0 %v306, 112
  %v798 = vpop.permute.xlu0 %797
  %799 = vrot.lane.b32.xlu0 %v307, 112
  %v800 = vpop.permute.xlu0 %799
  %801 = vrot.lane.b32.xlu0 %v308, 112
  %v802 = vpop.permute.xlu0 %801
  %803 = vrot.lane.b32.xlu0 %v310, 112
  %v804 = vpop.permute.xlu0 %803
  %805 = vrot.lane.b32.xlu0 %v311, 112
  %v806 = vpop.permute.xlu0 %805
  %807 = vrot.lane.b32.xlu0 %v312, 112
  %v808 = vpop.permute.xlu0 %807
  %vm809 = vcmask 916480
  %v810 = vsel %vm809, %v798, %v800
  %v811 = vsel %vm809, %v800, %v802
  %v812 = vsel %vm809, %v804, %v806
  %v813 = vsel %vm809, %v806, %v808
  %818 = vst [vmem:[#allocation3 + $0x440] sm:$0xff] %v810
  %819 = vst [vmem:[#allocation3 + $0x448] sm:$0xff] %v811
  %820 = vst [vmem:[#allocation3 + $0x460] sm:$0xff] %v812
  %821 = vst [vmem:[#allocation3 + $0x468] sm:$0xff] %v813
  %822 = vrot.lane.b32.xlu0 %v306, 111
  %v823 = vpop.permute.xlu0 %822
  %824 = vrot.lane.b32.xlu0 %v307, 111
  %v825 = vpop.permute.xlu0 %824
  %826 = vrot.lane.b32.xlu0 %v308, 111
  %v827 = vpop.permute.xlu0 %826
  %828 = vrot.lane.b32.xlu0 %v310, 111
  %v829 = vpop.permute.xlu0 %828
  %830 = vrot.lane.b32.xlu0 %v311, 111
  %v831 = vpop.permute.xlu0 %830
  %832 = vrot.lane.b32.xlu0 %v312, 111
  %v833 = vpop.permute.xlu0 %832
  %vm834 = vcmask 908288
  %v835 = vsel %vm834, %v823, %v825
  %v836 = vsel %vm834, %v825, %v827
  %v837 = vsel %vm834, %v829, %v831
  %v838 = vsel %vm834, %v831, %v833
  %v843 = vsel %vm412, %v835, 0.0
  %v844 = vsel %vm413, %v836, 0.0
  %v845 = vsel %vm412, %v837, 0.0
  %v846 = vsel %vm413, %v838, 0.0
  %847 = vst [vmem:[#allocation3 + $0x480] sm:$0xff] %v843
  %848 = vst [vmem:[#allocation3 + $0x488] sm:$0xff] %v844
  %849 = vst [vmem:[#allocation3 + $0x4a0] sm:$0xff] %v845
  %850 = vst [vmem:[#allocation3 + $0x4a8] sm:$0xff] %v846
  %851 = vrot.lane.b32.xlu0 %v306, 110
  %v852 = vpop.permute.xlu0 %851
  %853 = vrot.lane.b32.xlu0 %v307, 110
  %v854 = vpop.permute.xlu0 %853
  %855 = vrot.lane.b32.xlu0 %v308, 110
  %v856 = vpop.permute.xlu0 %855
  %857 = vrot.lane.b32.xlu0 %v310, 110
  %v858 = vpop.permute.xlu0 %857
  %859 = vrot.lane.b32.xlu0 %v311, 110
  %v860 = vpop.permute.xlu0 %859
  %861 = vrot.lane.b32.xlu0 %v312, 110
  %v862 = vpop.permute.xlu0 %861
  %vm863 = vcmask 900096
  %v864 = vsel %vm863, %v852, %v854
  %v865 = vsel %vm863, %v854, %v856
  %v866 = vsel %vm863, %v858, %v860
  %v867 = vsel %vm863, %v860, %v862
  %v872 = vsel %vm445, %v864, 0.0
  %v873 = vsel %vm446, %v865, 0.0
  %v874 = vsel %vm445, %v866, 0.0
  %v875 = vsel %vm446, %v867, 0.0
  %876 = vst [vmem:[#allocation3 + $0x4c0] sm:$0xff] %v872
  %877 = vst [vmem:[#allocation3 + $0x4c8] sm:$0xff] %v873
  %878 = vst [vmem:[#allocation3 + $0x4e0] sm:$0xff] %v874
  %879 = vst [vmem:[#allocation3 + $0x4e8] sm:$0xff] %v875
  %880 = vrot.lane.b32.xlu0 %v306, 98
  %v881 = vpop.permute.xlu0 %880
  %882 = vrot.lane.b32.xlu0 %v307, 98
  %v883 = vpop.permute.xlu0 %882
  %884 = vrot.lane.b32.xlu0 %v308, 98
  %v885 = vpop.permute.xlu0 %884
  %886 = vrot.lane.b32.xlu0 %v310, 98
  %v887 = vpop.permute.xlu0 %886
  %888 = vrot.lane.b32.xlu0 %v311, 98
  %v889 = vpop.permute.xlu0 %888
  %890 = vrot.lane.b32.xlu0 %v312, 98
  %v891 = vpop.permute.xlu0 %890
  %vm892 = vcmask 801792
  %v893 = vsel %vm892, %v881, %v883
  %v894 = vsel %vm892, %v883, %v885
  %v895 = vsel %vm892, %v887, %v889
  %v896 = vsel %vm892, %v889, %v891
  %v901 = vsel %vm315, %v893, 0.0
  %v902 = vsel %vm316, %v894, 0.0
  %v903 = vsel %vm315, %v895, 0.0
  %v904 = vsel %vm316, %v896, 0.0
  %905 = vst [vmem:[#allocation3 + $0x500] sm:$0xff] %v901
  %906 = vst [vmem:[#allocation3 + $0x508] sm:$0xff] %v902
  %907 = vst [vmem:[#allocation3 + $0x520] sm:$0xff] %v903
  %908 = vst [vmem:[#allocation3 + $0x528] sm:$0xff] %v904
  %909 = vrot.lane.b32.xlu0 %v306, 97
  %v910 = vpop.permute.xlu0 %909
  %911 = vrot.lane.b32.xlu0 %v307, 97
  %v912 = vpop.permute.xlu0 %911
  %913 = vrot.lane.b32.xlu0 %v308, 97
  %v914 = vpop.permute.xlu0 %913
  %915 = vrot.lane.b32.xlu0 %v310, 97
  %v916 = vpop.permute.xlu0 %915
  %917 = vrot.lane.b32.xlu0 %v311, 97
  %v918 = vpop.permute.xlu0 %917
  %919 = vrot.lane.b32.xlu0 %v312, 97
  %v920 = vpop.permute.xlu0 %919
  %vm921 = vcmask 793600
  %v922 = vsel %vm921, %v910, %v912
  %v923 = vsel %vm921, %v912, %v914
  %v924 = vsel %vm921, %v916, %v918
  %v925 = vsel %vm921, %v918, %v920
  %v930 = vsel %vm354, %v922, 0.0
  %v931 = vsel %vm355, %v923, 0.0
  %v932 = vsel %vm354, %v924, 0.0
  %v933 = vsel %vm355, %v925, 0.0
  %934 = vst [vmem:[#allocation3 + $0x540] sm:$0xff] %v930
  %935 = vst [vmem:[#allocation3 + $0x548] sm:$0xff] %v931
  %936 = vst [vmem:[#allocation3 + $0x560] sm:$0xff] %v932
  %937 = vst [vmem:[#allocation3 + $0x568] sm:$0xff] %v933
  %938 = vrot.lane.b32.xlu0 %v306, 96
  %v939 = vpop.permute.xlu0 %938
  %940 = vrot.lane.b32.xlu0 %v307, 96
  %v941 = vpop.permute.xlu0 %940
  %942 = vrot.lane.b32.xlu0 %v308, 96
  %v943 = vpop.permute.xlu0 %942
  %944 = vrot.lane.b32.xlu0 %v310, 96
  %v945 = vpop.permute.xlu0 %944
  %946 = vrot.lane.b32.xlu0 %v311, 96
  %v947 = vpop.permute.xlu0 %946
  %948 = vrot.lane.b32.xlu0 %v312, 96
  %v949 = vpop.permute.xlu0 %948
  %vm950 = vcmask 785408
  %v951 = vsel %vm950, %v939, %v941
  %v952 = vsel %vm950, %v941, %v943
  %v953 = vsel %vm950, %v945, %v947
  %v954 = vsel %vm950, %v947, %v949
  %959 = vst [vmem:[#allocation3 + $0x580] sm:$0xff] %v951
  %960 = vst [vmem:[#allocation3 + $0x588] sm:$0xff] %v952
  %961 = vst [vmem:[#allocation3 + $0x5a0] sm:$0xff] %v953
  %962 = vst [vmem:[#allocation3 + $0x5a8] sm:$0xff] %v954
  %963 = vrot.lane.b32.xlu0 %v306, 95
  %v964 = vpop.permute.xlu0 %963
  %965 = vrot.lane.b32.xlu0 %v307, 95
  %v966 = vpop.permute.xlu0 %965
  %967 = vrot.lane.b32.xlu0 %v308, 95
  %v968 = vpop.permute.xlu0 %967
  %969 = vrot.lane.b32.xlu0 %v310, 95
  %v970 = vpop.permute.xlu0 %969
  %971 = vrot.lane.b32.xlu0 %v311, 95
  %v972 = vpop.permute.xlu0 %971
  %973 = vrot.lane.b32.xlu0 %v312, 95
  %v974 = vpop.permute.xlu0 %973
  %vm975 = vcmask 777216
  %v976 = vsel %vm975, %v964, %v966
  %v977 = vsel %vm975, %v966, %v968
  %v978 = vsel %vm975, %v970, %v972
  %v979 = vsel %vm975, %v972, %v974
  %v984 = vsel %vm412, %v976, 0.0
  %v985 = vsel %vm413, %v977, 0.0
  %v986 = vsel %vm412, %v978, 0.0
  %v987 = vsel %vm413, %v979, 0.0
  %988 = vst [vmem:[#allocation3 + $0x5c0] sm:$0xff] %v984
  %989 = vst [vmem:[#allocation3 + $0x5c8] sm:$0xff] %v985
  %990 = vst [vmem:[#allocation3 + $0x5e0] sm:$0xff] %v986
  %991 = vst [vmem:[#allocation3 + $0x5e8] sm:$0xff] %v987
  %992 = vrot.lane.b32.xlu0 %v306, 94
  %v993 = vpop.permute.xlu0 %992
  %994 = vrot.lane.b32.xlu0 %v307, 94
  %v995 = vpop.permute.xlu0 %994
  %996 = vrot.lane.b32.xlu0 %v308, 94
  %v997 = vpop.permute.xlu0 %996
  %998 = vrot.lane.b32.xlu0 %v310, 94
  %v999 = vpop.permute.xlu0 %998
  %1000 = vrot.lane.b32.xlu0 %v311, 94
  %v1001 = vpop.permute.xlu0 %1000
  %1002 = vrot.lane.b32.xlu0 %v312, 94
  %v1003 = vpop.permute.xlu0 %1002
  %vm1004 = vcmask 769024
  %v1005 = vsel %vm1004, %v993, %v995
  %v1006 = vsel %vm1004, %v995, %v997
  %v1007 = vsel %vm1004, %v999, %v1001
  %v1008 = vsel %vm1004, %v1001, %v1003
  %v1013 = vsel %vm445, %v1005, 0.0
  %v1014 = vsel %vm446, %v1006, 0.0
  %v1015 = vsel %vm445, %v1007, 0.0
  %v1016 = vsel %vm446, %v1008, 0.0
  %1017 = vst [vmem:[#allocation3 + $0x600] sm:$0xff] %v1013
  %1018 = vst [vmem:[#allocation3 + $0x608] sm:$0xff] %v1014
  %1019 = vst [vmem:[#allocation3 + $0x620] sm:$0xff] %v1015
  %1020 = vst [vmem:[#allocation3 + $0x628] sm:$0xff] %v1016
  %s1021 = scalar_lea.vmem %s0, 32
  %v1022 = vld [vmem:[%s1021] sm:$0xff]
  %v1023 = vld [vmem:[%s1021 + $0x8] sm:$0xff]
  %v1024 = vld [vmem:[%s1021 + $0x10] sm:$0x3]
  %v1025 = vld [vmem:[%s1021 + $0x18] sm:$0x3]
  %1026 = vst [vmem:[#allocation2 + $0x8] sm:$0xff] %v1022
  %1027 = vst [vmem:[#allocation2 + $0x10] sm:$0xff] %v1023
  %1028 = vst [vmem:[#allocation2 + $0x28] sm:$0x3] %v1024
  %1029 = vst [vmem:[#allocation2 + $0x30] sm:$0x3] %v1025
  %v1030 = vld [vmem:[#allocation2] sm:$0xff]
  %v1031 = vld [vmem:[#allocation2 + $0x8] sm:$0xff]
  %v1032 = vld [vmem:[#allocation2 + $0x10] sm:$0xff]
  %v1033 = vld [vmem:[#allocation2 + $0x18] sm:$0xff]
  %v1034 = vld [vmem:[#allocation2 + $0x20] sm:$0xff]
  %v1035 = vld [vmem:[#allocation2 + $0x28] sm:$0xff]
  %v1036 = vld [vmem:[#allocation2 + $0x30] sm:$0xff]
  %v1037 = vld [vmem:[#allocation2 + $0x38] sm:$0xff]
  %1044 = vrot.lane.b32.xlu0 %v1030, 34
  %v1045 = vpop.permute.xlu0 %1044
  %1046 = vrot.lane.b32.xlu0 %v1031, 34
  %v1047 = vpop.permute.xlu0 %1046
  %1048 = vrot.lane.b32.xlu0 %v1032, 34
  %v1049 = vpop.permute.xlu0 %1048
  %1050 = vrot.lane.b32.xlu0 %v1034, 34
  %v1051 = vpop.permute.xlu0 %1050
  %1052 = vrot.lane.b32.xlu0 %v1035, 34
  %v1053 = vpop.permute.xlu0 %1052
  %1054 = vrot.lane.b32.xlu0 %v1036, 34
  %v1055 = vpop.permute.xlu0 %1054
  %v1056 = vsel %vm335, %v1045, %v1047
  %v1057 = vsel %vm335, %v1047, %v1049
  %v1058 = vsel %vm335, %v1051, %v1053
  %v1059 = vsel %vm335, %v1053, %v1055
  %v1064 = vsel %vm315, %v1056, 0.0
  %v1065 = vsel %vm316, %v1057, 0.0
  %v1066 = vsel %vm315, %v1058, 0.0
  %v1067 = vsel %vm316, %v1059, 0.0
  %1068 = vst [vmem:[#allocation3 + $0x10] sm:$0xff] %v1064
  %1069 = vst [vmem:[#allocation3 + $0x18] sm:$0xff] %v1065
  %1070 = vst [vmem:[#allocation3 + $0x30] sm:$0xff] %v1066
  %1071 = vst [vmem:[#allocation3 + $0x38] sm:$0xff] %v1067
  %1072 = vrot.lane.b32.xlu0 %v1030, 33
  %v1073 = vpop.permute.xlu0 %1072
  %1074 = vrot.lane.b32.xlu0 %v1031, 33
  %v1075 = vpop.permute.xlu0 %1074
  %1076 = vrot.lane.b32.xlu0 %v1032, 33
  %v1077 = vpop.permute.xlu0 %1076
  %1078 = vrot.lane.b32.xlu0 %v1034, 33
  %v1079 = vpop.permute.xlu0 %1078
  %1080 = vrot.lane.b32.xlu0 %v1035, 33
  %v1081 = vpop.permute.xlu0 %1080
  %1082 = vrot.lane.b32.xlu0 %v1036, 33
  %v1083 = vpop.permute.xlu0 %1082
  %v1084 = vsel %vm368, %v1073, %v1075
  %v1085 = vsel %vm368, %v1075, %v1077
  %v1086 = vsel %vm368, %v1079, %v1081
  %v1087 = vsel %vm368, %v1081, %v1083
  %v1092 = vsel %vm354, %v1084, 0.0
  %v1093 = vsel %vm355, %v1085, 0.0
  %v1094 = vsel %vm354, %v1086, 0.0
  %v1095 = vsel %vm355, %v1087, 0.0
  %1096 = vst [vmem:[#allocation3 + $0x50] sm:$0xff] %v1092
  %1097 = vst [vmem:[#allocation3 + $0x58] sm:$0xff] %v1093
  %1098 = vst [vmem:[#allocation3 + $0x70] sm:$0xff] %v1094
  %1099 = vst [vmem:[#allocation3 + $0x78] sm:$0xff] %v1095
  %1100 = vrot.lane.b32.xlu0 %v1030, 32
  %v1101 = vpop.permute.xlu0 %1100
  %1102 = vrot.lane.b32.xlu0 %v1031, 32
  %v1103 = vpop.permute.xlu0 %1102
  %1104 = vrot.lane.b32.xlu0 %v1032, 32
  %v1105 = vpop.permute.xlu0 %1104
  %1106 = vrot.lane.b32.xlu0 %v1034, 32
  %v1107 = vpop.permute.xlu0 %1106
  %1108 = vrot.lane.b32.xlu0 %v1035, 32
  %v1109 = vpop.permute.xlu0 %1108
  %1110 = vrot.lane.b32.xlu0 %v1036, 32
  %v1111 = vpop.permute.xlu0 %1110
  %v1112 = vsel %vm397, %v1101, %v1103
  %v1113 = vsel %vm397, %v1103, %v1105
  %v1114 = vsel %vm397, %v1107, %v1109
  %v1115 = vsel %vm397, %v1109, %v1111
  %1120 = vst [vmem:[#allocation3 + $0x90] sm:$0xff] %v1112
  %1121 = vst [vmem:[#allocation3 + $0x98] sm:$0xff] %v1113
  %1122 = vst [vmem:[#allocation3 + $0xb0] sm:$0xff] %v1114
  %1123 = vst [vmem:[#allocation3 + $0xb8] sm:$0xff] %v1115
  %1124 = vrot.lane.b32.xlu0 %v1030, 31
  %v1125 = vpop.permute.xlu0 %1124
  %1126 = vrot.lane.b32.xlu0 %v1031, 31
  %v1127 = vpop.permute.xlu0 %1126
  %1128 = vrot.lane.b32.xlu0 %v1032, 31
  %v1129 = vpop.permute.xlu0 %1128
  %1130 = vrot.lane.b32.xlu0 %v1034, 31
  %v1131 = vpop.permute.xlu0 %1130
  %1132 = vrot.lane.b32.xlu0 %v1035, 31
  %v1133 = vpop.permute.xlu0 %1132
  %1134 = vrot.lane.b32.xlu0 %v1036, 31
  %v1135 = vpop.permute.xlu0 %1134
  %v1136 = vsel %vm426, %v1125, %v1127
  %v1137 = vsel %vm426, %v1127, %v1129
  %v1138 = vsel %vm426, %v1131, %v1133
  %v1139 = vsel %vm426, %v1133, %v1135
  %v1144 = vsel %vm412, %v1136, 0.0
  %v1145 = vsel %vm413, %v1137, 0.0
  %v1146 = vsel %vm412, %v1138, 0.0
  %v1147 = vsel %vm413, %v1139, 0.0
  %1148 = vst [vmem:[#allocation3 + $0xd0] sm:$0xff] %v1144
  %1149 = vst [vmem:[#allocation3 + $0xd8] sm:$0xff] %v1145
  %1150 = vst [vmem:[#allocation3 + $0xf0] sm:$0xff] %v1146
  %1151 = vst [vmem:[#allocation3 + $0xf8] sm:$0xff] %v1147
  %1152 = vrot.lane.b32.xlu0 %v1030, 30
  %v1153 = vpop.permute.xlu0 %1152
  %1154 = vrot.lane.b32.xlu0 %v1031, 30
  %v1155 = vpop.permute.xlu0 %1154
  %1156 = vrot.lane.b32.xlu0 %v1032, 30
  %v1157 = vpop.permute.xlu0 %1156
  %1158 = vrot.lane.b32.xlu0 %v1034, 30
  %v1159 = vpop.permute.xlu0 %1158
  %1160 = vrot.lane.b32.xlu0 %v1035, 30
  %v1161 = vpop.permute.xlu0 %1160
  %1162 = vrot.lane.b32.xlu0 %v1036, 30
  %v1163 = vpop.permute.xlu0 %1162
  %v1164 = vsel %vm459, %v1153, %v1155
  %v1165 = vsel %vm459, %v1155, %v1157
  %v1166 = vsel %vm459, %v1159, %v1161
  %v1167 = vsel %vm459, %v1161, %v1163
  %v1172 = vsel %vm445, %v1164, 0.0
  %v1173 = vsel %vm446, %v1165, 0.0
  %v1174 = vsel %vm445, %v1166, 0.0
  %v1175 = vsel %vm446, %v1167, 0.0
  %1176 = vst [vmem:[#allocation3 + $0x110] sm:$0xff] %v1172
  %1177 = vst [vmem:[#allocation3 + $0x118] sm:$0xff] %v1173
  %1178 = vst [vmem:[#allocation3 + $0x130] sm:$0xff] %v1174
  %1179 = vst [vmem:[#allocation3 + $0x138] sm:$0xff] %v1175
  %1180 = vrot.lane.b32.xlu0 %v1030, 18
  %v1181 = vpop.permute.xlu0 %1180
  %1182 = vrot.lane.b32.xlu0 %v1031, 18
  %v1183 = vpop.permute.xlu0 %1182
  %1184 = vrot.lane.b32.xlu0 %v1032, 18
  %v1185 = vpop.permute.xlu0 %1184
  %1186 = vrot.lane.b32.xlu0 %v1034, 18
  %v1187 = vpop.permute.xlu0 %1186
  %1188 = vrot.lane.b32.xlu0 %v1035, 18
  %v1189 = vpop.permute.xlu0 %1188
  %1190 = vrot.lane.b32.xlu0 %v1036, 18
  %v1191 = vpop.permute.xlu0 %1190
  %v1192 = vsel %vm488, %v1181, %v1183
  %v1193 = vsel %vm488, %v1183, %v1185
  %v1194 = vsel %vm488, %v1187, %v1189
  %v1195 = vsel %vm488, %v1189, %v1191
  %v1200 = vsel %vm315, %v1192, 0.0
  %v1201 = vsel %vm316, %v1193, 0.0
  %v1202 = vsel %vm315, %v1194, 0.0
  %v1203 = vsel %vm316, %v1195, 0.0
  %1204 = vst [vmem:[#allocation3 + $0x150] sm:$0xff] %v1200
  %1205 = vst [vmem:[#allocation3 + $0x158] sm:$0xff] %v1201
  %1206 = vst [vmem:[#allocation3 + $0x170] sm:$0xff] %v1202
  %1207 = vst [vmem:[#allocation3 + $0x178] sm:$0xff] %v1203
  %1208 = vrot.lane.b32.xlu0 %v1030, 17
  %v1209 = vpop.permute.xlu0 %1208
  %1210 = vrot.lane.b32.xlu0 %v1031, 17
  %v1211 = vpop.permute.xlu0 %1210
  %1212 = vrot.lane.b32.xlu0 %v1032, 17
  %v1213 = vpop.permute.xlu0 %1212
  %1214 = vrot.lane.b32.xlu0 %v1034, 17
  %v1215 = vpop.permute.xlu0 %1214
  %1216 = vrot.lane.b32.xlu0 %v1035, 17
  %v1217 = vpop.permute.xlu0 %1216
  %1218 = vrot.lane.b32.xlu0 %v1036, 17
  %v1219 = vpop.permute.xlu0 %1218
  %v1220 = vsel %vm517, %v1209, %v1211
  %v1221 = vsel %vm517, %v1211, %v1213
  %v1222 = vsel %vm517, %v1215, %v1217
  %v1223 = vsel %vm517, %v1217, %v1219
  %v1228 = vsel %vm354, %v1220, 0.0
  %v1229 = vsel %vm355, %v1221, 0.0
  %v1230 = vsel %vm354, %v1222, 0.0
  %v1231 = vsel %vm355, %v1223, 0.0
  %1232 = vst [vmem:[#allocation3 + $0x190] sm:$0xff] %v1228
  %1233 = vst [vmem:[#allocation3 + $0x198] sm:$0xff] %v1229
  %1234 = vst [vmem:[#allocation3 + $0x1b0] sm:$0xff] %v1230
  %1235 = vst [vmem:[#allocation3 + $0x1b8] sm:$0xff] %v1231
  %1236 = vrot.lane.b32.xlu0 %v1030, 16
  %v1237 = vpop.permute.xlu0 %1236
  %1238 = vrot.lane.b32.xlu0 %v1031, 16
  %v1239 = vpop.permute.xlu0 %1238
  %1240 = vrot.lane.b32.xlu0 %v1032, 16
  %v1241 = vpop.permute.xlu0 %1240
  %1242 = vrot.lane.b32.xlu0 %v1034, 16
  %v1243 = vpop.permute.xlu0 %1242
  %1244 = vrot.lane.b32.xlu0 %v1035, 16
  %v1245 = vpop.permute.xlu0 %1244
  %1246 = vrot.lane.b32.xlu0 %v1036, 16
  %v1247 = vpop.permute.xlu0 %1246
  %v1248 = vsel %vm546, %v1237, %v1239
  %v1249 = vsel %vm546, %v1239, %v1241
  %v1250 = vsel %vm546, %v1243, %v1245
  %v1251 = vsel %vm546, %v1245, %v1247
  %1256 = vst [vmem:[#allocation3 + $0x1d0] sm:$0xff] %v1248
  %1257 = vst [vmem:[#allocation3 + $0x1d8] sm:$0xff] %v1249
  %1258 = vst [vmem:[#allocation3 + $0x1f0] sm:$0xff] %v1250
  %1259 = vst [vmem:[#allocation3 + $0x1f8] sm:$0xff] %v1251
  %1260 = vrot.lane.b32.xlu0 %v1030, 15
  %v1261 = vpop.permute.xlu0 %1260
  %1262 = vrot.lane.b32.xlu0 %v1031, 15
  %v1263 = vpop.permute.xlu0 %1262
  %1264 = vrot.lane.b32.xlu0 %v1032, 15
  %v1265 = vpop.permute.xlu0 %1264
  %1266 = vrot.lane.b32.xlu0 %v1034, 15
  %v1267 = vpop.permute.xlu0 %1266
  %1268 = vrot.lane.b32.xlu0 %v1035, 15
  %v1269 = vpop.permute.xlu0 %1268
  %1270 = vrot.lane.b32.xlu0 %v1036, 15
  %v1271 = vpop.permute.xlu0 %1270
  %v1272 = vsel %vm571, %v1261, %v1263
  %v1273 = vsel %vm571, %v1263, %v1265
  %v1274 = vsel %vm571, %v1267, %v1269
  %v1275 = vsel %vm571, %v1269, %v1271
  %v1280 = vsel %vm412, %v1272, 0.0
  %v1281 = vsel %vm413, %v1273, 0.0
  %v1282 = vsel %vm412, %v1274, 0.0
  %v1283 = vsel %vm413, %v1275, 0.0
  %1284 = vst [vmem:[#allocation3 + $0x210] sm:$0xff] %v1280
  %1285 = vst [vmem:[#allocation3 + $0x218] sm:$0xff] %v1281
  %1286 = vst [vmem:[#allocation3 + $0x230] sm:$0xff] %v1282
  %1287 = vst [vmem:[#allocation3 + $0x238] sm:$0xff] %v1283
  %1288 = vrot.lane.b32.xlu0 %v1030, 14
  %v1289 = vpop.permute.xlu0 %1288
  %1290 = vrot.lane.b32.xlu0 %v1031, 14
  %v1291 = vpop.permute.xlu0 %1290
  %1292 = vrot.lane.b32.xlu0 %v1032, 14
  %v1293 = vpop.permute.xlu0 %1292
  %1294 = vrot.lane.b32.xlu0 %v1034, 14
  %v1295 = vpop.permute.xlu0 %1294
  %1296 = vrot.lane.b32.xlu0 %v1035, 14
  %v1297 = vpop.permute.xlu0 %1296
  %1298 = vrot.lane.b32.xlu0 %v1036, 14
  %v1299 = vpop.permute.xlu0 %1298
  %v1300 = vsel %vm600, %v1289, %v1291
  %v1301 = vsel %vm600, %v1291, %v1293
  %v1302 = vsel %vm600, %v1295, %v1297
  %v1303 = vsel %vm600, %v1297, %v1299
  %v1308 = vsel %vm445, %v1300, 0.0
  %v1309 = vsel %vm446, %v1301, 0.0
  %v1310 = vsel %vm445, %v1302, 0.0
  %v1311 = vsel %vm446, %v1303, 0.0
  %1312 = vst [vmem:[#allocation3 + $0x250] sm:$0xff] %v1308
  %1313 = vst [vmem:[#allocation3 + $0x258] sm:$0xff] %v1309
  %1314 = vst [vmem:[#allocation3 + $0x270] sm:$0xff] %v1310
  %1315 = vst [vmem:[#allocation3 + $0x278] sm:$0xff] %v1311
  %1316 = vrot.lane.b32.xlu0 %v1030, 2
  %v1317 = vpop.permute.xlu0 %1316
  %1318 = vrot.lane.b32.xlu0 %v1031, 2
  %v1319 = vpop.permute.xlu0 %1318
  %1320 = vrot.lane.b32.xlu0 %v1032, 2
  %v1321 = vpop.permute.xlu0 %1320
  %1322 = vrot.lane.b32.xlu0 %v1034, 2
  %v1323 = vpop.permute.xlu0 %1322
  %1324 = vrot.lane.b32.xlu0 %v1035, 2
  %v1325 = vpop.permute.xlu0 %1324
  %1326 = vrot.lane.b32.xlu0 %v1036, 2
  %v1327 = vpop.permute.xlu0 %1326
  %v1328 = vsel %vm629, %v1317, %v1319
  %v1329 = vsel %vm629, %v1319, %v1321
  %v1330 = vsel %vm629, %v1323, %v1325
  %v1331 = vsel %vm629, %v1325, %v1327
  %v1336 = vsel %vm315, %v1328, 0.0
  %v1337 = vsel %vm316, %v1329, 0.0
  %v1338 = vsel %vm315, %v1330, 0.0
  %v1339 = vsel %vm316, %v1331, 0.0
  %1340 = vst [vmem:[#allocation3 + $0x290] sm:$0xff] %v1336
  %1341 = vst [vmem:[#allocation3 + $0x298] sm:$0xff] %v1337
  %1342 = vst [vmem:[#allocation3 + $0x2b0] sm:$0xff] %v1338
  %1343 = vst [vmem:[#allocation3 + $0x2b8] sm:$0xff] %v1339
  %1344 = vrot.lane.b32.xlu0 %v1030, 1
  %v1345 = vpop.permute.xlu0 %1344
  %1346 = vrot.lane.b32.xlu0 %v1031, 1
  %v1347 = vpop.permute.xlu0 %1346
  %1348 = vrot.lane.b32.xlu0 %v1032, 1
  %v1349 = vpop.permute.xlu0 %1348
  %1350 = vrot.lane.b32.xlu0 %v1034, 1
  %v1351 = vpop.permute.xlu0 %1350
  %1352 = vrot.lane.b32.xlu0 %v1035, 1
  %v1353 = vpop.permute.xlu0 %1352
  %1354 = vrot.lane.b32.xlu0 %v1036, 1
  %v1355 = vpop.permute.xlu0 %1354
  %v1356 = vsel %vm658, %v1345, %v1347
  %v1357 = vsel %vm658, %v1347, %v1349
  %v1358 = vsel %vm658, %v1351, %v1353
  %v1359 = vsel %vm658, %v1353, %v1355
  %v1364 = vsel %vm354, %v1356, 0.0
  %v1365 = vsel %vm355, %v1357, 0.0
  %v1366 = vsel %vm354, %v1358, 0.0
  %v1367 = vsel %vm355, %v1359, 0.0
  %1368 = vst [vmem:[#allocation3 + $0x2d0] sm:$0xff] %v1364
  %1369 = vst [vmem:[#allocation3 + $0x2d8] sm:$0xff] %v1365
  %1370 = vst [vmem:[#allocation3 + $0x2f0] sm:$0xff] %v1366
  %1371 = vst [vmem:[#allocation3 + $0x2f8] sm:$0xff] %v1367
  %1372 = vst [vmem:[#allocation3 + $0x310] sm:$0xff] %v1031
  %1373 = vst [vmem:[#allocation3 + $0x318] sm:$0xff] %v1032
  %1374 = vst [vmem:[#allocation3 + $0x330] sm:$0xff] %v1035
  %1375 = vst [vmem:[#allocation3 + $0x338] sm:$0xff] %v1036
  %1378 = vrot.lane.b32.xlu0 %v1031, 127
  %v1379 = vpop.permute.xlu0 %1378
  %1380 = vrot.lane.b32.xlu0 %v1032, 127
  %v1381 = vpop.permute.xlu0 %1380
  %1382 = vrot.lane.b32.xlu0 %v1033, 127
  %v1383 = vpop.permute.xlu0 %1382
  %1384 = vrot.lane.b32.xlu0 %v1035, 127
  %v1385 = vpop.permute.xlu0 %1384
  %1386 = vrot.lane.b32.xlu0 %v1036, 127
  %v1387 = vpop.permute.xlu0 %1386
  %1388 = vrot.lane.b32.xlu0 %v1037, 127
  %v1389 = vpop.permute.xlu0 %1388
  %v1390 = vsel %vm693, %v1379, %v1381
  %v1391 = vsel %vm693, %v1381, %v1383
  %v1392 = vsel %vm693, %v1385, %v1387
  %v1393 = vsel %vm693, %v1387, %v1389
  %v1398 = vsel %vm412, %v1390, 0.0
  %v1399 = vsel %vm413, %v1391, 0.0
  %v1400 = vsel %vm412, %v1392, 0.0
  %v1401 = vsel %vm413, %v1393, 0.0
  %1402 = vst [vmem:[#allocation3 + $0x350] sm:$0xff] %v1398
  %1403 = vst [vmem:[#allocation3 + $0x358] sm:$0xff] %v1399
  %1404 = vst [vmem:[#allocation3 + $0x370] sm:$0xff] %v1400
  %1405 = vst [vmem:[#allocation3 + $0x378] sm:$0xff] %v1401
  %1406 = vrot.lane.b32.xlu0 %v1031, 126
  %v1407 = vpop.permute.xlu0 %1406
  %1408 = vrot.lane.b32.xlu0 %v1032, 126
  %v1409 = vpop.permute.xlu0 %1408
  %1410 = vrot.lane.b32.xlu0 %v1033, 126
  %v1411 = vpop.permute.xlu0 %1410
  %1412 = vrot.lane.b32.xlu0 %v1035, 126
  %v1413 = vpop.permute.xlu0 %1412
  %1414 = vrot.lane.b32.xlu0 %v1036, 126
  %v1415 = vpop.permute.xlu0 %1414
  %1416 = vrot.lane.b32.xlu0 %v1037, 126
  %v1417 = vpop.permute.xlu0 %1416
  %v1418 = vsel %vm722, %v1407, %v1409
  %v1419 = vsel %vm722, %v1409, %v1411
  %v1420 = vsel %vm722, %v1413, %v1415
  %v1421 = vsel %vm722, %v1415, %v1417
  %v1426 = vsel %vm445, %v1418, 0.0
  %v1427 = vsel %vm446, %v1419, 0.0
  %v1428 = vsel %vm445, %v1420, 0.0
  %v1429 = vsel %vm446, %v1421, 0.0
  %1430 = vst [vmem:[#allocation3 + $0x390] sm:$0xff] %v1426
  %1431 = vst [vmem:[#allocation3 + $0x398] sm:$0xff] %v1427
  %1432 = vst [vmem:[#allocation3 + $0x3b0] sm:$0xff] %v1428
  %1433 = vst [vmem:[#allocation3 + $0x3b8] sm:$0xff] %v1429
  %1434 = vrot.lane.b32.xlu0 %v1031, 114
  %v1435 = vpop.permute.xlu0 %1434
  %1436 = vrot.lane.b32.xlu0 %v1032, 114
  %v1437 = vpop.permute.xlu0 %1436
  %1438 = vrot.lane.b32.xlu0 %v1033, 114
  %v1439 = vpop.permute.xlu0 %1438
  %1440 = vrot.lane.b32.xlu0 %v1035, 114
  %v1441 = vpop.permute.xlu0 %1440
  %1442 = vrot.lane.b32.xlu0 %v1036, 114
  %v1443 = vpop.permute.xlu0 %1442
  %1444 = vrot.lane.b32.xlu0 %v1037, 114
  %v1445 = vpop.permute.xlu0 %1444
  %v1446 = vsel %vm751, %v1435, %v1437
  %v1447 = vsel %vm751, %v1437, %v1439
  %v1448 = vsel %vm751, %v1441, %v1443
  %v1449 = vsel %vm751, %v1443, %v1445
  %v1454 = vsel %vm315, %v1446, 0.0
  %v1455 = vsel %vm316, %v1447, 0.0
  %v1456 = vsel %vm315, %v1448, 0.0
  %v1457 = vsel %vm316, %v1449, 0.0
  %1458 = vst [vmem:[#allocation3 + $0x3d0] sm:$0xff] %v1454
  %1459 = vst [vmem:[#allocation3 + $0x3d8] sm:$0xff] %v1455
  %1460 = vst [vmem:[#allocation3 + $0x3f0] sm:$0xff] %v1456
  %1461 = vst [vmem:[#allocation3 + $0x3f8] sm:$0xff] %v1457
  %1462 = vrot.lane.b32.xlu0 %v1031, 113
  %v1463 = vpop.permute.xlu0 %1462
  %1464 = vrot.lane.b32.xlu0 %v1032, 113
  %v1465 = vpop.permute.xlu0 %1464
  %1466 = vrot.lane.b32.xlu0 %v1033, 113
  %v1467 = vpop.permute.xlu0 %1466
  %1468 = vrot.lane.b32.xlu0 %v1035, 113
  %v1469 = vpop.permute.xlu0 %1468
  %1470 = vrot.lane.b32.xlu0 %v1036, 113
  %v1471 = vpop.permute.xlu0 %1470
  %1472 = vrot.lane.b32.xlu0 %v1037, 113
  %v1473 = vpop.permute.xlu0 %1472
  %v1474 = vsel %vm780, %v1463, %v1465
  %v1475 = vsel %vm780, %v1465, %v1467
  %v1476 = vsel %vm780, %v1469, %v1471
  %v1477 = vsel %vm780, %v1471, %v1473
  %v1482 = vsel %vm354, %v1474, 0.0
  %v1483 = vsel %vm355, %v1475, 0.0
  %v1484 = vsel %vm354, %v1476, 0.0
  %v1485 = vsel %vm355, %v1477, 0.0
  %1486 = vst [vmem:[#allocation3 + $0x410] sm:$0xff] %v1482
  %1487 = vst [vmem:[#allocation3 + $0x418] sm:$0xff] %v1483
  %1488 = vst [vmem:[#allocation3 + $0x430] sm:$0xff] %v1484
  %1489 = vst [vmem:[#allocation3 + $0x438] sm:$0xff] %v1485
  %1490 = vrot.lane.b32.xlu0 %v1031, 112
  %v1491 = vpop.permute.xlu0 %1490
  %1492 = vrot.lane.b32.xlu0 %v1032, 112
  %v1493 = vpop.permute.xlu0 %1492
  %1494 = vrot.lane.b32.xlu0 %v1033, 112
  %v1495 = vpop.permute.xlu0 %1494
  %1496 = vrot.lane.b32.xlu0 %v1035, 112
  %v1497 = vpop.permute.xlu0 %1496
  %1498 = vrot.lane.b32.xlu0 %v1036, 112
  %v1499 = vpop.permute.xlu0 %1498
  %1500 = vrot.lane.b32.xlu0 %v1037, 112
  %v1501 = vpop.permute.xlu0 %1500
  %v1502 = vsel %vm809, %v1491, %v1493
  %v1503 = vsel %vm809, %v1493, %v1495
  %v1504 = vsel %vm809, %v1497, %v1499
  %v1505 = vsel %vm809, %v1499, %v1501
  %1510 = vst [vmem:[#allocation3 + $0x450] sm:$0xff] %v1502
  %1511 = vst [vmem:[#allocation3 + $0x458] sm:$0xff] %v1503
  %1512 = vst [vmem:[#allocation3 + $0x470] sm:$0xff] %v1504
  %1513 = vst [vmem:[#allocation3 + $0x478] sm:$0xff] %v1505
  %1514 = vrot.lane.b32.xlu0 %v1031, 111
  %v1515 = vpop.permute.xlu0 %1514
  %1516 = vrot.lane.b32.xlu0 %v1032, 111
  %v1517 = vpop.permute.xlu0 %1516
  %1518 = vrot.lane.b32.xlu0 %v1033, 111
  %v1519 = vpop.permute.xlu0 %1518
  %1520 = vrot.lane.b32.xlu0 %v1035, 111
  %v1521 = vpop.permute.xlu0 %1520
  %1522 = vrot.lane.b32.xlu0 %v1036, 111
  %v1523 = vpop.permute.xlu0 %1522
  %1524 = vrot.lane.b32.xlu0 %v1037, 111
  %v1525 = vpop.permute.xlu0 %1524
  %v1526 = vsel %vm834, %v1515, %v1517
  %v1527 = vsel %vm834, %v1517, %v1519
  %v1528 = vsel %vm834, %v1521, %v1523
  %v1529 = vsel %vm834, %v1523, %v1525
  %v1534 = vsel %vm412, %v1526, 0.0
  %v1535 = vsel %vm413, %v1527, 0.0
  %v1536 = vsel %vm412, %v1528, 0.0
  %v1537 = vsel %vm413, %v1529, 0.0
  %1538 = vst [vmem:[#allocation3 + $0x490] sm:$0xff] %v1534
  %1539 = vst [vmem:[#allocation3 + $0x498] sm:$0xff] %v1535
  %1540 = vst [vmem:[#allocation3 + $0x4b0] sm:$0xff] %v1536
  %1541 = vst [vmem:[#allocation3 + $0x4b8] sm:$0xff] %v1537
  %1542 = vrot.lane.b32.xlu0 %v1031, 110
  %v1543 = vpop.permute.xlu0 %1542
  %1544 = vrot.lane.b32.xlu0 %v1032, 110
  %v1545 = vpop.permute.xlu0 %1544
  %1546 = vrot.lane.b32.xlu0 %v1033, 110
  %v1547 = vpop.permute.xlu0 %1546
  %1548 = vrot.lane.b32.xlu0 %v1035, 110
  %v1549 = vpop.permute.xlu0 %1548
  %1550 = vrot.lane.b32.xlu0 %v1036, 110
  %v1551 = vpop.permute.xlu0 %1550
  %1552 = vrot.lane.b32.xlu0 %v1037, 110
  %v1553 = vpop.permute.xlu0 %1552
  %v1554 = vsel %vm863, %v1543, %v1545
  %v1555 = vsel %vm863, %v1545, %v1547
  %v1556 = vsel %vm863, %v1549, %v1551
  %v1557 = vsel %vm863, %v1551, %v1553
  %v1562 = vsel %vm445, %v1554, 0.0
  %v1563 = vsel %vm446, %v1555, 0.0
  %v1564 = vsel %vm445, %v1556, 0.0
  %v1565 = vsel %vm446, %v1557, 0.0
  %1566 = vst [vmem:[#allocation3 + $0x4d0] sm:$0xff] %v1562
  %1567 = vst [vmem:[#allocation3 + $0x4d8] sm:$0xff] %v1563
  %1568 = vst [vmem:[#allocation3 + $0x4f0] sm:$0xff] %v1564
  %1569 = vst [vmem:[#allocation3 + $0x4f8] sm:$0xff] %v1565
  %1570 = vrot.lane.b32.xlu0 %v1031, 98
  %v1571 = vpop.permute.xlu0 %1570
  %1572 = vrot.lane.b32.xlu0 %v1032, 98
  %v1573 = vpop.permute.xlu0 %1572
  %1574 = vrot.lane.b32.xlu0 %v1033, 98
  %v1575 = vpop.permute.xlu0 %1574
  %1576 = vrot.lane.b32.xlu0 %v1035, 98
  %v1577 = vpop.permute.xlu0 %1576
  %1578 = vrot.lane.b32.xlu0 %v1036, 98
  %v1579 = vpop.permute.xlu0 %1578
  %1580 = vrot.lane.b32.xlu0 %v1037, 98
  %v1581 = vpop.permute.xlu0 %1580
  %v1582 = vsel %vm892, %v1571, %v1573
  %v1583 = vsel %vm892, %v1573, %v1575
  %v1584 = vsel %vm892, %v1577, %v1579
  %v1585 = vsel %vm892, %v1579, %v1581
  %v1590 = vsel %vm315, %v1582, 0.0
  %v1591 = vsel %vm316, %v1583, 0.0
  %v1592 = vsel %vm315, %v1584, 0.0
  %v1593 = vsel %vm316, %v1585, 0.0
  %1594 = vst [vmem:[#allocation3 + $0x510] sm:$0xff] %v1590
  %1595 = vst [vmem:[#allocation3 + $0x518] sm:$0xff] %v1591
  %1596 = vst [vmem:[#allocation3 + $0x530] sm:$0xff] %v1592
  %1597 = vst [vmem:[#allocation3 + $0x538] sm:$0xff] %v1593
  %1598 = vrot.lane.b32.xlu0 %v1031, 97
  %v1599 = vpop.permute.xlu0 %1598
  %1600 = vrot.lane.b32.xlu0 %v1032, 97
  %v1601 = vpop.permute.xlu0 %1600
  %1602 = vrot.lane.b32.xlu0 %v1033, 97
  %v1603 = vpop.permute.xlu0 %1602
  %1604 = vrot.lane.b32.xlu0 %v1035, 97
  %v1605 = vpop.permute.xlu0 %1604
  %1606 = vrot.lane.b32.xlu0 %v1036, 97
  %v1607 = vpop.permute.xlu0 %1606
  %1608 = vrot.lane.b32.xlu0 %v1037, 97
  %v1609 = vpop.permute.xlu0 %1608
  %v1610 = vsel %vm921, %v1599, %v1601
  %v1611 = vsel %vm921, %v1601, %v1603
  %v1612 = vsel %vm921, %v1605, %v1607
  %v1613 = vsel %vm921, %v1607, %v1609
  %v1618 = vsel %vm354, %v1610, 0.0
  %v1619 = vsel %vm355, %v1611, 0.0
  %v1620 = vsel %vm354, %v1612, 0.0
  %v1621 = vsel %vm355, %v1613, 0.0
  %1622 = vst [vmem:[#allocation3 + $0x550] sm:$0xff] %v1618
  %1623 = vst [vmem:[#allocation3 + $0x558] sm:$0xff] %v1619
  %1624 = vst [vmem:[#allocation3 + $0x570] sm:$0xff] %v1620
  %1625 = vst [vmem:[#allocation3 + $0x578] sm:$0xff] %v1621
  %1626 = vrot.lane.b32.xlu0 %v1031, 96
  %v1627 = vpop.permute.xlu0 %1626
  %1628 = vrot.lane.b32.xlu0 %v1032, 96
  %v1629 = vpop.permute.xlu0 %1628
  %1630 = vrot.lane.b32.xlu0 %v1033, 96
  %v1631 = vpop.permute.xlu0 %1630
  %1632 = vrot.lane.b32.xlu0 %v1035, 96
  %v1633 = vpop.permute.xlu0 %1632
  %1634 = vrot.lane.b32.xlu0 %v1036, 96
  %v1635 = vpop.permute.xlu0 %1634
  %1636 = vrot.lane.b32.xlu0 %v1037, 96
  %v1637 = vpop.permute.xlu0 %1636
  %v1638 = vsel %vm950, %v1627, %v1629
  %v1639 = vsel %vm950, %v1629, %v1631
  %v1640 = vsel %vm950, %v1633, %v1635
  %v1641 = vsel %vm950, %v1635, %v1637
  %1646 = vst [vmem:[#allocation3 + $0x590] sm:$0xff] %v1638
  %1647 = vst [vmem:[#allocation3 + $0x598] sm:$0xff] %v1639
  %1648 = vst [vmem:[#allocation3 + $0x5b0] sm:$0xff] %v1640
  %1649 = vst [vmem:[#allocation3 + $0x5b8] sm:$0xff] %v1641
  %1650 = vrot.lane.b32.xlu0 %v1031, 95
  %v1651 = vpop.permute.xlu0 %1650
  %1652 = vrot.lane.b32.xlu0 %v1032, 95
  %v1653 = vpop.permute.xlu0 %1652
  %1654 = vrot.lane.b32.xlu0 %v1033, 95
  %v1655 = vpop.permute.xlu0 %1654
  %1656 = vrot.lane.b32.xlu0 %v1035, 95
  %v1657 = vpop.permute.xlu0 %1656
  %1658 = vrot.lane.b32.xlu0 %v1036, 95
  %v1659 = vpop.permute.xlu0 %1658
  %1660 = vrot.lane.b32.xlu0 %v1037, 95
  %v1661 = vpop.permute.xlu0 %1660
  %v1662 = vsel %vm975, %v1651, %v1653
  %v1663 = vsel %vm975, %v1653, %v1655
  %v1664 = vsel %vm975, %v1657, %v1659
  %v1665 = vsel %vm975, %v1659, %v1661
  %v1670 = vsel %vm412, %v1662, 0.0
  %v1671 = vsel %vm413, %v1663, 0.0
  %v1672 = vsel %vm412, %v1664, 0.0
  %v1673 = vsel %vm413, %v1665, 0.0
  %1674 = vst [vmem:[#allocation3 + $0x5d0] sm:$0xff] %v1670
  %1675 = vst [vmem:[#allocation3 + $0x5d8] sm:$0xff] %v1671
  %1676 = vst [vmem:[#allocation3 + $0x5f0] sm:$0xff] %v1672
  %1677 = vst [vmem:[#allocation3 + $0x5f8] sm:$0xff] %v1673
  %1678 = vrot.lane.b32.xlu0 %v1031, 94
  %v1679 = vpop.permute.xlu0 %1678
  %1680 = vrot.lane.b32.xlu0 %v1032, 94
  %v1681 = vpop.permute.xlu0 %1680
  %1682 = vrot.lane.b32.xlu0 %v1033, 94
  %v1683 = vpop.permute.xlu0 %1682
  %1684 = vrot.lane.b32.xlu0 %v1035, 94
  %v1685 = vpop.permute.xlu0 %1684
  %1686 = vrot.lane.b32.xlu0 %v1036, 94
  %v1687 = vpop.permute.xlu0 %1686
  %1688 = vrot.lane.b32.xlu0 %v1037, 94
  %v1689 = vpop.permute.xlu0 %1688
  %v1690 = vsel %vm1004, %v1679, %v1681
  %v1691 = vsel %vm1004, %v1681, %v1683
  %v1692 = vsel %vm1004, %v1685, %v1687
  %v1693 = vsel %vm1004, %v1687, %v1689
  %v1698 = vsel %vm445, %v1690, 0.0
  %v1699 = vsel %vm446, %v1691, 0.0
  %v1700 = vsel %vm445, %v1692, 0.0
  %v1701 = vsel %vm446, %v1693, 0.0
  %1702 = vst [vmem:[#allocation3 + $0x610] sm:$0xff] %v1698
  %1703 = vst [vmem:[#allocation3 + $0x618] sm:$0xff] %v1699
  %1704 = vst [vmem:[#allocation3 + $0x630] sm:$0xff] %v1700
  %1705 = vst [vmem:[#allocation3 + $0x638] sm:$0xff] %v1701
  %v1706 = vld [vmem:[%s1] sm:$0xff]
  %v1707 = vld [vmem:[%s1 + $0x8] sm:$0xff]
  %v1708 = vld [vmem:[%s1 + $0x10] sm:$0xff]
  %v1709 = vld [vmem:[%s1 + $0x18] sm:$0xff]
  %v1710 = vld [vmem:[%s1 + $0x20] sm:$0x3]
  %v1711 = vld [vmem:[%s1 + $0x28] sm:$0x3]
  %v1712 = vld [vmem:[%s1 + $0x30] sm:$0x3]
  %v1713 = vld [vmem:[%s1 + $0x38] sm:$0x3]
  %v1714 = vld [vmem:[#allocation3] sm:$0xff]
  %v1715 = vld [vmem:[#allocation3 + $0x8] sm:$0xff]
  %v1716 = vld [vmem:[#allocation3 + $0x10] sm:$0xff]
  %v1717 = vld [vmem:[#allocation3 + $0x18] sm:$0xff]
  %v1718 = vld [vmem:[#allocation3 + $0x20] sm:$0xff]
  %v1719 = vld [vmem:[#allocation3 + $0x28] sm:$0xff]
  %v1720 = vld [vmem:[#allocation3 + $0x30] sm:$0xff]
  %v1721 = vld [vmem:[#allocation3 + $0x38] sm:$0xff]
  %v1722 = vld [vmem:[#allocation3 + $0x40] sm:$0xff]
  %v1723 = vld [vmem:[#allocation3 + $0x48] sm:$0xff]
  %v1724 = vld [vmem:[#allocation3 + $0x50] sm:$0xff]
  %v1725 = vld [vmem:[#allocation3 + $0x58] sm:$0xff]
  %v1726 = vld [vmem:[#allocation3 + $0x60] sm:$0xff]
  %v1727 = vld [vmem:[#allocation3 + $0x68] sm:$0xff]
  %v1728 = vld [vmem:[#allocation3 + $0x70] sm:$0xff]
  %v1729 = vld [vmem:[#allocation3 + $0x78] sm:$0xff]
  %v1730 = vld [vmem:[#allocation3 + $0x80] sm:$0xff]
  %v1731 = vld [vmem:[#allocation3 + $0x88] sm:$0xff]
  %v1732 = vld [vmem:[#allocation3 + $0x90] sm:$0xff]
  %v1733 = vld [vmem:[#allocation3 + $0x98] sm:$0xff]
  %v1734 = vld [vmem:[#allocation3 + $0xa0] sm:$0xff]
  %v1735 = vld [vmem:[#allocation3 + $0xa8] sm:$0xff]
  %v1736 = vld [vmem:[#allocation3 + $0xb0] sm:$0xff]
  %v1737 = vld [vmem:[#allocation3 + $0xb8] sm:$0xff]
  %v1738 = vld [vmem:[#allocation3 + $0xc0] sm:$0xff]
  %v1739 = vld [vmem:[#allocation3 + $0xc8] sm:$0xff]
  %v1740 = vld [vmem:[#allocation3 + $0xd0] sm:$0xff]
  %v1741 = vld [vmem:[#allocation3 + $0xd8] sm:$0xff]
  %v1742 = vld [vmem:[#allocation3 + $0xe0] sm:$0xff]
  %v1743 = vld [vmem:[#allocation3 + $0xe8] sm:$0xff]
  %v1744 = vld [vmem:[#allocation3 + $0xf0] sm:$0xff]
  %v1745 = vld [vmem:[#allocation3 + $0xf8] sm:$0xff]
  %v1746 = vld [vmem:[#allocation3 + $0x100] sm:$0xff]
  %v1747 = vld [vmem:[#allocation3 + $0x108] sm:$0xff]
  %v1748 = vld [vmem:[#allocation3 + $0x110] sm:$0xff]
  %v1749 = vld [vmem:[#allocation3 + $0x118] sm:$0xff]
  %v1750 = vld [vmem:[#allocation3 + $0x120] sm:$0xff]
  %v1751 = vld [vmem:[#allocation3 + $0x128] sm:$0xff]
  %v1752 = vld [vmem:[#allocation3 + $0x130] sm:$0xff]
  %v1753 = vld [vmem:[#allocation3 + $0x138] sm:$0xff]
  %v1754 = vld [vmem:[#allocation3 + $0x140] sm:$0xff]
  %v1755 = vld [vmem:[#allocation3 + $0x148] sm:$0xff]
  %v1756 = vld [vmem:[#allocation3 + $0x150] sm:$0xff]
  %v1757 = vld [vmem:[#allocation3 + $0x158] sm:$0xff]
  %v1758 = vld [vmem:[#allocation3 + $0x160] sm:$0xff]
  %v1759 = vld [vmem:[#allocation3 + $0x168] sm:$0xff]
  %v1760 = vld [vmem:[#allocation3 + $0x170] sm:$0xff]
  %v1761 = vld [vmem:[#allocation3 + $0x178] sm:$0xff]
  %v1762 = vld [vmem:[#allocation3 + $0x180] sm:$0xff]
  %v1763 = vld [vmem:[#allocation3 + $0x188] sm:$0xff]
  %v1764 = vld [vmem:[#allocation3 + $0x190] sm:$0xff]
  %v1765 = vld [vmem:[#allocation3 + $0x198] sm:$0xff]
  %v1766 = vld [vmem:[#allocation3 + $0x1a0] sm:$0xff]
  %v1767 = vld [vmem:[#allocation3 + $0x1a8] sm:$0xff]
  %v1768 = vld [vmem:[#allocation3 + $0x1b0] sm:$0xff]
  %v1769 = vld [vmem:[#allocation3 + $0x1b8] sm:$0xff]
  %v1770 = vld [vmem:[#allocation3 + $0x1c0] sm:$0xff]
  %v1771 = vld [vmem:[#allocation3 + $0x1c8] sm:$0xff]
  %v1772 = vld [vmem:[#allocation3 + $0x1d0] sm:$0xff]
  %v1773 = vld [vmem:[#allocation3 + $0x1d8] sm:$0xff]
  %v1774 = vld [vmem:[#allocation3 + $0x1e0] sm:$0xff]
  %v1775 = vld [vmem:[#allocation3 + $0x1e8] sm:$0xff]
  %v1776 = vld [vmem:[#allocation3 + $0x1f0] sm:$0xff]
  %v1777 = vld [vmem:[#allocation3 + $0x1f8] sm:$0xff]
  %v1778 = vld [vmem:[#allocation3 + $0x200] sm:$0xff]
  %v1779 = vld [vmem:[#allocation3 + $0x208] sm:$0xff]
  %v1780 = vld [vmem:[#allocation3 + $0x210] sm:$0xff]
  %v1781 = vld [vmem:[#allocation3 + $0x218] sm:$0xff]
  %v1782 = vld [vmem:[#allocation3 + $0x220] sm:$0xff]
  %v1783 = vld [vmem:[#allocation3 + $0x228] sm:$0xff]
  %v1784 = vld [vmem:[#allocation3 + $0x230] sm:$0xff]
  %v1785 = vld [vmem:[#allocation3 + $0x238] sm:$0xff]
  %v1786 = vld [vmem:[#allocation3 + $0x240] sm:$0xff]
  %v1787 = vld [vmem:[#allocation3 + $0x248] sm:$0xff]
  %v1788 = vld [vmem:[#allocation3 + $0x250] sm:$0xff]
  %v1789 = vld [vmem:[#allocation3 + $0x258] sm:$0xff]
  %v1790 = vld [vmem:[#allocation3 + $0x260] sm:$0xff]
  %v1791 = vld [vmem:[#allocation3 + $0x268] sm:$0xff]
  %v1792 = vld [vmem:[#allocation3 + $0x270] sm:$0xff]
  %v1793 = vld [vmem:[#allocation3 + $0x278] sm:$0xff]
  %v1794 = vld [vmem:[#allocation3 + $0x280] sm:$0xff]
  %v1795 = vld [vmem:[#allocation3 + $0x288] sm:$0xff]
  %v1796 = vld [vmem:[#allocation3 + $0x290] sm:$0xff]
  %v1797 = vld [vmem:[#allocation3 + $0x298] sm:$0xff]
  %v1798 = vld [vmem:[#allocation3 + $0x2a0] sm:$0xff]
  %v1799 = vld [vmem:[#allocation3 + $0x2a8] sm:$0xff]
  %v1800 = vld [vmem:[#allocation3 + $0x2b0] sm:$0xff]
  %v1801 = vld [vmem:[#allocation3 + $0x2b8] sm:$0xff]
  %v1802 = vld [vmem:[#allocation3 + $0x2c0] sm:$0xff]
  %v1803 = vld [vmem:[#allocation3 + $0x2c8] sm:$0xff]
  %v1804 = vld [vmem:[#allocation3 + $0x2d0] sm:$0xff]
  %v1805 = vld [vmem:[#allocation3 + $0x2d8] sm:$0xff]
  %v1806 = vld [vmem:[#allocation3 + $0x2e0] sm:$0xff]
  %v1807 = vld [vmem:[#allocation3 + $0x2e8] sm:$0xff]
  %v1808 = vld [vmem:[#allocation3 + $0x2f0] sm:$0xff]
  %v1809 = vld [vmem:[#allocation3 + $0x2f8] sm:$0xff]
  %v1810 = vld [vmem:[#allocation3 + $0x300] sm:$0xff]
  %v1811 = vld [vmem:[#allocation3 + $0x308] sm:$0xff]
  %v1812 = vld [vmem:[#allocation3 + $0x310] sm:$0xff]
  %v1813 = vld [vmem:[#allocation3 + $0x318] sm:$0xff]
  %v1814 = vld [vmem:[#allocation3 + $0x320] sm:$0xff]
  %v1815 = vld [vmem:[#allocation3 + $0x328] sm:$0xff]
  %v1816 = vld [vmem:[#allocation3 + $0x330] sm:$0xff]
  %v1817 = vld [vmem:[#allocation3 + $0x338] sm:$0xff]
  %v1818 = vld [vmem:[#allocation3 + $0x340] sm:$0xff]
  %v1819 = vld [vmem:[#allocation3 + $0x348] sm:$0xff]
  %v1820 = vld [vmem:[#allocation3 + $0x350] sm:$0xff]
  %v1821 = vld [vmem:[#allocation3 + $0x358] sm:$0xff]
  %v1822 = vld [vmem:[#allocation3 + $0x360] sm:$0xff]
  %v1823 = vld [vmem:[#allocation3 + $0x368] sm:$0xff]
  %v1824 = vld [vmem:[#allocation3 + $0x370] sm:$0xff]
  %v1825 = vld [vmem:[#allocation3 + $0x378] sm:$0xff]
  %v1826 = vld [vmem:[#allocation3 + $0x380] sm:$0xff]
  %v1827 = vld [vmem:[#allocation3 + $0x388] sm:$0xff]
  %v1828 = vld [vmem:[#allocation3 + $0x390] sm:$0xff]
  %v1829 = vld [vmem:[#allocation3 + $0x398] sm:$0xff]
  %v1830 = vld [vmem:[#allocation3 + $0x3a0] sm:$0xff]
  %v1831 = vld [vmem:[#allocation3 + $0x3a8] sm:$0xff]
  %v1832 = vld [vmem:[#allocation3 + $0x3b0] sm:$0xff]
  %v1833 = vld [vmem:[#allocation3 + $0x3b8] sm:$0xff]
  %v1834 = vld [vmem:[#allocation3 + $0x3c0] sm:$0xff]
  %v1835 = vld [vmem:[#allocation3 + $0x3c8] sm:$0xff]
  %v1836 = vld [vmem:[#allocation3 + $0x3d0] sm:$0xff]
  %v1837 = vld [vmem:[#allocation3 + $0x3d8] sm:$0xff]
  %v1838 = vld [vmem:[#allocation3 + $0x3e0] sm:$0xff]
  %v1839 = vld [vmem:[#allocation3 + $0x3e8] sm:$0xff]
  %v1840 = vld [vmem:[#allocation3 + $0x3f0] sm:$0xff]
  %v1841 = vld [vmem:[#allocation3 + $0x3f8] sm:$0xff]
  %v1842 = vld [vmem:[#allocation3 + $0x400] sm:$0xff]
  %v1843 = vld [vmem:[#allocation3 + $0x408] sm:$0xff]
  %v1844 = vld [vmem:[#allocation3 + $0x410] sm:$0xff]
  %v1845 = vld [vmem:[#allocation3 + $0x418] sm:$0xff]
  %v1846 = vld [vmem:[#allocation3 + $0x420] sm:$0xff]
  %v1847 = vld [vmem:[#allocation3 + $0x428] sm:$0xff]
  %v1848 = vld [vmem:[#allocation3 + $0x430] sm:$0xff]
  %v1849 = vld [vmem:[#allocation3 + $0x438] sm:$0xff]
  %v1850 = vld [vmem:[#allocation3 + $0x440] sm:$0xff]
  %v1851 = vld [vmem:[#allocation3 + $0x448] sm:$0xff]
  %v1852 = vld [vmem:[#allocation3 + $0x450] sm:$0xff]
  %v1853 = vld [vmem:[#allocation3 + $0x458] sm:$0xff]
  %v1854 = vld [vmem:[#allocation3 + $0x460] sm:$0xff]
  %v1855 = vld [vmem:[#allocation3 + $0x468] sm:$0xff]
  %v1856 = vld [vmem:[#allocation3 + $0x470] sm:$0xff]
  %v1857 = vld [vmem:[#allocation3 + $0x478] sm:$0xff]
  %v1858 = vld [vmem:[#allocation3 + $0x480] sm:$0xff]
  %v1859 = vld [vmem:[#allocation3 + $0x488] sm:$0xff]
  %v1860 = vld [vmem:[#allocation3 + $0x490] sm:$0xff]
  %v1861 = vld [vmem:[#allocation3 + $0x498] sm:$0xff]
  %v1862 = vld [vmem:[#allocation3 + $0x4a0] sm:$0xff]
  %v1863 = vld [vmem:[#allocation3 + $0x4a8] sm:$0xff]
  %v1864 = vld [vmem:[#allocation3 + $0x4b0] sm:$0xff]
  %v1865 = vld [vmem:[#allocation3 + $0x4b8] sm:$0xff]
  %v1866 = vld [vmem:[#allocation3 + $0x4c0] sm:$0xff]
  %v1867 = vld [vmem:[#allocation3 + $0x4c8] sm:$0xff]
  %v1868 = vld [vmem:[#allocation3 + $0x4d0] sm:$0xff]
  %v1869 = vld [vmem:[#allocation3 + $0x4d8] sm:$0xff]
  %v1870 = vld [vmem:[#allocation3 + $0x4e0] sm:$0xff]
  %v1871 = vld [vmem:[#allocation3 + $0x4e8] sm:$0xff]
  %v1872 = vld [vmem:[#allocation3 + $0x4f0] sm:$0xff]
  %v1873 = vld [vmem:[#allocation3 + $0x4f8] sm:$0xff]
  %v1874 = vld [vmem:[#allocation3 + $0x500] sm:$0xff]
  %v1875 = vld [vmem:[#allocation3 + $0x508] sm:$0xff]
  %v1876 = vld [vmem:[#allocation3 + $0x510] sm:$0xff]
  %v1877 = vld [vmem:[#allocation3 + $0x518] sm:$0xff]
  %v1878 = vld [vmem:[#allocation3 + $0x520] sm:$0xff]
  %v1879 = vld [vmem:[#allocation3 + $0x528] sm:$0xff]
  %v1880 = vld [vmem:[#allocation3 + $0x530] sm:$0xff]
  %v1881 = vld [vmem:[#allocation3 + $0x538] sm:$0xff]
  %v1882 = vld [vmem:[#allocation3 + $0x540] sm:$0xff]
  %v1883 = vld [vmem:[#allocation3 + $0x548] sm:$0xff]
  %v1884 = vld [vmem:[#allocation3 + $0x550] sm:$0xff]
  %v1885 = vld [vmem:[#allocation3 + $0x558] sm:$0xff]
  %v1886 = vld [vmem:[#allocation3 + $0x560] sm:$0xff]
  %v1887 = vld [vmem:[#allocation3 + $0x568] sm:$0xff]
  %v1888 = vld [vmem:[#allocation3 + $0x570] sm:$0xff]
  %v1889 = vld [vmem:[#allocation3 + $0x578] sm:$0xff]
  %v1890 = vld [vmem:[#allocation3 + $0x580] sm:$0xff]
  %v1891 = vld [vmem:[#allocation3 + $0x588] sm:$0xff]
  %v1892 = vld [vmem:[#allocation3 + $0x590] sm:$0xff]
  %v1893 = vld [vmem:[#allocation3 + $0x598] sm:$0xff]
  %v1894 = vld [vmem:[#allocation3 + $0x5a0] sm:$0xff]
  %v1895 = vld [vmem:[#allocation3 + $0x5a8] sm:$0xff]
  %v1896 = vld [vmem:[#allocation3 + $0x5b0] sm:$0xff]
  %v1897 = vld [vmem:[#allocation3 + $0x5b8] sm:$0xff]
  %v1898 = vld [vmem:[#allocation3 + $0x5c0] sm:$0xff]
  %v1899 = vld [vmem:[#allocation3 + $0x5c8] sm:$0xff]
  %v1900 = vld [vmem:[#allocation3 + $0x5d0] sm:$0xff]
  %v1901 = vld [vmem:[#allocation3 + $0x5d8] sm:$0xff]
  %v1902 = vld [vmem:[#allocation3 + $0x5e0] sm:$0xff]
  %v1903 = vld [vmem:[#allocation3 + $0x5e8] sm:$0xff]
  %v1904 = vld [vmem:[#allocation3 + $0x5f0] sm:$0xff]
  %v1905 = vld [vmem:[#allocation3 + $0x5f8] sm:$0xff]
  %v1906 = vld [vmem:[#allocation3 + $0x600] sm:$0xff]
  %v1907 = vld [vmem:[#allocation3 + $0x608] sm:$0xff]
  %v1908 = vld [vmem:[#allocation3 + $0x610] sm:$0xff]
  %v1909 = vld [vmem:[#allocation3 + $0x618] sm:$0xff]
  %v1910 = vld [vmem:[#allocation3 + $0x620] sm:$0xff]
  %v1911 = vld [vmem:[#allocation3 + $0x628] sm:$0xff]
  %v1912 = vld [vmem:[#allocation3 + $0x630] sm:$0xff]
  %v1913 = vld [vmem:[#allocation3 + $0x638] sm:$0xff]
  %v1914 = vld [vmem:[#allocation3 + $0x640] sm:$0xff]
  %v1915 = vld [vmem:[#allocation3 + $0x648] sm:$0xff]
  %v1916 = vld [vmem:[#allocation3 + $0x650] sm:$0xff]
  %v1917 = vld [vmem:[#allocation3 + $0x658] sm:$0xff]
  %v1918 = vld [vmem:[#allocation3 + $0x660] sm:$0xff]
  %v1919 = vld [vmem:[#allocation3 + $0x668] sm:$0xff]
  %v1920 = vld [vmem:[#allocation3 + $0x670] sm:$0xff]
  %v1921 = vld [vmem:[#allocation3 + $0x678] sm:$0xff]
  %v1923 = vsel %vm397, %v1709, 0
  %v1926 = vsel %vm397, %v1713, 0
  %1928 = vmatprep.subr.mxu0 %v1715
  %1929 = vmatpush1.msra.mxu0 %v1714
  %1930 = vmatprep.subr.mxu0 %v1719
  %1931 = vmatpush1.msra.mxu0 %v1718
  %1932 = vmatprep.subr.mxu0 %v1723
  %1933 = vmatpush1.msra.mxu0 %v1722
  %1934 = vmatprep.subr.mxu0 %v1727
  %1935 = vmatpush1.msra.mxu0 %v1726
  %1936 = vmatprep.subr.mxu0 %v1731
  %1937 = vmatpush1.msra.mxu0 %v1730
  %1938 = vmatprep.subr.mxu0 %v1735
  %1939 = vmatpush1.msra.mxu0 %v1734
  %1940 = vmatprep.subr.mxu0 %v1739
  %1941 = vmatpush1.msra.mxu0 %v1738
  %1942 = vmatprep.subr.mxu0 %v1743
  %1943 = vmatpush1.msra.mxu0 %v1742
  %1944 = vmatprep.subr.mxu0 %v1747
  %1945 = vmatpush1.msra.mxu0 %v1746
  %1946 = vmatprep.subr.mxu0 %v1751
  %1947 = vmatpush1.msra.mxu0 %v1750
  %1948 = vmatprep.subr.mxu0 %v1755
  %1949 = vmatpush1.msra.mxu0 %v1754
  %1950 = vmatprep.subr.mxu0 %v1759
  %1951 = vmatpush1.msra.mxu0 %v1758
  %1952 = vmatprep.subr.mxu0 %v1763
  %1953 = vmatpush1.msra.mxu0 %v1762
  %1954 = vmatprep.subr.mxu0 %v1767
  %1955 = vmatpush1.msra.mxu0 %v1766
  %1956 = vmatprep.subr.mxu0 %v1771
  %1957 = vmatpush1.msra.mxu0 %v1770
  %1958 = vmatprep.subr.mxu0 %v1775
  %1959 = vmatpush1.msra.mxu0 %v1774
  %1960 = vmatprep.subr.mxu0 %v1779
  %1961 = vmatpush1.msra.mxu0 %v1778
  %1962 = vmatprep.subr.mxu0 %v1783
  %1963 = vmatpush1.msra.mxu0 %v1782
  %1964 = vmatprep.subr.mxu0 %v1787
  %1965 = vmatpush1.msra.mxu0 %v1786
  %1966 = vmatprep.subr.mxu0 %v1791
  %1967 = vmatpush1.msra.mxu0 %v1790
  %1968 = vmatprep.subr.mxu0 %v1795
  %1969 = vmatpush1.msra.mxu0 %v1794
  %1970 = vmatprep.subr.mxu0 %v1799
  %1971 = vmatpush1.msra.mxu0 %v1798
  %1972 = vmatprep.subr.mxu0 %v1803
  %1973 = vmatpush1.msra.mxu0 %v1802
  %1974 = vmatprep.subr.mxu0 %v1807
  %1975 = vmatpush1.msra.mxu0 %v1806
  %1976 = vmatprep.subr.mxu0 %v1811
  %1977 = vmatpush1.msra.mxu0 %v1810
  %1978 = vmatprep.subr.mxu0 %v1815
  %1979 = vmatpush1.msra.mxu0 %v1814
  %1980 = vmatprep.subr.mxu0 %v1819
  %1981 = vmatpush1.msra.mxu0 %v1818
  %1982 = vmatprep.subr.mxu0 %v1823
  %1983 = vmatpush1.msra.mxu0 %v1822
  %1984 = vmatprep.subr.mxu0 %v1827
  %1985 = vmatpush1.msra.mxu0 %v1826
  %1986 = vmatprep.subr.mxu0 %v1831
  %1987 = vmatpush1.msra.mxu0 %v1830
  %1988 = vmatprep.subr.mxu0 %v1835
  %1989 = vmatpush1.msra.mxu0 %v1834
  %1990 = vmatprep.subr.mxu0 %v1839
  %1991 = vmatpush1.msra.mxu0 %v1838
  %1992 = vmatprep.mubr.f32.mxu0 %v1707
  %1993 = vmatmul.mubr.f32.gmra.mrb[0].mxu0 %v1706
  %v1994 = vpop.f32.mrb[0].mxu0
  %v1995 = vadd.f32 0.0, %v1994
  %v1996 = vpop.f32.mrb[0].mxu0
  %v1997 = vadd.f32 0.0, %v1996
  %1998 = vmatprep.mubr.f32.mxu0 %v1711
  %1999 = vmatmul.mubr.f32.gmra.mrb[0].mxu0 %v1710
  %v2000 = vpop.f32.mrb[0].mxu0
  %v2001 = vadd.f32 0.0, %v2000
  %v2002 = vpop.f32.mrb[0].mxu0
  %v2003 = vadd.f32 0.0, %v2002
  %2004 = vdwg.mxu0
  %2005 = vmatprep.subr.mxu0 %v1843
  %2006 = vmatpush1.msra.mxu0 %v1842
  %2007 = vmatprep.subr.mxu0 %v1847
  %2008 = vmatpush1.msra.mxu0 %v1846
  %2009 = vmatprep.subr.mxu0 %v1851
  %2010 = vmatpush1.msra.mxu0 %v1850
  %2011 = vmatprep.subr.mxu0 %v1855
  %2012 = vmatpush1.msra.mxu0 %v1854
  %2013 = vmatprep.subr.mxu0 %v1859
  %2014 = vmatpush1.msra.mxu0 %v1858
  %2015 = vmatprep.subr.mxu0 %v1863
  %2016 = vmatpush1.msra.mxu0 %v1862
  %2017 = vmatprep.subr.mxu0 %v1867
  %2018 = vmatpush1.msra.mxu0 %v1866
  %2019 = vmatprep.subr.mxu0 %v1871
  %2020 = vmatpush1.msra.mxu0 %v1870
  %2021 = vmatprep.subr.mxu0 %v1875
  %2022 = vmatpush1.msra.mxu0 %v1874
  %2023 = vmatprep.subr.mxu0 %v1879
  %2024 = vmatpush1.msra.mxu0 %v1878
  %2025 = vmatprep.subr.mxu0 %v1883
  %2026 = vmatpush1.msra.mxu0 %v1882
  %2027 = vmatprep.subr.mxu0 %v1887
  %2028 = vmatpush1.msra.mxu0 %v1886
  %2029 = vmatprep.subr.mxu0 %v1891
  %2030 = vmatpush1.msra.mxu0 %v1890
  %2031 = vmatprep.subr.mxu0 %v1895
  %2032 = vmatpush1.msra.mxu0 %v1894
  %2033 = vmatprep.subr.mxu0 %v1899
  %2034 = vmatpush1.msra.mxu0 %v1898
  %2035 = vmatprep.subr.mxu0 %v1903
  %2036 = vmatpush1.msra.mxu0 %v1902
  %2037 = vmatprep.subr.mxu0 %v1907
  %2038 = vmatpush1.msra.mxu0 %v1906
  %2039 = vmatprep.subr.mxu0 %v1911
  %2040 = vmatpush1.msra.mxu0 %v1910
  %2041 = vmatprep.subr.mxu0 %v1915
  %2042 = vmatpush1.msra.mxu0 %v1914
  %2043 = vmatprep.subr.mxu0 %v1919
  %2044 = vmatpush1.msra.mxu0 %v1918
  %2045 = vmatprep.subr.mxu0 0.0
  %2046 = vmatpush1.msra.mxu0 0.0
  %2047 = vmatprep.subr.mxu0 0.0
  %2048 = vmatpush1.msra.mxu0 0.0
  %2049 = vmatprep.subr.mxu0 0.0
  %2050 = vmatpush1.msra.mxu0 0.0
  %2051 = vmatprep.subr.mxu0 0.0
  %2052 = vmatpush1.msra.mxu0 0.0
  %2053 = vmatprep.subr.mxu0 0.0
  %2054 = vmatpush1.msra.mxu0 0.0
  %2055 = vmatprep.subr.mxu0 0.0
  %2056 = vmatpush1.msra.mxu0 0.0
  %2057 = vmatprep.subr.mxu0 0.0
  %2058 = vmatpush1.msra.mxu0 0.0
  %2059 = vmatprep.subr.mxu0 0.0
  %2060 = vmatpush1.msra.mxu0 0.0
  %2061 = vmatprep.subr.mxu0 0.0
  %2062 = vmatpush1.msra.mxu0 0.0
  %2063 = vmatprep.subr.mxu0 0.0
  %2064 = vmatpush1.msra.mxu0 0.0
  %2065 = vmatprep.subr.mxu0 0.0
  %2066 = vmatpush1.msra.mxu0 0.0
  %2067 = vmatprep.subr.mxu0 0.0
  %2068 = vmatpush1.msra.mxu0 0.0
  %2069 = vmatprep.mubr.f32.mxu0 %v1923
  %2070 = vmatmul.mubr.f32.gmra.mrb[0].mxu0 %v1708
  %v2071 = vpop.f32.mrb[0].mxu0
  %v2072 = vadd.f32 %v1995, %v2071
  %v2073 = vpop.f32.mrb[0].mxu0
  %v2074 = vadd.f32 %v1997, %v2073
  %2075 = vmatprep.mubr.f32.mxu0 %v1926
  %2076 = vmatmul.mubr.f32.gmra.mrb[0].mxu0 %v1712
  %v2077 = vpop.f32.mrb[0].mxu0
  %v2078 = vadd.f32 %v2001, %v2077
  %v2079 = vpop.f32.mrb[0].mxu0
  %v2080 = vadd.f32 %v2003, %v2079
  %2081 = vdwg.mxu0
  %2082 = vmatprep.subr.mxu0 %v1717
  %2083 = vmatpush1.msra.mxu0 %v1716
  %2084 = vmatprep.subr.mxu0 %v1721
  %2085 = vmatpush1.msra.mxu0 %v1720
  %2086 = vmatprep.subr.mxu0 %v1725
  %2087 = vmatpush1.msra.mxu0 %v1724
  %2088 = vmatprep.subr.mxu0 %v1729
  %2089 = vmatpush1.msra.mxu0 %v1728
  %2090 = vmatprep.subr.mxu0 %v1733
  %2091 = vmatpush1.msra.mxu0 %v1732
  %2092 = vmatprep.subr.mxu0 %v1737
  %2093 = vmatpush1.msra.mxu0 %v1736
  %2094 = vmatprep.subr.mxu0 %v1741
  %2095 = vmatpush1.msra.mxu0 %v1740
  %2096 = vmatprep.subr.mxu0 %v1745
  %2097 = vmatpush1.msra.mxu0 %v1744
  %2098 = vmatprep.subr.mxu0 %v1749
  %2099 = vmatpush1.msra.mxu0 %v1748
  %2100 = vmatprep.subr.mxu0 %v1753
  %2101 = vmatpush1.msra.mxu0 %v1752
  %2102 = vmatprep.subr.mxu0 %v1757
  %2103 = vmatpush1.msra.mxu0 %v1756
  %2104 = vmatprep.subr.mxu0 %v1761
  %2105 = vmatpush1.msra.mxu0 %v1760
  %2106 = vmatprep.subr.mxu0 %v1765
  %2107 = vmatpush1.msra.mxu0 %v1764
  %2108 = vmatprep.subr.mxu0 %v1769
  %2109 = vmatpush1.msra.mxu0 %v1768
  %2110 = vmatprep.subr.mxu0 %v1773
  %2111 = vmatpush1.msra.mxu0 %v1772
  %2112 = vmatprep.subr.mxu0 %v1777
  %2113 = vmatpush1.msra.mxu0 %v1776
  %2114 = vmatprep.subr.mxu0 %v1781
  %2115 = vmatpush1.msra.mxu0 %v1780
  %2116 = vmatprep.subr.mxu0 %v1785
  %2117 = vmatpush1.msra.mxu0 %v1784
  %2118 = vmatprep.subr.mxu0 %v1789
  %2119 = vmatpush1.msra.mxu0 %v1788
  %2120 = vmatprep.subr.mxu0 %v1793
  %2121 = vmatpush1.msra.mxu0 %v1792
  %2122 = vmatprep.subr.mxu0 %v1797
  %2123 = vmatpush1.msra.mxu0 %v1796
  %2124 = vmatprep.subr.mxu0 %v1801
  %2125 = vmatpush1.msra.mxu0 %v1800
  %2126 = vmatprep.subr.mxu0 %v1805
  %2127 = vmatpush1.msra.mxu0 %v1804
  %2128 = vmatprep.subr.mxu0 %v1809
  %2129 = vmatpush1.msra.mxu0 %v1808
  %2130 = vmatprep.subr.mxu0 %v1813
  %2131 = vmatpush1.msra.mxu0 %v1812
  %2132 = vmatprep.subr.mxu0 %v1817
  %2133 = vmatpush1.msra.mxu0 %v1816
  %2134 = vmatprep.subr.mxu0 %v1821
  %2135 = vmatpush1.msra.mxu0 %v1820
  %2136 = vmatprep.subr.mxu0 %v1825
  %2137 = vmatpush1.msra.mxu0 %v1824
  %2138 = vmatprep.subr.mxu0 %v1829
  %2139 = vmatpush1.msra.mxu0 %v1828
  %2140 = vmatprep.subr.mxu0 %v1833
  %2141 = vmatpush1.msra.mxu0 %v1832
  %2142 = vmatprep.subr.mxu0 %v1837
  %2143 = vmatpush1.msra.mxu0 %v1836
  %2144 = vmatprep.subr.mxu0 %v1841
  %2145 = vmatpush1.msra.mxu0 %v1840
  %2146 = vmatprep.mubr.f32.mxu0 %v1707
  %2147 = vmatmul.mubr.f32.gmra.mrb[0].mxu0 %v1706
  %v2148 = vpop.f32.mrb[0].mxu0
  %v2149 = vadd.f32 0.0, %v2148
  %v2150 = vpop.f32.mrb[0].mxu0
  %v2151 = vadd.f32 0.0, %v2150
  %2152 = vmatprep.mubr.f32.mxu0 %v1711
  %2153 = vmatmul.mubr.f32.gmra.mrb[0].mxu0 %v1710
  %v2154 = vpop.f32.mrb[0].mxu0
  %v2155 = vadd.f32 0.0, %v2154
  %v2156 = vpop.f32.mrb[0].mxu0
  %v2157 = vadd.f32 0.0, %v2156
  %2158 = vdwg.mxu0
  %2159 = vmatprep.subr.mxu0 %v1845
  %2160 = vmatpush1.msra.mxu0 %v1844
  %2161 = vmatprep.subr.mxu0 %v1849
  %2162 = vmatpush1.msra.mxu0 %v1848
  %2163 = vmatprep.subr.mxu0 %v1853
  %2164 = vmatpush1.msra.mxu0 %v1852
  %2165 = vmatprep.subr.mxu0 %v1857
  %2166 = vmatpush1.msra.mxu0 %v1856
  %2167 = vmatprep.subr.mxu0 %v1861
  %2168 = vmatpush1.msra.mxu0 %v1860
  %2169 = vmatprep.subr.mxu0 %v1865
  %2170 = vmatpush1.msra.mxu0 %v1864
  %2171 = vmatprep.subr.mxu0 %v1869
  %2172 = vmatpush1.msra.mxu0 %v1868
  %2173 = vmatprep.subr.mxu0 %v1873
  %2174 = vmatpush1.msra.mxu0 %v1872
  %2175 = vmatprep.subr.mxu0 %v1877
  %2176 = vmatpush1.msra.mxu0 %v1876
  %2177 = vmatprep.subr.mxu0 %v1881
  %2178 = vmatpush1.msra.mxu0 %v1880
  %2179 = vmatprep.subr.mxu0 %v1885
  %2180 = vmatpush1.msra.mxu0 %v1884
  %2181 = vmatprep.subr.mxu0 %v1889
  %2182 = vmatpush1.msra.mxu0 %v1888
  %2183 = vmatprep.subr.mxu0 %v1893
  %2184 = vmatpush1.msra.mxu0 %v1892
  %2185 = vmatprep.subr.mxu0 %v1897
  %2186 = vmatpush1.msra.mxu0 %v1896
  %2187 = vmatprep.subr.mxu0 %v1901
  %2188 = vmatpush1.msra.mxu0 %v1900
  %2189 = vmatprep.subr.mxu0 %v1905
  %2190 = vmatpush1.msra.mxu0 %v1904
  %2191 = vmatprep.subr.mxu0 %v1909
  %2192 = vmatpush1.msra.mxu0 %v1908
  %2193 = vmatprep.subr.mxu0 %v1913
  %2194 = vmatpush1.msra.mxu0 %v1912
  %2195 = vmatprep.subr.mxu0 %v1917
  %2196 = vmatpush1.msra.mxu0 %v1916
  %2197 = vmatprep.subr.mxu0 %v1921
  %2198 = vmatpush1.msra.mxu0 %v1920
  %2199 = vmatprep.subr.mxu0 0.0
  %2200 = vmatpush1.msra.mxu0 0.0
  %2201 = vmatprep.subr.mxu0 0.0
  %2202 = vmatpush1.msra.mxu0 0.0
  %2203 = vmatprep.subr.mxu0 0.0
  %2204 = vmatpush1.msra.mxu0 0.0
  %2205 = vmatprep.subr.mxu0 0.0
  %2206 = vmatpush1.msra.mxu0 0.0
  %2207 = vmatprep.subr.mxu0 0.0
  %2208 = vmatpush1.msra.mxu0 0.0
  %2209 = vmatprep.subr.mxu0 0.0
  %2210 = vmatpush1.msra.mxu0 0.0
  %2211 = vmatprep.subr.mxu0 0.0
  %2212 = vmatpush1.msra.mxu0 0.0
  %2213 = vmatprep.subr.mxu0 0.0
  %2214 = vmatpush1.msra.mxu0 0.0
  %2215 = vmatprep.subr.mxu0 0.0
  %2216 = vmatpush1.msra.mxu0 0.0
  %2217 = vmatprep.subr.mxu0 0.0
  %2218 = vmatpush1.msra.mxu0 0.0
  %2219 = vmatprep.subr.mxu0 0.0
  %2220 = vmatpush1.msra.mxu0 0.0
  %2221 = vmatprep.subr.mxu0 0.0
  %2222 = vmatpush1.msra.mxu0 0.0
  %2223 = vmatprep.mubr.f32.mxu0 %v1923
  %2224 = vmatmul.mubr.f32.gmra.mrb[0].mxu0 %v1708
  %v2225 = vpop.f32.mrb[0].mxu0
  %v2226 = vadd.f32 %v2149, %v2225
  %v2227 = vpop.f32.mrb[0].mxu0
  %v2228 = vadd.f32 %v2151, %v2227
  %2229 = vmatprep.mubr.f32.mxu0 %v1926
  %2230 = vmatmul.mubr.f32.gmra.mrb[0].mxu0 %v1712
  %v2231 = vpop.f32.mrb[0].mxu0
  %v2232 = vadd.f32 %v2155, %v2231
  %v2233 = vpop.f32.mrb[0].mxu0
  %v2234 = vadd.f32 %v2157, %v2233
  %2235 = vdwg.mxu0
  %v2236 = vld [vmem:[%s0] sm:$0xff]
  %v2237 = vld [vmem:[%s0 + $0x8] sm:$0xff]
  %v2238 = vld [vmem:[%s0 + $0x10] sm:$0x3]
  %v2239 = vld [vmem:[%s0 + $0x18] sm:$0x3]
  %v2240 = vadd.f32 %v2072, %v2236
  %v2241 = vadd.f32 %v2074, %v2237
  %v2242 = vadd.f32 %v2078, %v2238
  %v2243 = vadd.f32 %v2080, %v2239
  %2244 = vst [vmem:[%s2] sm:$0xff] %v2240
  %2245 = vst [vmem:[%s2 + $0x8] sm:$0xff] %v2241
  %2246 = vst [vmem:[%s2 + $0x10] sm:$0x3] %v2242
  %2247 = vst [vmem:[%s2 + $0x18] sm:$0x3] %v2243
  %v2248 = vld [vmem:[%s1021] sm:$0xff]
  %v2249 = vld [vmem:[%s1021 + $0x8] sm:$0xff]
  %v2250 = vld [vmem:[%s1021 + $0x10] sm:$0x3]
  %v2251 = vld [vmem:[%s1021 + $0x18] sm:$0x3]
  %v2252 = vadd.f32 %v2226, %v2248
  %v2253 = vadd.f32 %v2228, %v2249
  %v2254 = vadd.f32 %v2232, %v2250
  %v2255 = vadd.f32 %v2234, %v2251
  %s2256 = scalar_lea.vmem %s2, 32
  %2257 = vst [vmem:[%s2256] sm:$0xff] %v2252
  %2258 = vst [vmem:[%s2256 + $0x8] sm:$0xff] %v2253
  %2259 = vst [vmem:[%s2256 + $0x10] sm:$0x3] %v2254
  %2260 = vst [vmem:[%s2256 + $0x18] sm:$0x3] %v2255
  // Predicated region
  $region14: #{tpu_custom_call.1} parent=0 // pred_check
    _
  $region15: #{tpu_custom_call.1} parent=0 // pred_check_branch
    %2262 = sbr.rel (0) target = $region17
  $region16: #{tpu_custom_call.1} parent=0 // pred_region
    _
  $region17: #{tpu_custom_call.1} parent=0 // pred_fallthru
    _
  // Predicated region
  $region18: #{tpu_custom_call.1} parent=0 // pred_check
    _
  $region19: #{tpu_custom_call.1} parent=0 // pred_check_branch
    %2264 = sbr.rel (0) target = $region21
  $region20: #{tpu_custom_call.1} parent=0 // pred_region
    _
  $region21: #{tpu_custom_call.1} parent=0 // pred_fallthru
    _

</llo_original>
